<compile_context>
chip_gen: v7x
topology: tpu7x:2x2x1
jax: 0.10.0
libtpu: 0.0.40
codegen_flags: <defaults>
</compile_context>

<pallas_src>
import functools

import jax
import jax.numpy as jnp
from jax.experimental import pallas as pl
from jax.experimental.pallas import tpu as pltpu

KSIZE = 3
K_PAD = 128  # 9 * C_in (= 27) padded up to a lane-aligned MXU contraction depth


# ----------------------------------------------------------------------------
# Fused kernel: im2col + one conv matmul -> global max pool -> bias + ReLU
#               -> Linear head -> L2 normalize.  One grid step per BLOCK_N images.
# ----------------------------------------------------------------------------
def fused_extractor_kernel(x_ref, cw_ref, cb_ref, hw_ref, hb_ref, o_ref,
                           xp_ref, patch_ref):
    # x_ref:     (B, H, W, C)        f32   raw NHWC image block (no padding)
    # cw_ref:    (K_PAD, C_feat)     bf16  im2col conv weights, row = (di*3+dj)*C + c
    # cb_ref:    (1, C_feat)         f32
    # hw_ref:    (C_feat, E)         bf16
    # hb_ref:    (1, E)              f32
    # o_ref:     (1, B, E)           f32
    # xp_ref:    (B, H+2, W+2, C)    f32   scratch: zero-halo padded image
    # patch_ref: (B, H, W, K_PAD)    bf16  scratch: lane-dense im2col patch
    b, h, w, c = x_ref.shape
    kp, c_feat = cw_ref.shape

    # Zero the scratches every step: the halo and the padded-K columns must be
    # zero, and under megacore "parallel" grid sharding there is no reliable
    # per-core "first step" to initialize them just once.  (Cheap: ~0.5 MiB.)
    xp_ref[...] = jnp.zeros_like(xp_ref)
    patch_ref[...] = jnp.zeros_like(patch_ref)

    # SAME padding: place the image in the interior of the zero halo.
    xp_ref[:, 1:h + 1, 1:w + 1, :] = x_ref[...]

    # Build the im2col patch once into a dense 128-wide K buffer (one narrow
    # masked store per tap; no lane-sparse per-tap reshapes feeding the MXU).
    for di in range(KSIZE):
        for dj in range(KSIZE):
            t = di * KSIZE + dj
            patch_ref[:, :, :, t * c:(t + 1) * c] = (
                xp_ref[:, di:di + h, dj:dj + w, :].astype(patch_ref.dtype))

    # Single MXU matmul for the whole conv: (B*H*W, K_PAD) @ (K_PAD, C_feat),
    # bf16 operands, f32 accumulation.
    patch = patch_ref[...].reshape(b * h * w, kp)
    acc = jnp.dot(patch, cw_ref[...], preferred_element_type=jnp.float32)

    # Global max pool of the RAW conv output, then bias + ReLU.  Exact:
    # max(relu(x + b)) == relu(max(x) + b) by monotonicity.
    pooled = jnp.concatenate(
        [jnp.max(acc[i * h * w:(i + 1) * h * w, :], axis=0, keepdims=True)
         for i in range(b)], axis=0)                          # (B, C_feat) f32
    feat = jnp.maximum(pooled + cb_ref[...], 0.0)             # (B, C_feat) f32

    # Head Linear: bf16 operands, f32 accumulate + bias.
    emb = jnp.dot(feat.astype(hw_ref.dtype), hw_ref[...],
                  preferred_element_type=jnp.float32) + hb_ref[...]   # (B, E)

    # F.normalize(x, p=2, dim=-1, eps=1e-12) == x * rsqrt(max(sum(x^2), eps^2))
    sq = jnp.sum(emb * emb, axis=-1, keepdims=True)
    o_ref[0] = (emb * jax.lax.rsqrt(jnp.maximum(sq, 1e-24))).astype(o_ref.dtype)


# ----------------------------------------------------------------------------
# Wrapper
# ----------------------------------------------------------------------------
@functools.partial(jax.jit, static_argnames=("block_n",))
def extractor_forward(x_nchw, params, *, block_n=2):
    n, c_in, h, w = x_nchw.shape
    conv_w = params["conv_w"]            # (K_PAD, C_feat)  bf16
    conv_b = params["conv_b"]            # (1, C_feat)      f32
    head_w = params["head_w"]            # (C_feat, E)      bf16
    head_b = params["head_b"]            # (1, E)           f32
    c_feat = conv_w.shape[1]
    e = head_w.shape[1]

    # NCHW -> NHWC layout only; no host-side spatial/channel pad, no im2col.
    x_nhwc = jnp.transpose(x_nchw, (0, 2, 3, 1))

    # Round the batch up to a multiple of the per-step image block.
    grid_n = -(-n // block_n)
    n_pad = grid_n * block_n
    if n_pad != n:
        x_nhwc = jnp.pad(x_nhwc, ((0, n_pad - n), (0, 0), (0, 0), (0, 0)))

    flops = n_pad * (2 * h * w * K_PAD * c_feat + 2 * c_feat * e)
    bytes_accessed = (4 * x_nhwc.size + 2 * (conv_w.size + head_w.size)
                      + 4 * (conv_b.size + head_b.size) + 4 * n_pad * e)

    out3 = pl.pallas_call(
        fused_extractor_kernel,
        out_shape=jax.ShapeDtypeStruct((grid_n, block_n, e), jnp.float32),
        grid_spec=pltpu.PrefetchScalarGridSpec(
            num_scalar_prefetch=0,
            grid=(grid_n,),
            in_specs=[
                pl.BlockSpec((block_n, h, w, c_in), lambda i: (i, 0, 0, 0)),
                pl.BlockSpec((K_PAD, c_feat), lambda i: (0, 0)),
                pl.BlockSpec((1, c_feat), lambda i: (0, 0)),
                pl.BlockSpec((c_feat, e), lambda i: (0, 0)),
                pl.BlockSpec((1, e), lambda i: (0, 0)),
            ],
            out_specs=pl.BlockSpec((1, block_n, e), lambda i: (i, 0, 0)),
            scratch_shapes=[
                pltpu.VMEM((block_n, h + 2, w + 2, c_in), jnp.float32),
                pltpu.VMEM((block_n, h, w, K_PAD), jnp.bfloat16),
            ],
        ),
        compiler_params=pltpu.CompilerParams(
            dimension_semantics=("parallel",),
            # Footprint here is ~2 MiB; 48 MiB leaves headroom on every chip
            # generation (v7x has only 64 MiB physical VMEM).
            vmem_limit_bytes=48 * 1024 * 1024,
        ),
        cost_estimate=pl.CostEstimate(
            flops=flops, transcendentals=n_pad, bytes_accessed=bytes_accessed),
    )(x_nhwc, conv_w, conv_b, head_w, head_b)

    return out3.reshape(n_pad, e)[:n]


# ----------------------------------------------------------------------------
# Synthetic deterministic parameters (stand-in for the pretrained backbone)
# ----------------------------------------------------------------------------
def init_params(key, c_in, c_feat, emb_dim):
    k1, k2, k3, k4 = jax.random.split(key, 4)
    fan_conv = c_in * KSIZE * KSIZE
    conv_w_hwio = (jax.random.normal(k1, (KSIZE, KSIZE, c_in, c_feat), jnp.float32)
                   / jnp.sqrt(fan_conv))
    conv_b = jax.random.normal(k2, (1, c_feat), jnp.float32) * 0.01
    head_w = jax.random.normal(k3, (c_feat, emb_dim), jnp.float32) / jnp.sqrt(c_feat)
    head_b = jax.random.normal(k4, (1, emb_dim), jnp.float32) * 0.01
    return dict(conv_w_hwio=conv_w_hwio, conv_b=conv_b,
                head_w=head_w, head_b=head_b)


def pack_params(p):
    """Kernel-ready params: im2col conv weights (K padded to 128), bf16 matmul operands."""
    kh, kw, c_in, c_feat = p["conv_w_hwio"].shape
    cw = p["conv_w_hwio"].reshape(kh * kw * c_in, c_feat)     # row = (di*3+dj)*C + c
    cw = jnp.pad(cw, ((0, K_PAD - kh * kw * c_in), (0, 0)))   # zero rows for padded K
    return dict(conv_w=cw.astype(jnp.bfloat16),
                conv_b=p["conv_b"],
                head_w=p["head_w"].astype(jnp.bfloat16),
                head_b=p["head_b"])


# ----------------------------------------------------------------------------
# Plain-JAX f32 reference (original op order) for a correctness cross-check
# ----------------------------------------------------------------------------
def reference_forward(x_nchw, p):
    x_nhwc = jnp.transpose(x_nchw, (0, 2, 3, 1))
    feat = jax.lax.conv_general_dilated(
        x_nhwc, p["conv_w_hwio"], window_strides=(1, 1), padding="SAME",
        dimension_numbers=("NHWC", "HWIO", "NHWC"))
    feat = jnp.maximum(feat + p["conv_b"][0], 0.0)
    pooled = jnp.max(feat, axis=(1, 2))
    emb = pooled @ p["head_w"] + p["head_b"][0]
    norm = jnp.maximum(jnp.linalg.norm(emb, axis=-1, keepdims=True), 1e-12)
    return emb / norm


if __name__ == "__main__":
    key = jax.random.PRNGKey(0)
    k_x, k_p = jax.random.split(key)

    N, C_in, H, W = 4, 3, 16, 16
    C_feat, EMB = 256, 128          # lane-dense: multiples of 128
    BLOCK_N = 2                     # images per grid step -> grid=(2,), both v7x cores busy

    x = jax.random.normal(k_x, (N, C_in, H, W), jnp.float32)   # NCHW like PyTorch
    raw_params = init_params(k_p, C_in, C_feat, EMB)
    params = pack_params(raw_params)

    out = extractor_forward(x, params, block_n=BLOCK_N)
    out = jax.block_until_ready(out)

    assert out.shape == (N, EMB)
    # embeddings are L2-normalized along the last dim (normalization done in f32)
    norms = jnp.linalg.norm(out, axis=-1)
    assert bool(jnp.all(jnp.abs(norms - 1.0) < 1e-4)), "embeddings not L2-normalized"

    # cross-check against the plain-JAX f32 reference; matmul operands are bf16
    # in the kernel (f32 accumulate), so use a correspondingly relaxed tolerance.
    ref = reference_forward(x, raw_params)
    assert bool(jnp.allclose(out, ref, atol=1e-2)), "mismatch vs reference"

    print("KERNEL_OK")
</pallas_src>

<mosaic_0001>
module attributes {stable_mosaic.version = 11 : i64} {
  func.func @fused_extractor_kernel(%arg0: i32, %arg1: memref<2x16x16x3xf32, #tpu.memory_space<vmem>>, %arg2: memref<128x256xbf16, #tpu.memory_space<vmem>>, %arg3: memref<1x256xf32, #tpu.memory_space<vmem>>, %arg4: memref<256x128xbf16, #tpu.memory_space<vmem>>, %arg5: memref<1x128xf32, #tpu.memory_space<vmem>>, %arg6: memref<1x2x128xf32, #tpu.memory_space<vmem>>, %arg7: memref<2x18x18x3xf32, #tpu.memory_space<vmem>>, %arg8: memref<2x16x16x128xbf16, #tpu.memory_space<vmem>>) attributes {dimension_semantics = [#tpu.dimension_semantics<parallel>], iteration_bounds = array<i64: 2>, scalar_prefetch = 0 : i64, scratch_operands = 2 : i64, tpu.core_type = #tpu.core_type<tc>, window_params = [{transform_indices = @transform_0, window_bounds = array<i64: 2, 16, 16, 3>}, {pipeline_mode = #tpu.pipeline_mode<synchronous>, transform_indices = @transform_1, window_bounds = array<i64: 128, 256>}, {pipeline_mode = #tpu.pipeline_mode<synchronous>, transform_indices = @transform_2, window_bounds = array<i64: 1, 256>}, {pipeline_mode = #tpu.pipeline_mode<synchronous>, transform_indices = @transform_3, window_bounds = array<i64: 256, 128>}, {pipeline_mode = #tpu.pipeline_mode<synchronous>, transform_indices = @transform_4, window_bounds = array<i64: 1, 128>}, {transform_indices = @transform_5, window_bounds = array<i64: 1, 2, 128>}]} {
    %cst = arith.constant 0.000000e+00 : f32
    %0 = vector.broadcast %cst : f32 to vector<2x18x18x3xf32>
    %c0 = arith.constant 0 : index
    %c0_0 = arith.constant 0 : index
    %c0_1 = arith.constant 0 : index
    %c0_2 = arith.constant 0 : index
    %1 = vector.load %arg7[%c0, %c0_0, %c0_1, %c0_2] : memref<2x18x18x3xf32, #tpu.memory_space<vmem>>, vector<2x18x18x3xf32>
    tpu.vector_store %arg7[%c0, %c0_0, %c0_1, %c0_2], %0 {strides = array<i32>} : memref<2x18x18x3xf32, #tpu.memory_space<vmem>>, vector<2x18x18x3xf32>,
    %cst_3 = arith.constant 0.000000e+00 : bf16
    %2 = vector.broadcast %cst_3 : bf16 to vector<2x16x16x128xbf16>
    %c0_4 = arith.constant 0 : index
    %c0_5 = arith.constant 0 : index
    %c0_6 = arith.constant 0 : index
    %c0_7 = arith.constant 0 : index
    %3 = vector.load %arg8[%c0_4, %c0_5, %c0_6, %c0_7] : memref<2x16x16x128xbf16, #tpu.memory_space<vmem>>, vector<2x16x16x128xbf16>
    tpu.vector_store %arg8[%c0_4, %c0_5, %c0_6, %c0_7], %2 {strides = array<i32>} : memref<2x16x16x128xbf16, #tpu.memory_space<vmem>>, vector<2x16x16x128xbf16>,
    %c0_8 = arith.constant 0 : index
    %c0_9 = arith.constant 0 : index
    %c0_10 = arith.constant 0 : index
    %c0_11 = arith.constant 0 : index
    %4 = vector.load %arg1[%c0_8, %c0_9, %c0_10, %c0_11] : memref<2x16x16x3xf32, #tpu.memory_space<vmem>>, vector<2x16x16x3xf32>
    %c0_12 = arith.constant 0 : index
    %c1 = arith.constant 1 : index
    %c1_13 = arith.constant 1 : index
    %c0_14 = arith.constant 0 : index
    %5 = vector.load %arg7[%c0_12, %c1, %c1_13, %c0_14] : memref<2x18x18x3xf32, #tpu.memory_space<vmem>>, vector<2x16x16x3xf32>
    tpu.vector_store %arg7[%c0_12, %c1, %c1_13, %c0_14], %4 {strides = array<i32>} : memref<2x18x18x3xf32, #tpu.memory_space<vmem>>, vector<2x16x16x3xf32>,
    %c0_15 = arith.constant 0 : index
    %c0_16 = arith.constant 0 : index
    %c0_17 = arith.constant 0 : index
    %c0_18 = arith.constant 0 : index
    %6 = vector.load %arg7[%c0_15, %c0_16, %c0_17, %c0_18] : memref<2x18x18x3xf32, #tpu.memory_space<vmem>>, vector<2x16x16x3xf32>
    %7 = arith.truncf %6 : vector<2x16x16x3xf32> to vector<2x16x16x3xbf16>
    %c0_19 = arith.constant 0 : index
    %c0_20 = arith.constant 0 : index
    %c0_21 = arith.constant 0 : index
    %c0_22 = arith.constant 0 : index
    %8 = vector.load %arg8[%c0_19, %c0_20, %c0_21, %c0_22] : memref<2x16x16x128xbf16, #tpu.memory_space<vmem>>, vector<2x16x16x3xbf16>
    tpu.vector_store %arg8[%c0_19, %c0_20, %c0_21, %c0_22], %7 {strides = array<i32>} : memref<2x16x16x128xbf16, #tpu.memory_space<vmem>>, vector<2x16x16x3xbf16>,
    %c0_23 = arith.constant 0 : index
    %c0_24 = arith.constant 0 : index
    %c1_25 = arith.constant 1 : index
    %c0_26 = arith.constant 0 : index
    %9 = vector.load %arg7[%c0_23, %c0_24, %c1_25, %c0_26] : memref<2x18x18x3xf32, #tpu.memory_space<vmem>>, vector<2x16x16x3xf32>
    %10 = arith.truncf %9 : vector<2x16x16x3xf32> to vector<2x16x16x3xbf16>
    %c0_27 = arith.constant 0 : index
    %c0_28 = arith.constant 0 : index
    %c0_29 = arith.constant 0 : index
    %c3 = arith.constant 3 : index
    %11 = vector.load %arg8[%c0_27, %c0_28, %c0_29, %c3] : memref<2x16x16x128xbf16, #tpu.memory_space<vmem>>, vector<2x16x16x3xbf16>
    tpu.vector_store %arg8[%c0_27, %c0_28, %c0_29, %c3], %10 {strides = array<i32>} : memref<2x16x16x128xbf16, #tpu.memory_space<vmem>>, vector<2x16x16x3xbf16>,
    %c0_30 = arith.constant 0 : index
    %c0_31 = arith.constant 0 : index
    %c2 = arith.constant 2 : index
    %c0_32 = arith.constant 0 : index
    %12 = vector.load %arg7[%c0_30, %c0_31, %c2, %c0_32] : memref<2x18x18x3xf32, #tpu.memory_space<vmem>>, vector<2x16x16x3xf32>
    %13 = arith.truncf %12 : vector<2x16x16x3xf32> to vector<2x16x16x3xbf16>
    %c0_33 = arith.constant 0 : index
    %c0_34 = arith.constant 0 : index
    %c0_35 = arith.constant 0 : index
    %c6 = arith.constant 6 : index
    %14 = vector.load %arg8[%c0_33, %c0_34, %c0_35, %c6] : memref<2x16x16x128xbf16, #tpu.memory_space<vmem>>, vector<2x16x16x3xbf16>
    tpu.vector_store %arg8[%c0_33, %c0_34, %c0_35, %c6], %13 {strides = array<i32>} : memref<2x16x16x128xbf16, #tpu.memory_space<vmem>>, vector<2x16x16x3xbf16>,
    %c0_36 = arith.constant 0 : index
    %c1_37 = arith.constant 1 : index
    %c0_38 = arith.constant 0 : index
    %c0_39 = arith.constant 0 : index
    %15 = vector.load %arg7[%c0_36, %c1_37, %c0_38, %c0_39] : memref<2x18x18x3xf32, #tpu.memory_space<vmem>>, vector<2x16x16x3xf32>
    %16 = arith.truncf %15 : vector<2x16x16x3xf32> to vector<2x16x16x3xbf16>
    %c0_40 = arith.constant 0 : index
    %c0_41 = arith.constant 0 : index
    %c0_42 = arith.constant 0 : index
    %c9 = arith.constant 9 : index
    %17 = vector.load %arg8[%c0_40, %c0_41, %c0_42, %c9] : memref<2x16x16x128xbf16, #tpu.memory_space<vmem>>, vector<2x16x16x3xbf16>
    tpu.vector_store %arg8[%c0_40, %c0_41, %c0_42, %c9], %16 {strides = array<i32>} : memref<2x16x16x128xbf16, #tpu.memory_space<vmem>>, vector<2x16x16x3xbf16>,
    %c0_43 = arith.constant 0 : index
    %c1_44 = arith.constant 1 : index
    %c1_45 = arith.constant 1 : index
    %c0_46 = arith.constant 0 : index
    %18 = vector.load %arg7[%c0_43, %c1_44, %c1_45, %c0_46] : memref<2x18x18x3xf32, #tpu.memory_space<vmem>>, vector<2x16x16x3xf32>
    %19 = arith.truncf %18 : vector<2x16x16x3xf32> to vector<2x16x16x3xbf16>
    %c0_47 = arith.constant 0 : index
    %c0_48 = arith.constant 0 : index
    %c0_49 = arith.constant 0 : index
    %c12 = arith.constant 12 : index
    %20 = vector.load %arg8[%c0_47, %c0_48, %c0_49, %c12] : memref<2x16x16x128xbf16, #tpu.memory_space<vmem>>, vector<2x16x16x3xbf16>
    tpu.vector_store %arg8[%c0_47, %c0_48, %c0_49, %c12], %19 {strides = array<i32>} : memref<2x16x16x128xbf16, #tpu.memory_space<vmem>>, vector<2x16x16x3xbf16>,
    %c0_50 = arith.constant 0 : index
    %c1_51 = arith.constant 1 : index
    %c2_52 = arith.constant 2 : index
    %c0_53 = arith.constant 0 : index
    %21 = vector.load %arg7[%c0_50, %c1_51, %c2_52, %c0_53] : memref<2x18x18x3xf32, #tpu.memory_space<vmem>>, vector<2x16x16x3xf32>
    %22 = arith.truncf %21 : vector<2x16x16x3xf32> to vector<2x16x16x3xbf16>
    %c0_54 = arith.constant 0 : index
    %c0_55 = arith.constant 0 : index
    %c0_56 = arith.constant 0 : index
    %c15 = arith.constant 15 : index
    %23 = vector.load %arg8[%c0_54, %c0_55, %c0_56, %c15] : memref<2x16x16x128xbf16, #tpu.memory_space<vmem>>, vector<2x16x16x3xbf16>
    tpu.vector_store %arg8[%c0_54, %c0_55, %c0_56, %c15], %22 {strides = array<i32>} : memref<2x16x16x128xbf16, #tpu.memory_space<vmem>>, vector<2x16x16x3xbf16>,
    %c0_57 = arith.constant 0 : index
    %c2_58 = arith.constant 2 : index
    %c0_59 = arith.constant 0 : index
    %c0_60 = arith.constant 0 : index
    %24 = vector.load %arg7[%c0_57, %c2_58, %c0_59, %c0_60] : memref<2x18x18x3xf32, #tpu.memory_space<vmem>>, vector<2x16x16x3xf32>
    %25 = arith.truncf %24 : vector<2x16x16x3xf32> to vector<2x16x16x3xbf16>
    %c0_61 = arith.constant 0 : index
    %c0_62 = arith.constant 0 : index
    %c0_63 = arith.constant 0 : index
    %c18 = arith.constant 18 : index
    %26 = vector.load %arg8[%c0_61, %c0_62, %c0_63, %c18] : memref<2x16x16x128xbf16, #tpu.memory_space<vmem>>, vector<2x16x16x3xbf16>
    tpu.vector_store %arg8[%c0_61, %c0_62, %c0_63, %c18], %25 {strides = array<i32>} : memref<2x16x16x128xbf16, #tpu.memory_space<vmem>>, vector<2x16x16x3xbf16>,
    %c0_64 = arith.constant 0 : index
    %c2_65 = arith.constant 2 : index
    %c1_66 = arith.constant 1 : index
    %c0_67 = arith.constant 0 : index
    %27 = vector.load %arg7[%c0_64, %c2_65, %c1_66, %c0_67] : memref<2x18x18x3xf32, #tpu.memory_space<vmem>>, vector<2x16x16x3xf32>
    %28 = arith.truncf %27 : vector<2x16x16x3xf32> to vector<2x16x16x3xbf16>
    %c0_68 = arith.constant 0 : index
    %c0_69 = arith.constant 0 : index
    %c0_70 = arith.constant 0 : index
    %c21 = arith.constant 21 : index
    %29 = vector.load %arg8[%c0_68, %c0_69, %c0_70, %c21] : memref<2x16x16x128xbf16, #tpu.memory_space<vmem>>, vector<2x16x16x3xbf16>
    tpu.vector_store %arg8[%c0_68, %c0_69, %c0_70, %c21], %28 {strides = array<i32>} : memref<2x16x16x128xbf16, #tpu.memory_space<vmem>>, vector<2x16x16x3xbf16>,
    %c0_71 = arith.constant 0 : index
    %c2_72 = arith.constant 2 : index
    %c2_73 = arith.constant 2 : index
    %c0_74 = arith.constant 0 : index
    %30 = vector.load %arg7[%c0_71, %c2_72, %c2_73, %c0_74] : memref<2x18x18x3xf32, #tpu.memory_space<vmem>>, vector<2x16x16x3xf32>
    %31 = arith.truncf %30 : vector<2x16x16x3xf32> to vector<2x16x16x3xbf16>
    %c0_75 = arith.constant 0 : index
    %c0_76 = arith.constant 0 : index
    %c0_77 = arith.constant 0 : index
    %c24 = arith.constant 24 : index
    %32 = vector.load %arg8[%c0_75, %c0_76, %c0_77, %c24] : memref<2x16x16x128xbf16, #tpu.memory_space<vmem>>, vector<2x16x16x3xbf16>
    tpu.vector_store %arg8[%c0_75, %c0_76, %c0_77, %c24], %31 {strides = array<i32>} : memref<2x16x16x128xbf16, #tpu.memory_space<vmem>>, vector<2x16x16x3xbf16>,
    %c0_78 = arith.constant 0 : index
    %c0_79 = arith.constant 0 : index
    %c0_80 = arith.constant 0 : index
    %c0_81 = arith.constant 0 : index
    %33 = vector.load %arg8[%c0_78, %c0_79, %c0_80, %c0_81] : memref<2x16x16x128xbf16, #tpu.memory_space<vmem>>, vector<2x16x16x128xbf16>
    %34 = vector.shape_cast %33 : vector<2x16x16x128xbf16> to vector<512x128xbf16>
    %c0_82 = arith.constant 0 : index
    %c0_83 = arith.constant 0 : index
    %35 = vector.load %arg2[%c0_82, %c0_83] : memref<128x256xbf16, #tpu.memory_space<vmem>>, vector<128x256xbf16>
    %cst_84 = arith.constant dense<0.000000e+00> : vector<512x256xf32>
    %36 = tpu.matmul %34, %35, %cst_84 {dimension_numbers = #tpu.dot_dimension_numbers<[1], [0], [0], [1], [0, 0, 1, 1], [], []>} : vector<512x128xbf16>, vector<128x256xbf16>, vector<512x256xf32> -> vector<512x256xf32>
    %37 = vector.extract_strided_slice %36 {offsets = [0, 0], sizes = [256, 256], strides = [1, 1]} : vector<512x256xf32> to vector<256x256xf32>
    %cst_85 = arith.constant dense<0xFF800000> : vector<256xf32>
    %38 = vector.multi_reduction <maximumf>, %37, %cst_85 [0] : vector<256x256xf32> to vector<256xf32>
    %39 = vector.shape_cast %38 : vector<256xf32> to vector<1x256xf32>
    %40 = vector.extract_strided_slice %36 {offsets = [256, 0], sizes = [256, 256], strides = [1, 1]} : vector<512x256xf32> to vector<256x256xf32>
    %cst_86 = arith.constant dense<0xFF800000> : vector<256xf32>
    %41 = vector.multi_reduction <maximumf>, %40, %cst_86 [0] : vector<256x256xf32> to vector<256xf32>
    %42 = vector.shape_cast %41 : vector<256xf32> to vector<1x256xf32>
    %43 = tpu.concatenate %39, %42 in 0 : vector<1x256xf32>, vector<1x256xf32> -> vector<2x256xf32>
    %c0_87 = arith.constant 0 : index
    %c0_88 = arith.constant 0 : index
    %44 = vector.load %arg3[%c0_87, %c0_88] : memref<1x256xf32, #tpu.memory_space<vmem>>, vector<1x256xf32>
    %45 = vector.broadcast %44 : vector<1x256xf32> to vector<2x256xf32>
    %46 = arith.addf %43, %45 : vector<2x256xf32>
    %cst_89 = arith.constant 0.000000e+00 : f32
    %47 = vector.broadcast %cst_89 : f32 to vector<2x256xf32>
    %48 = arith.maximumf %46, %47 : vector<2x256xf32>
    %49 = arith.truncf %48 : vector<2x256xf32> to vector<2x256xbf16>
    %c0_90 = arith.constant 0 : index
    %c0_91 = arith.constant 0 : index
    %50 = vector.load %arg4[%c0_90, %c0_91] : memref<256x128xbf16, #tpu.memory_space<vmem>>, vector<256x128xbf16>
    %cst_92 = arith.constant dense<0.000000e+00> : vector<2x128xf32>
    %51 = tpu.matmul %49, %50, %cst_92 {dimension_numbers = #tpu.dot_dimension_numbers<[1], [0], [0], [1], [0, 0, 1, 1], [], []>} : vector<2x256xbf16>, vector<256x128xbf16>, vector<2x128xf32> -> vector<2x128xf32>
    %c0_93 = arith.constant 0 : index
    %c0_94 = arith.constant 0 : index
    %52 = vector.load %arg5[%c0_93, %c0_94] : memref<1x128xf32, #tpu.memory_space<vmem>>, vector<1x128xf32>
    %53 = vector.broadcast %52 : vector<1x128xf32> to vector<2x128xf32>
    %54 = arith.addf %51, %53 : vector<2x128xf32>
    %55 = arith.mulf %54, %54 : vector<2x128xf32>
    %cst_95 = arith.constant dense<0.000000e+00> : vector<2xf32>
    %56 = vector.multi_reduction <add>, %55, %cst_95 [1] : vector<2x128xf32> to vector<2xf32>
    %57 = vector.shape_cast %56 : vector<2xf32> to vector<2x1xf32>
    %cst_96 = arith.constant 1.000000e-24 : f32
    %58 = vector.broadcast %cst_96 : f32 to vector<2x1xf32>
    %59 = arith.maximumf %57, %58 : vector<2x1xf32>
    %60 = math.rsqrt %59 : vector<2x1xf32>
    %61 = vector.broadcast %60 : vector<2x1xf32> to vector<2x128xf32>
    %62 = arith.mulf %54, %61 : vector<2x128xf32>
    %c0_97 = arith.constant 0 : index
    %c0_98 = arith.constant 0 : index
    %c0_99 = arith.constant 0 : index
    %63 = vector.load %arg6[%c0_97, %c0_98, %c0_99] : memref<1x2x128xf32, #tpu.memory_space<vmem>>, vector<1x2x128xf32>
    %64 = vector.shape_cast %63 : vector<1x2x128xf32> to vector<2x128xf32>
    %65 = vector.shape_cast %62 : vector<2x128xf32> to vector<1x2x128xf32>
    tpu.vector_store %arg6[%c0_97, %c0_98, %c0_99], %65 {strides = array<i32>} : memref<1x2x128xf32, #tpu.memory_space<vmem>>, vector<1x2x128xf32>,
    return
  }
  func.func @transform_0(%arg0: i32) -> (i32, i32, i32, i32) {
    %c0_i32 = arith.constant 0 : i32
    %c0_i32_0 = arith.constant 0 : i32
    %c0_i32_1 = arith.constant 0 : i32
    %c0_i32_2 = arith.constant 0 : i32
    return %arg0, %c0_i32, %c0_i32_0, %c0_i32_1 : i32, i32, i32, i32
  }
  func.func @transform_1(%arg0: i32) -> (i32, i32) {
    %c0_i32 = arith.constant 0 : i32
    %c0_i32_0 = arith.constant 0 : i32
    %c0_i32_1 = arith.constant 0 : i32
    return %c0_i32, %c0_i32_0 : i32, i32
  }
  func.func @transform_2(%arg0: i32) -> (i32, i32) {
    %c0_i32 = arith.constant 0 : i32
    %c0_i32_0 = arith.constant 0 : i32
    %c0_i32_1 = arith.constant 0 : i32
    return %c0_i32, %c0_i32_0 : i32, i32
  }
  func.func @transform_3(%arg0: i32) -> (i32, i32) {
    %c0_i32 = arith.constant 0 : i32
    %c0_i32_0 = arith.constant 0 : i32
    %c0_i32_1 = arith.constant 0 : i32
    return %c0_i32, %c0_i32_0 : i32, i32
  }
  func.func @transform_4(%arg0: i32) -> (i32, i32) {
    %c0_i32 = arith.constant 0 : i32
    %c0_i32_0 = arith.constant 0 : i32
    %c0_i32_1 = arith.constant 0 : i32
    return %c0_i32, %c0_i32_0 : i32, i32
  }
  func.func @transform_5(%arg0: i32) -> (i32, i32, i32) {
    %c0_i32 = arith.constant 0 : i32
    %c0_i32_0 = arith.constant 0 : i32
    %c0_i32_1 = arith.constant 0 : i32
    return %arg0, %c0_i32, %c0_i32_0 : i32, i32, i32
  }
}

</mosaic_0001>

<llo_original>
// kernel: extractor_forward.1
$region0: #{extractor_forward.1}
  #allocation0 [shape = 'u32[]', space=smem, size = 0x4, offset = 0x4, fixed_abs, tag = 'smem constant byte address 0x4 - core index']
  #allocation1 [shape = 'u32[144,128]{1,0:T(1,128)}', space=vmem, size = 0x12000, scoped, tag = 'internal scratch']
  #allocation2 [shape = 'f32[2,18,18,3]{3,2,1,0:T(8,128)}', space=vmem, size = 0x6c000, scoped, tag = 'scratch operand']
  #allocation3 [shape = 'bf16[2,16,16,128]{3,2,1,0:T(16,128)(2,1)}', space=vmem, size = 0x20000, scoped, tag = 'scratch operand']
  %s0 = inlined_call_operand.vmem [shape: f32[4,16,16,3], index: 0, kind: input, shape index: {}]
  %s1 = inlined_call_operand.vmem [shape: bf16[128,256], index: 1, kind: input, shape index: {}]
  %s2 = inlined_call_operand.vmem [shape: f32[1,256], index: 2, kind: input, shape index: {}]
  %s3 = inlined_call_operand.vmem [shape: bf16[256,128], index: 3, kind: input, shape index: {}]
  %s4 = inlined_call_operand.vmem [shape: f32[1,128], index: 4, kind: input, shape index: {}]
  %s5 = inlined_call_operand.hbm [shape: f32[2,2,128], index: 5, kind: output, shape index: {}]
  %s6 = sld [smem:[#allocation0]]
  $region53: #{extractor_forward.1} parent=0
    _
  %s8 = ssub.s32 1, %s6
  %s9 = scalar_select 0, %s8, %s6
  $region1: #{extractor_forward.1} parent=0
    #allocation4 [shape = 'u8[2048]{0}', space=vmem, size = 0x800, scoped, tag = 'output window, operand 0']
    #allocation5 [shape = 's32[2]{0}', space=sflag, size = 0x8, scoped, tag = 'scoped memory for extractor_forward.1']
    %10 = vsyncpa [#allocation5], 0
    %s11 = scalar_lea.sflag [#allocation5], 1
    %12 = vsyncpa %s11, 0
    loop: start=0, step=1, limit=4
    $region2: #{extractor_forward.1} parent=1 // loop_pre_header
      _
    $region3: #{extractor_forward.1} parent=1 // loop_header
      %s14 = sphi 0, %s18
      %p15 = scmp.ge.s32.totalorder %s14, 4
      %s24 = sphi 0, %s26
      %s27 = sphi 0, %s24
      %s28 = sphi 0, %s27
      %s44 = sphi 0, %s28
      %s48 = sphi 0, %s48
      %s50 = sphi 0, %s48
      %s51 = sphi 0, %s50
      %s65 = sphi 0, %s51
      %s69 = sphi 0, %s69
      %s71 = sphi 0, %s69
      %s72 = sphi 0, %s71
      %s86 = sphi 0, %s72
      %s90 = sphi 0, %s90
      %s92 = sphi 0, %s90
      %s93 = sphi 0, %s92
      %s107 = sphi 0, %s93
      %s111 = sphi 0, %s111
      %s113 = sphi 0, %s111
      %s114 = sphi 0, %s113
      %s128 = sphi 0, %s114
      %s134 = sphi 0, %s136
      %s137 = sphi 0, %s134
      %s138 = sphi 0, %s137
      %s154 = sphi 0, %s138
    $region4: #{extractor_forward.1} parent=1 // loop_header_branch
      %17 = sbr.rel (%p15) target = $region8
    $region5: #{extractor_forward.1} parent=1 // loop_body
      %s19 = ssub.s32 %s14, 1
      %s20 = ssub.s32 %s14, 2
      %s21 = sadd.s32 %s14, 1
      %s22 = ssub.s32 %s14, %s21
      %p23 = scmp.eq.s32.totalorder %s22, 0
      %s25 = sadd.s32 %s24, 1
      %s26 = scalar_select %p23, %s24, %s25
      %p29 = pneg %p23
      %p30 = scmp.eq.s32.totalorder %s14, 1
      %p31 = por %p29, %p30
      %p32 = scmp.ne.s32.totalorder %s24, %s27
      %p33 = scmp.eq.s32.totalorder %s14, 0
      %p34 = por %p32, %p33
      %p35 = scmp.ne.s32.totalorder %s24, %s27
      %p36 = scmp.eq.s32.totalorder %s19, 1
      %p37 = por %p35, %p36
      %p38 = scmp.ne.s32.totalorder %s27, %s28
      %p39 = scmp.eq.s32.totalorder %s19, 0
      %p40 = por %p38, %p39
      %p41 = scmp.ne.s32.totalorder %s27, %s28
      %p42 = scmp.eq.s32.totalorder %s20, 1
      %p43 = por %p41, %p42
      %p45 = scmp.ne.s32.totalorder %s28, %s44
      %p46 = scmp.eq.s32.totalorder %s20, 0
      %p47 = por %p45, %p46
      %s49 = sadd.s32 %s48, 1
      %p52 = scmp.eq.s32.totalorder %s14, 1
      %p53 = scmp.ne.s32.totalorder %s48, %s50
      %p54 = scmp.eq.s32.totalorder %s14, 0
      %p55 = por %p53, %p54
      %p56 = scmp.ne.s32.totalorder %s48, %s50
      %p57 = scmp.eq.s32.totalorder %s19, 1
      %p58 = por %p56, %p57
      %p59 = scmp.ne.s32.totalorder %s50, %s51
      %p60 = scmp.eq.s32.totalorder %s19, 0
      %p61 = por %p59, %p60
      %p62 = scmp.ne.s32.totalorder %s50, %s51
      %p63 = scmp.eq.s32.totalorder %s20, 1
      %p64 = por %p62, %p63
      %p66 = scmp.ne.s32.totalorder %s51, %s65
      %p67 = scmp.eq.s32.totalorder %s20, 0
      %p68 = por %p66, %p67
      %s70 = sadd.s32 %s69, 1
      %p73 = scmp.eq.s32.totalorder %s14, 1
      %p74 = scmp.ne.s32.totalorder %s69, %s71
      %p75 = scmp.eq.s32.totalorder %s14, 0
      %p76 = por %p74, %p75
      %p77 = scmp.ne.s32.totalorder %s69, %s71
      %p78 = scmp.eq.s32.totalorder %s19, 1
      %p79 = por %p77, %p78
      %p80 = scmp.ne.s32.totalorder %s71, %s72
      %p81 = scmp.eq.s32.totalorder %s19, 0
      %p82 = por %p80, %p81
      %p83 = scmp.ne.s32.totalorder %s71, %s72
      %p84 = scmp.eq.s32.totalorder %s20, 1
      %p85 = por %p83, %p84
      %p87 = scmp.ne.s32.totalorder %s72, %s86
      %p88 = scmp.eq.s32.totalorder %s20, 0
      %p89 = por %p87, %p88
      %s91 = sadd.s32 %s90, 1
      %p94 = scmp.eq.s32.totalorder %s14, 1
      %p95 = scmp.ne.s32.totalorder %s90, %s92
      %p96 = scmp.eq.s32.totalorder %s14, 0
      %p97 = por %p95, %p96
      %p98 = scmp.ne.s32.totalorder %s90, %s92
      %p99 = scmp.eq.s32.totalorder %s19, 1
      %p100 = por %p98, %p99
      %p101 = scmp.ne.s32.totalorder %s92, %s93
      %p102 = scmp.eq.s32.totalorder %s19, 0
      %p103 = por %p101, %p102
      %p104 = scmp.ne.s32.totalorder %s92, %s93
      %p105 = scmp.eq.s32.totalorder %s20, 1
      %p106 = por %p104, %p105
      %p108 = scmp.ne.s32.totalorder %s93, %s107
      %p109 = scmp.eq.s32.totalorder %s20, 0
      %p110 = por %p108, %p109
      %s112 = sadd.s32 %s111, 1
      %p115 = scmp.eq.s32.totalorder %s14, 1
      %p116 = scmp.ne.s32.totalorder %s111, %s113
      %p117 = scmp.eq.s32.totalorder %s14, 0
      %p118 = por %p116, %p117
      %p119 = scmp.ne.s32.totalorder %s111, %s113
      %p120 = scmp.eq.s32.totalorder %s19, 1
      %p121 = por %p119, %p120
      %p122 = scmp.ne.s32.totalorder %s113, %s114
      %p123 = scmp.eq.s32.totalorder %s19, 0
      %p124 = por %p122, %p123
      %p125 = scmp.ne.s32.totalorder %s113, %s114
      %p126 = scmp.eq.s32.totalorder %s20, 1
      %p127 = por %p125, %p126
      %p129 = scmp.ne.s32.totalorder %s114, %s128
      %p130 = scmp.eq.s32.totalorder %s20, 0
      %p131 = por %p129, %p130
      %s132 = ssub.s32 %s14, %s21
      %p133 = scmp.eq.s32.totalorder %s132, 0
      %s135 = sadd.s32 %s134, 1
      %s136 = scalar_select %p133, %s134, %s135
      %p139 = pneg %p133
      %p140 = scmp.eq.s32.totalorder %s14, 1
      %p141 = por %p139, %p140
      %p142 = scmp.ne.s32.totalorder %s134, %s137
      %p143 = scmp.eq.s32.totalorder %s14, 0
      %p144 = por %p142, %p143
      %p145 = scmp.ne.s32.totalorder %s134, %s137
      %p146 = scmp.eq.s32.totalorder %s19, 1
      %p147 = por %p145, %p146
      %p148 = scmp.ne.s32.totalorder %s137, %s138
      %p149 = scmp.eq.s32.totalorder %s19, 0
      %p150 = por %p148, %p149
      %p151 = scmp.ne.s32.totalorder %s137, %s138
      %p152 = scmp.eq.s32.totalorder %s20, 1
      %p153 = por %p151, %p152
      %p155 = scmp.ne.s32.totalorder %s138, %s154
      %p156 = scmp.eq.s32.totalorder %s20, 0
      %p157 = por %p155, %p156
      %p158 = scmp.le.s32.totalorder 1, %s14
      %p159 = scmp.lt.s32.totalorder %s14, 3
      %p160 = pnand %p158, %p159
      %p161 = pneg %p160
      // Predicated region
      $region9: #{extractor_forward.1} parent=5 // pred_check
        _
      $region10: #{extractor_forward.1} parent=5 // pred_check_branch
        %163 = sbr.rel (%p160) target = $region12
      $region11: #{extractor_forward.1} parent=5 // pred_region
        %s164 = ssub.s32 %s14, 1
        // Predicated region
        $region13: #{extractor_forward.1} parent=11 // pred_check
          %p165 = pneg %p61
        $region14: #{extractor_forward.1} parent=11 // pred_check_branch
          %167 = sbr.rel (%p165) target = $region16
        $region15: #{extractor_forward.1} parent=11 // pred_region
          _
        $region16: #{extractor_forward.1} parent=11 // pred_fallthru
          _
        // Predicated region
        $region17: #{extractor_forward.1} parent=11 // pred_check
          %p168 = pneg %p82
        $region18: #{extractor_forward.1} parent=11 // pred_check_branch
          %170 = sbr.rel (%p168) target = $region20
        $region19: #{extractor_forward.1} parent=11 // pred_region
          _
        $region20: #{extractor_forward.1} parent=11 // pred_fallthru
          _
        // Predicated region
        $region21: #{extractor_forward.1} parent=11 // pred_check
          %p171 = pneg %p103
        $region22: #{extractor_forward.1} parent=11 // pred_check_branch
          %173 = sbr.rel (%p171) target = $region24
        $region23: #{extractor_forward.1} parent=11 // pred_region
          _
        $region24: #{extractor_forward.1} parent=11 // pred_fallthru
          _
        // Predicated region
        $region25: #{extractor_forward.1} parent=11 // pred_check
          %p174 = pneg %p124
        $region26: #{extractor_forward.1} parent=11 // pred_check_branch
          %176 = sbr.rel (%p174) target = $region28
        $region27: #{extractor_forward.1} parent=11 // pred_region
          _
        $region28: #{extractor_forward.1} parent=11 // pred_fallthru
          _
      $region12: #{extractor_forward.1} parent=5 // pred_fallthru
        _
      %p177 = scmp.lt.s32.totalorder %s14, 2
      // Predicated region
      $region29: #{extractor_forward.1} parent=5 // pred_check
        %p178 = pneg %p177
      $region30: #{extractor_forward.1} parent=5 // pred_check_branch
        %180 = sbr.rel (%p178) target = $region32
      $region31: #{extractor_forward.1} parent=5 // pred_region
        // Predicated region
        $region33: #{extractor_forward.1} parent=31 // pred_check
          %p181 = pneg %p34
        $region34: #{extractor_forward.1} parent=31 // pred_check_branch
          %183 = sbr.rel (%p181) target = $region36
        $region35: #{extractor_forward.1} parent=31 // pred_region
          %s184 = smul.u32 2, %s14
          %p185 = scmp.lt.s32.totalorder %s184, 3
          %s186 = scalar_select %p185, %s184, 3
          %s187 = smul.addr %s186, 32
          %s188 = smul.addr %s187, 8
          %s189 = scalar_lea.vmem %s0, %s188
          %s190 = smul.u32 2, %s14
        $region36: #{extractor_forward.1} parent=31 // pred_fallthru
          _
      $region32: #{extractor_forward.1} parent=5 // pred_fallthru
        _
      %p191 = scmp.le.s32.totalorder 1, %s14
      %p192 = scmp.lt.s32.totalorder %s14, 3
      %p193 = pnand %p191, %p192
      %p194 = pneg %p193
      // Predicated region
      $region37: #{extractor_forward.1} parent=5 // pred_check
        _
      $region38: #{extractor_forward.1} parent=5 // pred_check_branch
        %196 = sbr.rel (%p193) target = $region40
      $region39: #{extractor_forward.1} parent=5 // pred_region
        %s197 = ssub.s32 %s14, 1
        %s198 = smul.u32 2, %s19
        %p199 = scmp.lt.s32.totalorder %s198, 3
        %s200 = scalar_select %p199, %s198, 3
        %s201 = smul.addr %s200, 32
        %s202 = smul.addr %s201, 8
        %s203 = scalar_lea.vmem %s0, %s202
        %p204 = pneg %p40
        %p205 = pneg %p37
        %p206 = pneg %p61
        %p207 = pneg %p58
        %p208 = pneg %p82
        %p209 = pneg %p79
        %p210 = pneg %p103
        %p211 = pneg %p100
        %p212 = pneg %p124
        %p213 = pneg %p121
        %p214 = pneg %p150
        %p215 = pneg %p147
        %s216 = sand.u32 %s137, 1
        %s217 = scalar_lea.sflag [#allocation5], %s216
        %s218 = sand.u32 %s137, 1
        %s219 = smul.addr %s218, 2
        %s220 = scalar_lea.vmem [#allocation4], %s219
        %s221 = smul.u32 2, %s19
        %p222 = scmp.lt.s32.totalorder %s221, 3
        %s223 = scalar_select %p222, %s221, 3
        %s224 = smul.addr %s223, 32
        %s225 = smul.addr %s224, 8
        %s226 = scalar_lea.vmem %s0, %s225
        %s227 = smul.u32 2, %s19
        %vm229 = vcmask 23552
        %230 = vst.msk [vmem:[#allocation2] sm:$0xff] %vm229, 0.0
        %231 = vst.msk [vmem:[#allocation2 + $0x8] sm:$0xff] %vm229, 0.0
        %vm232 = vcmask 17408
        %233 = vst.msk [vmem:[#allocation2 + $0x10] sm:$0x3] %vm232, 0.0
        %234 = vst.msk [vmem:[#allocation2 + $0x18] sm:$0xff] %vm229, 0.0
        %235 = vst.msk [vmem:[#allocation2 + $0x20] sm:$0xff] %vm229, 0.0
        %236 = vst.msk [vmem:[#allocation2 + $0x28] sm:$0x3] %vm232, 0.0
        %237 = vst.msk [vmem:[#allocation2 + $0x30] sm:$0xff] %vm229, 0.0
        %238 = vst.msk [vmem:[#allocation2 + $0x38] sm:$0xff] %vm229, 0.0
        %239 = vst.msk [vmem:[#allocation2 + $0x40] sm:$0x3] %vm232, 0.0
        %240 = vst.msk [vmem:[#allocation2 + $0x48] sm:$0xff] %vm229, 0.0
        %241 = vst.msk [vmem:[#allocation2 + $0x50] sm:$0xff] %vm229, 0.0
        %242 = vst.msk [vmem:[#allocation2 + $0x58] sm:$0x3] %vm232, 0.0
        %243 = vst.msk [vmem:[#allocation2 + $0x60] sm:$0xff] %vm229, 0.0
        %244 = vst.msk [vmem:[#allocation2 + $0x68] sm:$0xff] %vm229, 0.0
        %245 = vst.msk [vmem:[#allocation2 + $0x70] sm:$0x3] %vm232, 0.0
        %246 = vst.msk [vmem:[#allocation2 + $0x78] sm:$0xff] %vm229, 0.0
        %247 = vst.msk [vmem:[#allocation2 + $0x80] sm:$0xff] %vm229, 0.0
        %248 = vst.msk [vmem:[#allocation2 + $0x88] sm:$0x3] %vm232, 0.0
        %249 = vst.msk [vmem:[#allocation2 + $0x90] sm:$0xff] %vm229, 0.0
        %250 = vst.msk [vmem:[#allocation2 + $0x98] sm:$0xff] %vm229, 0.0
        %251 = vst.msk [vmem:[#allocation2 + $0xa0] sm:$0x3] %vm232, 0.0
        %252 = vst.msk [vmem:[#allocation2 + $0xa8] sm:$0xff] %vm229, 0.0
        %253 = vst.msk [vmem:[#allocation2 + $0xb0] sm:$0xff] %vm229, 0.0
        %254 = vst.msk [vmem:[#allocation2 + $0xb8] sm:$0x3] %vm232, 0.0
        %255 = vst.msk [vmem:[#allocation2 + $0xc0] sm:$0xff] %vm229, 0.0
        %256 = vst.msk [vmem:[#allocation2 + $0xc8] sm:$0xff] %vm229, 0.0
        %257 = vst.msk [vmem:[#allocation2 + $0xd0] sm:$0x3] %vm232, 0.0
        %258 = vst.msk [vmem:[#allocation2 + $0xd8] sm:$0xff] %vm229, 0.0
        %259 = vst.msk [vmem:[#allocation2 + $0xe0] sm:$0xff] %vm229, 0.0
        %260 = vst.msk [vmem:[#allocation2 + $0xe8] sm:$0x3] %vm232, 0.0
        %261 = vst.msk [vmem:[#allocation2 + $0xf0] sm:$0xff] %vm229, 0.0
        %262 = vst.msk [vmem:[#allocation2 + $0xf8] sm:$0xff] %vm229, 0.0
        %263 = vst.msk [vmem:[#allocation2 + $0x100] sm:$0x3] %vm232, 0.0
        %264 = vst.msk [vmem:[#allocation2 + $0x108] sm:$0xff] %vm229, 0.0
        %265 = vst.msk [vmem:[#allocation2 + $0x110] sm:$0xff] %vm229, 0.0
        %266 = vst.msk [vmem:[#allocation2 + $0x118] sm:$0x3] %vm232, 0.0
        %267 = vst.msk [vmem:[#allocation2 + $0x120] sm:$0xff] %vm229, 0.0
        %268 = vst.msk [vmem:[#allocation2 + $0x128] sm:$0xff] %vm229, 0.0
        %269 = vst.msk [vmem:[#allocation2 + $0x130] sm:$0x3] %vm232, 0.0
        %270 = vst.msk [vmem:[#allocation2 + $0x138] sm:$0xff] %vm229, 0.0
        %271 = vst.msk [vmem:[#allocation2 + $0x140] sm:$0xff] %vm229, 0.0
        %272 = vst.msk [vmem:[#allocation2 + $0x148] sm:$0x3] %vm232, 0.0
        %273 = vst.msk [vmem:[#allocation2 + $0x150] sm:$0xff] %vm229, 0.0
        %274 = vst.msk [vmem:[#allocation2 + $0x158] sm:$0xff] %vm229, 0.0
        %275 = vst.msk [vmem:[#allocation2 + $0x160] sm:$0x3] %vm232, 0.0
        %276 = vst.msk [vmem:[#allocation2 + $0x168] sm:$0xff] %vm229, 0.0
        %277 = vst.msk [vmem:[#allocation2 + $0x170] sm:$0xff] %vm229, 0.0
        %278 = vst.msk [vmem:[#allocation2 + $0x178] sm:$0x3] %vm232, 0.0
        %279 = vst.msk [vmem:[#allocation2 + $0x180] sm:$0xff] %vm229, 0.0
        %280 = vst.msk [vmem:[#allocation2 + $0x188] sm:$0xff] %vm229, 0.0
        %281 = vst.msk [vmem:[#allocation2 + $0x190] sm:$0x3] %vm232, 0.0
        %282 = vst.msk [vmem:[#allocation2 + $0x198] sm:$0xff] %vm229, 0.0
        %283 = vst.msk [vmem:[#allocation2 + $0x1a0] sm:$0xff] %vm229, 0.0
        %284 = vst.msk [vmem:[#allocation2 + $0x1a8] sm:$0x3] %vm232, 0.0
        %285 = vst.msk [vmem:[#allocation2 + $0x1b0] sm:$0xff] %vm229, 0.0
        %286 = vst.msk [vmem:[#allocation2 + $0x1b8] sm:$0xff] %vm229, 0.0
        %287 = vst.msk [vmem:[#allocation2 + $0x1c0] sm:$0x3] %vm232, 0.0
        %288 = vst.msk [vmem:[#allocation2 + $0x1c8] sm:$0xff] %vm229, 0.0
        %289 = vst.msk [vmem:[#allocation2 + $0x1d0] sm:$0xff] %vm229, 0.0
        %290 = vst.msk [vmem:[#allocation2 + $0x1d8] sm:$0x3] %vm232, 0.0
        %291 = vst.msk [vmem:[#allocation2 + $0x1e0] sm:$0xff] %vm229, 0.0
        %292 = vst.msk [vmem:[#allocation2 + $0x1e8] sm:$0xff] %vm229, 0.0
        %293 = vst.msk [vmem:[#allocation2 + $0x1f0] sm:$0x3] %vm232, 0.0
        %294 = vst.msk [vmem:[#allocation2 + $0x1f8] sm:$0xff] %vm229, 0.0
        %295 = vst.msk [vmem:[#allocation2 + $0x200] sm:$0xff] %vm229, 0.0
        %296 = vst.msk [vmem:[#allocation2 + $0x208] sm:$0x3] %vm232, 0.0
        %297 = vst.msk [vmem:[#allocation2 + $0x210] sm:$0xff] %vm229, 0.0
        %298 = vst.msk [vmem:[#allocation2 + $0x218] sm:$0xff] %vm229, 0.0
        %299 = vst.msk [vmem:[#allocation2 + $0x220] sm:$0x3] %vm232, 0.0
        %300 = vst.msk [vmem:[#allocation2 + $0x228] sm:$0xff] %vm229, 0.0
        %301 = vst.msk [vmem:[#allocation2 + $0x230] sm:$0xff] %vm229, 0.0
        %302 = vst.msk [vmem:[#allocation2 + $0x238] sm:$0x3] %vm232, 0.0
        %303 = vst.msk [vmem:[#allocation2 + $0x240] sm:$0xff] %vm229, 0.0
        %304 = vst.msk [vmem:[#allocation2 + $0x248] sm:$0xff] %vm229, 0.0
        %305 = vst.msk [vmem:[#allocation2 + $0x250] sm:$0x3] %vm232, 0.0
        %306 = vst.msk [vmem:[#allocation2 + $0x258] sm:$0xff] %vm229, 0.0
        %307 = vst.msk [vmem:[#allocation2 + $0x260] sm:$0xff] %vm229, 0.0
        %308 = vst.msk [vmem:[#allocation2 + $0x268] sm:$0x3] %vm232, 0.0
        %309 = vst.msk [vmem:[#allocation2 + $0x270] sm:$0xff] %vm229, 0.0
        %310 = vst.msk [vmem:[#allocation2 + $0x278] sm:$0xff] %vm229, 0.0
        %311 = vst.msk [vmem:[#allocation2 + $0x280] sm:$0x3] %vm232, 0.0
        %312 = vst.msk [vmem:[#allocation2 + $0x288] sm:$0xff] %vm229, 0.0
        %313 = vst.msk [vmem:[#allocation2 + $0x290] sm:$0xff] %vm229, 0.0
        %314 = vst.msk [vmem:[#allocation2 + $0x298] sm:$0x3] %vm232, 0.0
        %315 = vst.msk [vmem:[#allocation2 + $0x2a0] sm:$0xff] %vm229, 0.0
        %316 = vst.msk [vmem:[#allocation2 + $0x2a8] sm:$0xff] %vm229, 0.0
        %317 = vst.msk [vmem:[#allocation2 + $0x2b0] sm:$0x3] %vm232, 0.0
        %318 = vst.msk [vmem:[#allocation2 + $0x2b8] sm:$0xff] %vm229, 0.0
        %319 = vst.msk [vmem:[#allocation2 + $0x2c0] sm:$0xff] %vm229, 0.0
        %320 = vst.msk [vmem:[#allocation2 + $0x2c8] sm:$0x3] %vm232, 0.0
        %321 = vst.msk [vmem:[#allocation2 + $0x2d0] sm:$0xff] %vm229, 0.0
        %322 = vst.msk [vmem:[#allocation2 + $0x2d8] sm:$0xff] %vm229, 0.0
        %323 = vst.msk [vmem:[#allocation2 + $0x2e0] sm:$0x3] %vm232, 0.0
        %324 = vst.msk [vmem:[#allocation2 + $0x2e8] sm:$0xff] %vm229, 0.0
        %325 = vst.msk [vmem:[#allocation2 + $0x2f0] sm:$0xff] %vm229, 0.0
        %326 = vst.msk [vmem:[#allocation2 + $0x2f8] sm:$0x3] %vm232, 0.0
        %327 = vst.msk [vmem:[#allocation2 + $0x300] sm:$0xff] %vm229, 0.0
        %328 = vst.msk [vmem:[#allocation2 + $0x308] sm:$0xff] %vm229, 0.0
        %329 = vst.msk [vmem:[#allocation2 + $0x310] sm:$0x3] %vm232, 0.0
        %330 = vst.msk [vmem:[#allocation2 + $0x318] sm:$0xff] %vm229, 0.0
        %331 = vst.msk [vmem:[#allocation2 + $0x320] sm:$0xff] %vm229, 0.0
        %332 = vst.msk [vmem:[#allocation2 + $0x328] sm:$0x3] %vm232, 0.0
        %333 = vst.msk [vmem:[#allocation2 + $0x330] sm:$0xff] %vm229, 0.0
        %334 = vst.msk [vmem:[#allocation2 + $0x338] sm:$0xff] %vm229, 0.0
        %335 = vst.msk [vmem:[#allocation2 + $0x340] sm:$0x3] %vm232, 0.0
        %336 = vst.msk [vmem:[#allocation2 + $0x348] sm:$0xff] %vm229, 0.0
        %337 = vst.msk [vmem:[#allocation2 + $0x350] sm:$0xff] %vm229, 0.0
        %338 = vst.msk [vmem:[#allocation2 + $0x358] sm:$0x3] %vm232, 0.0
        %339 = vst [vmem:[#allocation3] sm:$0xff] 0
        %340 = vst [vmem:[#allocation3 + $0x8] sm:$0xff] 0
        %341 = vst [vmem:[#allocation3 + $0x10] sm:$0xff] 0
        %342 = vst [vmem:[#allocation3 + $0x18] sm:$0xff] 0
        %343 = vst [vmem:[#allocation3 + $0x20] sm:$0xff] 0
        %344 = vst [vmem:[#allocation3 + $0x28] sm:$0xff] 0
        %345 = vst [vmem:[#allocation3 + $0x30] sm:$0xff] 0
        %346 = vst [vmem:[#allocation3 + $0x38] sm:$0xff] 0
        %347 = vst [vmem:[#allocation3 + $0x40] sm:$0xff] 0
        %348 = vst [vmem:[#allocation3 + $0x48] sm:$0xff] 0
        %349 = vst [vmem:[#allocation3 + $0x50] sm:$0xff] 0
        %350 = vst [vmem:[#allocation3 + $0x58] sm:$0xff] 0
        %351 = vst [vmem:[#allocation3 + $0x60] sm:$0xff] 0
        %352 = vst [vmem:[#allocation3 + $0x68] sm:$0xff] 0
        %353 = vst [vmem:[#allocation3 + $0x70] sm:$0xff] 0
        %354 = vst [vmem:[#allocation3 + $0x78] sm:$0xff] 0
        %355 = vst [vmem:[#allocation3 + $0x80] sm:$0xff] 0
        %356 = vst [vmem:[#allocation3 + $0x88] sm:$0xff] 0
        %357 = vst [vmem:[#allocation3 + $0x90] sm:$0xff] 0
        %358 = vst [vmem:[#allocation3 + $0x98] sm:$0xff] 0
        %359 = vst [vmem:[#allocation3 + $0xa0] sm:$0xff] 0
        %360 = vst [vmem:[#allocation3 + $0xa8] sm:$0xff] 0
        %361 = vst [vmem:[#allocation3 + $0xb0] sm:$0xff] 0
        %362 = vst [vmem:[#allocation3 + $0xb8] sm:$0xff] 0
        %363 = vst [vmem:[#allocation3 + $0xc0] sm:$0xff] 0
        %364 = vst [vmem:[#allocation3 + $0xc8] sm:$0xff] 0
        %365 = vst [vmem:[#allocation3 + $0xd0] sm:$0xff] 0
        %366 = vst [vmem:[#allocation3 + $0xd8] sm:$0xff] 0
        %367 = vst [vmem:[#allocation3 + $0xe0] sm:$0xff] 0
        %368 = vst [vmem:[#allocation3 + $0xe8] sm:$0xff] 0
        %369 = vst [vmem:[#allocation3 + $0xf0] sm:$0xff] 0
        %370 = vst [vmem:[#allocation3 + $0xf8] sm:$0xff] 0
        %v371 = vld [vmem:[%s226] sm:$0xff]
        %v372 = vld [vmem:[%s226 + $0x8] sm:$0xff]
        %v373 = vld [vmem:[%s226 + $0x10] sm:$0xff]
        %v374 = vld [vmem:[%s226 + $0x18] sm:$0xff]
        %v375 = vld [vmem:[%s226 + $0x20] sm:$0xff]
        %v376 = vld [vmem:[%s226 + $0x28] sm:$0xff]
        %v377 = vld [vmem:[%s226 + $0x30] sm:$0xff]
        %v378 = vld [vmem:[%s226 + $0x38] sm:$0xff]
        %v379 = vld [vmem:[%s226 + $0x40] sm:$0xff]
        %v380 = vld [vmem:[%s226 + $0x48] sm:$0xff]
        %v381 = vld [vmem:[%s226 + $0x50] sm:$0xff]
        %v382 = vld [vmem:[%s226 + $0x58] sm:$0xff]
        %v383 = vld [vmem:[%s226 + $0x60] sm:$0xff]
        %v384 = vld [vmem:[%s226 + $0x68] sm:$0xff]
        %v385 = vld [vmem:[%s226 + $0x70] sm:$0xff]
        %v386 = vld [vmem:[%s226 + $0x78] sm:$0xff]
        %v387 = vld [vmem:[%s226 + $0x80] sm:$0xff]
        %v388 = vld [vmem:[%s226 + $0x88] sm:$0xff]
        %v389 = vld [vmem:[%s226 + $0x90] sm:$0xff]
        %v390 = vld [vmem:[%s226 + $0x98] sm:$0xff]
        %v391 = vld [vmem:[%s226 + $0xa0] sm:$0xff]
        %v392 = vld [vmem:[%s226 + $0xa8] sm:$0xff]
        %v393 = vld [vmem:[%s226 + $0xb0] sm:$0xff]
        %v394 = vld [vmem:[%s226 + $0xb8] sm:$0xff]
        %v395 = vld [vmem:[%s226 + $0xc0] sm:$0xff]
        %v396 = vld [vmem:[%s226 + $0xc8] sm:$0xff]
        %v397 = vld [vmem:[%s226 + $0xd0] sm:$0xff]
        %v398 = vld [vmem:[%s226 + $0xd8] sm:$0xff]
        %v399 = vld [vmem:[%s226 + $0xe0] sm:$0xff]
        %v400 = vld [vmem:[%s226 + $0xe8] sm:$0xff]
        %v401 = vld [vmem:[%s226 + $0xf0] sm:$0xff]
        %v402 = vld [vmem:[%s226 + $0xf8] sm:$0xff]
        %v403 = vld [vmem:[%s226 + $0x100] sm:$0xff]
        %v404 = vld [vmem:[%s226 + $0x108] sm:$0xff]
        %v405 = vld [vmem:[%s226 + $0x110] sm:$0xff]
        %v406 = vld [vmem:[%s226 + $0x118] sm:$0xff]
        %v407 = vld [vmem:[%s226 + $0x120] sm:$0xff]
        %v408 = vld [vmem:[%s226 + $0x128] sm:$0xff]
        %v409 = vld [vmem:[%s226 + $0x130] sm:$0xff]
        %v410 = vld [vmem:[%s226 + $0x138] sm:$0xff]
        %v411 = vld [vmem:[%s226 + $0x140] sm:$0xff]
        %v412 = vld [vmem:[%s226 + $0x148] sm:$0xff]
        %v413 = vld [vmem:[%s226 + $0x150] sm:$0xff]
        %v414 = vld [vmem:[%s226 + $0x158] sm:$0xff]
        %v415 = vld [vmem:[%s226 + $0x160] sm:$0xff]
        %v416 = vld [vmem:[%s226 + $0x168] sm:$0xff]
        %v417 = vld [vmem:[%s226 + $0x170] sm:$0xff]
        %v418 = vld [vmem:[%s226 + $0x178] sm:$0xff]
        %v419 = vld [vmem:[%s226 + $0x180] sm:$0xff]
        %v420 = vld [vmem:[%s226 + $0x188] sm:$0xff]
        %v421 = vld [vmem:[%s226 + $0x190] sm:$0xff]
        %v422 = vld [vmem:[%s226 + $0x198] sm:$0xff]
        %v423 = vld [vmem:[%s226 + $0x1a0] sm:$0xff]
        %v424 = vld [vmem:[%s226 + $0x1a8] sm:$0xff]
        %v425 = vld [vmem:[%s226 + $0x1b0] sm:$0xff]
        %v426 = vld [vmem:[%s226 + $0x1b8] sm:$0xff]
        %v427 = vld [vmem:[%s226 + $0x1c0] sm:$0xff]
        %v428 = vld [vmem:[%s226 + $0x1c8] sm:$0xff]
        %v429 = vld [vmem:[%s226 + $0x1d0] sm:$0xff]
        %v430 = vld [vmem:[%s226 + $0x1d8] sm:$0xff]
        %v431 = vld [vmem:[%s226 + $0x1e0] sm:$0xff]
        %v432 = vld [vmem:[%s226 + $0x1e8] sm:$0xff]
        %v433 = vld [vmem:[%s226 + $0x1f0] sm:$0xff]
        %v434 = vld [vmem:[%s226 + $0x1f8] sm:$0xff]
        %s435 = scalar_lea.vmem [#allocation2], 24
        %436 = vst.msk [vmem:[%s435 + $0x1] sm:$0xff] %vm229, %v371
        %437 = vst.msk [vmem:[%s435 + $0x9] sm:$0xff] %vm229, %v372
        %438 = vst.msk [vmem:[%s435 + $0x19] sm:$0xff] %vm229, %v373
        %439 = vst.msk [vmem:[%s435 + $0x21] sm:$0xff] %vm229, %v374
        %440 = vst.msk [vmem:[%s435 + $0x31] sm:$0xff] %vm229, %v375
        %441 = vst.msk [vmem:[%s435 + $0x39] sm:$0xff] %vm229, %v376
        %442 = vst.msk [vmem:[%s435 + $0x49] sm:$0xff] %vm229, %v377
        %443 = vst.msk [vmem:[%s435 + $0x51] sm:$0xff] %vm229, %v378
        %444 = vst.msk [vmem:[%s435 + $0x61] sm:$0xff] %vm229, %v379
        %445 = vst.msk [vmem:[%s435 + $0x69] sm:$0xff] %vm229, %v380
        %446 = vst.msk [vmem:[%s435 + $0x79] sm:$0xff] %vm229, %v381
        %447 = vst.msk [vmem:[%s435 + $0x81] sm:$0xff] %vm229, %v382
        %448 = vst.msk [vmem:[%s435 + $0x91] sm:$0xff] %vm229, %v383
        %449 = vst.msk [vmem:[%s435 + $0x99] sm:$0xff] %vm229, %v384
        %450 = vst.msk [vmem:[%s435 + $0xa9] sm:$0xff] %vm229, %v385
        %451 = vst.msk [vmem:[%s435 + $0xb1] sm:$0xff] %vm229, %v386
        %452 = vst.msk [vmem:[%s435 + $0xc1] sm:$0xff] %vm229, %v387
        %453 = vst.msk [vmem:[%s435 + $0xc9] sm:$0xff] %vm229, %v388
        %454 = vst.msk [vmem:[%s435 + $0xd9] sm:$0xff] %vm229, %v389
        %455 = vst.msk [vmem:[%s435 + $0xe1] sm:$0xff] %vm229, %v390
        %456 = vst.msk [vmem:[%s435 + $0xf1] sm:$0xff] %vm229, %v391
        %457 = vst.msk [vmem:[%s435 + $0xf9] sm:$0xff] %vm229, %v392
        %458 = vst.msk [vmem:[%s435 + $0x109] sm:$0xff] %vm229, %v393
        %459 = vst.msk [vmem:[%s435 + $0x111] sm:$0xff] %vm229, %v394
        %460 = vst.msk [vmem:[%s435 + $0x121] sm:$0xff] %vm229, %v395
        %461 = vst.msk [vmem:[%s435 + $0x129] sm:$0xff] %vm229, %v396
        %462 = vst.msk [vmem:[%s435 + $0x139] sm:$0xff] %vm229, %v397
        %463 = vst.msk [vmem:[%s435 + $0x141] sm:$0xff] %vm229, %v398
        %464 = vst.msk [vmem:[%s435 + $0x151] sm:$0xff] %vm229, %v399
        %465 = vst.msk [vmem:[%s435 + $0x159] sm:$0xff] %vm229, %v400
        %466 = vst.msk [vmem:[%s435 + $0x169] sm:$0xff] %vm229, %v401
        %467 = vst.msk [vmem:[%s435 + $0x171] sm:$0xff] %vm229, %v402
        %468 = vst.msk [vmem:[%s435 + $0x1b1] sm:$0xff] %vm229, %v403
        %469 = vst.msk [vmem:[%s435 + $0x1b9] sm:$0xff] %vm229, %v404
        %470 = vst.msk [vmem:[%s435 + $0x1c9] sm:$0xff] %vm229, %v405
        %471 = vst.msk [vmem:[%s435 + $0x1d1] sm:$0xff] %vm229, %v406
        %472 = vst.msk [vmem:[%s435 + $0x1e1] sm:$0xff] %vm229, %v407
        %473 = vst.msk [vmem:[%s435 + $0x1e9] sm:$0xff] %vm229, %v408
        %474 = vst.msk [vmem:[%s435 + $0x1f9] sm:$0xff] %vm229, %v409
        %475 = vst.msk [vmem:[%s435 + $0x201] sm:$0xff] %vm229, %v410
        %476 = vst.msk [vmem:[%s435 + $0x211] sm:$0xff] %vm229, %v411
        %477 = vst.msk [vmem:[%s435 + $0x219] sm:$0xff] %vm229, %v412
        %478 = vst.msk [vmem:[%s435 + $0x229] sm:$0xff] %vm229, %v413
        %479 = vst.msk [vmem:[%s435 + $0x231] sm:$0xff] %vm229, %v414
        %480 = vst.msk [vmem:[%s435 + $0x241] sm:$0xff] %vm229, %v415
        %481 = vst.msk [vmem:[%s435 + $0x249] sm:$0xff] %vm229, %v416
        %482 = vst.msk [vmem:[%s435 + $0x259] sm:$0xff] %vm229, %v417
        %483 = vst.msk [vmem:[%s435 + $0x261] sm:$0xff] %vm229, %v418
        %484 = vst.msk [vmem:[%s435 + $0x271] sm:$0xff] %vm229, %v419
        %485 = vst.msk [vmem:[%s435 + $0x279] sm:$0xff] %vm229, %v420
        %486 = vst.msk [vmem:[%s435 + $0x289] sm:$0xff] %vm229, %v421
        %487 = vst.msk [vmem:[%s435 + $0x291] sm:$0xff] %vm229, %v422
        %488 = vst.msk [vmem:[%s435 + $0x2a1] sm:$0xff] %vm229, %v423
        %489 = vst.msk [vmem:[%s435 + $0x2a9] sm:$0xff] %vm229, %v424
        %490 = vst.msk [vmem:[%s435 + $0x2b9] sm:$0xff] %vm229, %v425
        %491 = vst.msk [vmem:[%s435 + $0x2c1] sm:$0xff] %vm229, %v426
        %492 = vst.msk [vmem:[%s435 + $0x2d1] sm:$0xff] %vm229, %v427
        %493 = vst.msk [vmem:[%s435 + $0x2d9] sm:$0xff] %vm229, %v428
        %494 = vst.msk [vmem:[%s435 + $0x2e9] sm:$0xff] %vm229, %v429
        %495 = vst.msk [vmem:[%s435 + $0x2f1] sm:$0xff] %vm229, %v430
        %496 = vst.msk [vmem:[%s435 + $0x301] sm:$0xff] %vm229, %v431
        %497 = vst.msk [vmem:[%s435 + $0x309] sm:$0xff] %vm229, %v432
        %498 = vst.msk [vmem:[%s435 + $0x319] sm:$0xff] %vm229, %v433
        %499 = vst.msk [vmem:[%s435 + $0x321] sm:$0xff] %vm229, %v434
        %v500 = vld [vmem:[#allocation2] sm:$0xff]
        %v501 = vld [vmem:[#allocation2 + $0x8] sm:$0xff]
        %v502 = vld [vmem:[#allocation2 + $0x18] sm:$0xff]
        %v503 = vld [vmem:[#allocation2 + $0x20] sm:$0xff]
        %v504 = vld [vmem:[#allocation2 + $0x30] sm:$0xff]
        %v505 = vld [vmem:[#allocation2 + $0x38] sm:$0xff]
        %v506 = vld [vmem:[#allocation2 + $0x48] sm:$0xff]
        %v507 = vld [vmem:[#allocation2 + $0x50] sm:$0xff]
        %v508 = vld [vmem:[#allocation2 + $0x60] sm:$0xff]
        %v509 = vld [vmem:[#allocation2 + $0x68] sm:$0xff]
        %v510 = vld [vmem:[#allocation2 + $0x78] sm:$0xff]
        %v511 = vld [vmem:[#allocation2 + $0x80] sm:$0xff]
        %v512 = vld [vmem:[#allocation2 + $0x90] sm:$0xff]
        %v513 = vld [vmem:[#allocation2 + $0x98] sm:$0xff]
        %v514 = vld [vmem:[#allocation2 + $0xa8] sm:$0xff]
        %v515 = vld [vmem:[#allocation2 + $0xb0] sm:$0xff]
        %v516 = vld [vmem:[#allocation2 + $0xc0] sm:$0xff]
        %v517 = vld [vmem:[#allocation2 + $0xc8] sm:$0xff]
        %v518 = vld [vmem:[#allocation2 + $0xd8] sm:$0xff]
        %v519 = vld [vmem:[#allocation2 + $0xe0] sm:$0xff]
        %v520 = vld [vmem:[#allocation2 + $0xf0] sm:$0xff]
        %v521 = vld [vmem:[#allocation2 + $0xf8] sm:$0xff]
        %v522 = vld [vmem:[#allocation2 + $0x108] sm:$0xff]
        %v523 = vld [vmem:[#allocation2 + $0x110] sm:$0xff]
        %v524 = vld [vmem:[#allocation2 + $0x120] sm:$0xff]
        %v525 = vld [vmem:[#allocation2 + $0x128] sm:$0xff]
        %v526 = vld [vmem:[#allocation2 + $0x138] sm:$0xff]
        %v527 = vld [vmem:[#allocation2 + $0x140] sm:$0xff]
        %v528 = vld [vmem:[#allocation2 + $0x150] sm:$0xff]
        %v529 = vld [vmem:[#allocation2 + $0x158] sm:$0xff]
        %v530 = vld [vmem:[#allocation2 + $0x168] sm:$0xff]
        %v531 = vld [vmem:[#allocation2 + $0x170] sm:$0xff]
        %v532 = vld [vmem:[#allocation2 + $0x1b0] sm:$0xff]
        %v533 = vld [vmem:[#allocation2 + $0x1b8] sm:$0xff]
        %v534 = vld [vmem:[#allocation2 + $0x1c8] sm:$0xff]
        %v535 = vld [vmem:[#allocation2 + $0x1d0] sm:$0xff]
        %v536 = vld [vmem:[#allocation2 + $0x1e0] sm:$0xff]
        %v537 = vld [vmem:[#allocation2 + $0x1e8] sm:$0xff]
        %v538 = vld [vmem:[#allocation2 + $0x1f8] sm:$0xff]
        %v539 = vld [vmem:[#allocation2 + $0x200] sm:$0xff]
        %v540 = vld [vmem:[#allocation2 + $0x210] sm:$0xff]
        %v541 = vld [vmem:[#allocation2 + $0x218] sm:$0xff]
        %v542 = vld [vmem:[#allocation2 + $0x228] sm:$0xff]
        %v543 = vld [vmem:[#allocation2 + $0x230] sm:$0xff]
        %v544 = vld [vmem:[#allocation2 + $0x240] sm:$0xff]
        %v545 = vld [vmem:[#allocation2 + $0x248] sm:$0xff]
        %v546 = vld [vmem:[#allocation2 + $0x258] sm:$0xff]
        %v547 = vld [vmem:[#allocation2 + $0x260] sm:$0xff]
        %v548 = vld [vmem:[#allocation2 + $0x270] sm:$0xff]
        %v549 = vld [vmem:[#allocation2 + $0x278] sm:$0xff]
        %v550 = vld [vmem:[#allocation2 + $0x288] sm:$0xff]
        %v551 = vld [vmem:[#allocation2 + $0x290] sm:$0xff]
        %v552 = vld [vmem:[#allocation2 + $0x2a0] sm:$0xff]
        %v553 = vld [vmem:[#allocation2 + $0x2a8] sm:$0xff]
        %v554 = vld [vmem:[#allocation2 + $0x2b8] sm:$0xff]
        %v555 = vld [vmem:[#allocation2 + $0x2c0] sm:$0xff]
        %v556 = vld [vmem:[#allocation2 + $0x2d0] sm:$0xff]
        %v557 = vld [vmem:[#allocation2 + $0x2d8] sm:$0xff]
        %v558 = vld [vmem:[#allocation2 + $0x2e8] sm:$0xff]
        %v559 = vld [vmem:[#allocation2 + $0x2f0] sm:$0xff]
        %v560 = vld [vmem:[#allocation2 + $0x300] sm:$0xff]
        %v561 = vld [vmem:[#allocation2 + $0x308] sm:$0xff]
        %v562 = vld [vmem:[#allocation2 + $0x318] sm:$0xff]
        %v563 = vld [vmem:[#allocation2 + $0x320] sm:$0xff]
        %v564 = vpack.c.bf16 %v501, %v500
        %v565 = vpack.c.bf16 %v503, %v502
        %v566 = vpack.c.bf16 %v505, %v504
        %v567 = vpack.c.bf16 %v507, %v506
        %v568 = vpack.c.bf16 %v509, %v508
        %v569 = vpack.c.bf16 %v511, %v510
        %v570 = vpack.c.bf16 %v513, %v512
        %v571 = vpack.c.bf16 %v515, %v514
        %v572 = vpack.c.bf16 %v517, %v516
        %v573 = vpack.c.bf16 %v519, %v518
        %v574 = vpack.c.bf16 %v521, %v520
        %v575 = vpack.c.bf16 %v523, %v522
        %v576 = vpack.c.bf16 %v525, %v524
        %v577 = vpack.c.bf16 %v527, %v526
        %v578 = vpack.c.bf16 %v529, %v528
        %v579 = vpack.c.bf16 %v531, %v530
        %v580 = vpack.c.bf16 %v533, %v532
        %v581 = vpack.c.bf16 %v535, %v534
        %v582 = vpack.c.bf16 %v537, %v536
        %v583 = vpack.c.bf16 %v539, %v538
        %v584 = vpack.c.bf16 %v541, %v540
        %v585 = vpack.c.bf16 %v543, %v542
        %v586 = vpack.c.bf16 %v545, %v544
        %v587 = vpack.c.bf16 %v547, %v546
        %v588 = vpack.c.bf16 %v549, %v548
        %v589 = vpack.c.bf16 %v551, %v550
        %v590 = vpack.c.bf16 %v553, %v552
        %v591 = vpack.c.bf16 %v555, %v554
        %v592 = vpack.c.bf16 %v557, %v556
        %v593 = vpack.c.bf16 %v559, %v558
        %v594 = vpack.c.bf16 %v561, %v560
        %v595 = vpack.c.bf16 %v563, %v562
        %596 = vst.msk [vmem:[#allocation3] sm:$0xff] %vm229, %v564
        %597 = vst.msk [vmem:[#allocation3 + $0x8] sm:$0xff] %vm229, %v565
        %598 = vst.msk [vmem:[#allocation3 + $0x10] sm:$0xff] %vm229, %v566
        %599 = vst.msk [vmem:[#allocation3 + $0x18] sm:$0xff] %vm229, %v567
        %600 = vst.msk [vmem:[#allocation3 + $0x20] sm:$0xff] %vm229, %v568
        %601 = vst.msk [vmem:[#allocation3 + $0x28] sm:$0xff] %vm229, %v569
        %602 = vst.msk [vmem:[#allocation3 + $0x30] sm:$0xff] %vm229, %v570
        %603 = vst.msk [vmem:[#allocation3 + $0x38] sm:$0xff] %vm229, %v571
        %604 = vst.msk [vmem:[#allocation3 + $0x40] sm:$0xff] %vm229, %v572
        %605 = vst.msk [vmem:[#allocation3 + $0x48] sm:$0xff] %vm229, %v573
        %606 = vst.msk [vmem:[#allocation3 + $0x50] sm:$0xff] %vm229, %v574
        %607 = vst.msk [vmem:[#allocation3 + $0x58] sm:$0xff] %vm229, %v575
        %608 = vst.msk [vmem:[#allocation3 + $0x60] sm:$0xff] %vm229, %v576
        %609 = vst.msk [vmem:[#allocation3 + $0x68] sm:$0xff] %vm229, %v577
        %610 = vst.msk [vmem:[#allocation3 + $0x70] sm:$0xff] %vm229, %v578
        %611 = vst.msk [vmem:[#allocation3 + $0x78] sm:$0xff] %vm229, %v579
        %612 = vst.msk [vmem:[#allocation3 + $0x80] sm:$0xff] %vm229, %v580
        %613 = vst.msk [vmem:[#allocation3 + $0x88] sm:$0xff] %vm229, %v581
        %614 = vst.msk [vmem:[#allocation3 + $0x90] sm:$0xff] %vm229, %v582
        %615 = vst.msk [vmem:[#allocation3 + $0x98] sm:$0xff] %vm229, %v583
        %616 = vst.msk [vmem:[#allocation3 + $0xa0] sm:$0xff] %vm229, %v584
        %617 = vst.msk [vmem:[#allocation3 + $0xa8] sm:$0xff] %vm229, %v585
        %618 = vst.msk [vmem:[#allocation3 + $0xb0] sm:$0xff] %vm229, %v586
        %619 = vst.msk [vmem:[#allocation3 + $0xb8] sm:$0xff] %vm229, %v587
        %620 = vst.msk [vmem:[#allocation3 + $0xc0] sm:$0xff] %vm229, %v588
        %621 = vst.msk [vmem:[#allocation3 + $0xc8] sm:$0xff] %vm229, %v589
        %622 = vst.msk [vmem:[#allocation3 + $0xd0] sm:$0xff] %vm229, %v590
        %623 = vst.msk [vmem:[#allocation3 + $0xd8] sm:$0xff] %vm229, %v591
        %624 = vst.msk [vmem:[#allocation3 + $0xe0] sm:$0xff] %vm229, %v592
        %625 = vst.msk [vmem:[#allocation3 + $0xe8] sm:$0xff] %vm229, %v593
        %626 = vst.msk [vmem:[#allocation3 + $0xf0] sm:$0xff] %vm229, %v594
        %627 = vst.msk [vmem:[#allocation3 + $0xf8] sm:$0xff] %vm229, %v595
        %v628 = vld [vmem:[#allocation2 + $0x1] sm:$0xff]
        %v629 = vld [vmem:[#allocation2 + $0x9] sm:$0xff]
        %v630 = vld [vmem:[#allocation2 + $0x19] sm:$0xff]
        %v631 = vld [vmem:[#allocation2 + $0x21] sm:$0xff]
        %v632 = vld [vmem:[#allocation2 + $0x31] sm:$0xff]
        %v633 = vld [vmem:[#allocation2 + $0x39] sm:$0xff]
        %v634 = vld [vmem:[#allocation2 + $0x49] sm:$0xff]
        %v635 = vld [vmem:[#allocation2 + $0x51] sm:$0xff]
        %v636 = vld [vmem:[#allocation2 + $0x61] sm:$0xff]
        %v637 = vld [vmem:[#allocation2 + $0x69] sm:$0xff]
        %v638 = vld [vmem:[#allocation2 + $0x79] sm:$0xff]
        %v639 = vld [vmem:[#allocation2 + $0x81] sm:$0xff]
        %v640 = vld [vmem:[#allocation2 + $0x91] sm:$0xff]
        %v641 = vld [vmem:[#allocation2 + $0x99] sm:$0xff]
        %v642 = vld [vmem:[#allocation2 + $0xa9] sm:$0xff]
        %v643 = vld [vmem:[#allocation2 + $0xb1] sm:$0xff]
        %v644 = vld [vmem:[#allocation2 + $0xc1] sm:$0xff]
        %v645 = vld [vmem:[#allocation2 + $0xc9] sm:$0xff]
        %v646 = vld [vmem:[#allocation2 + $0xd9] sm:$0xff]
        %v647 = vld [vmem:[#allocation2 + $0xe1] sm:$0xff]
        %v648 = vld [vmem:[#allocation2 + $0xf1] sm:$0xff]
        %v649 = vld [vmem:[#allocation2 + $0xf9] sm:$0xff]
        %v650 = vld [vmem:[#allocation2 + $0x109] sm:$0xff]
        %v651 = vld [vmem:[#allocation2 + $0x111] sm:$0xff]
        %v652 = vld [vmem:[#allocation2 + $0x121] sm:$0xff]
        %v653 = vld [vmem:[#allocation2 + $0x129] sm:$0xff]
        %v654 = vld [vmem:[#allocation2 + $0x139] sm:$0xff]
        %v655 = vld [vmem:[#allocation2 + $0x141] sm:$0xff]
        %v656 = vld [vmem:[#allocation2 + $0x151] sm:$0xff]
        %v657 = vld [vmem:[#allocation2 + $0x159] sm:$0xff]
        %v658 = vld [vmem:[#allocation2 + $0x169] sm:$0xff]
        %v659 = vld [vmem:[#allocation2 + $0x171] sm:$0xff]
        %v660 = vld [vmem:[#allocation2 + $0x1b1] sm:$0xff]
        %v661 = vld [vmem:[#allocation2 + $0x1b9] sm:$0xff]
        %v662 = vld [vmem:[#allocation2 + $0x1c9] sm:$0xff]
        %v663 = vld [vmem:[#allocation2 + $0x1d1] sm:$0xff]
        %v664 = vld [vmem:[#allocation2 + $0x1e1] sm:$0xff]
        %v665 = vld [vmem:[#allocation2 + $0x1e9] sm:$0xff]
        %v666 = vld [vmem:[#allocation2 + $0x1f9] sm:$0xff]
        %v667 = vld [vmem:[#allocation2 + $0x201] sm:$0xff]
        %v668 = vld [vmem:[#allocation2 + $0x211] sm:$0xff]
        %v669 = vld [vmem:[#allocation2 + $0x219] sm:$0xff]
        %v670 = vld [vmem:[#allocation2 + $0x229] sm:$0xff]
        %v671 = vld [vmem:[#allocation2 + $0x231] sm:$0xff]
        %v672 = vld [vmem:[#allocation2 + $0x241] sm:$0xff]
        %v673 = vld [vmem:[#allocation2 + $0x249] sm:$0xff]
        %v674 = vld [vmem:[#allocation2 + $0x259] sm:$0xff]
        %v675 = vld [vmem:[#allocation2 + $0x261] sm:$0xff]
        %v676 = vld [vmem:[#allocation2 + $0x271] sm:$0xff]
        %v677 = vld [vmem:[#allocation2 + $0x279] sm:$0xff]
        %v678 = vld [vmem:[#allocation2 + $0x289] sm:$0xff]
        %v679 = vld [vmem:[#allocation2 + $0x291] sm:$0xff]
        %v680 = vld [vmem:[#allocation2 + $0x2a1] sm:$0xff]
        %v681 = vld [vmem:[#allocation2 + $0x2a9] sm:$0xff]
        %v682 = vld [vmem:[#allocation2 + $0x2b9] sm:$0xff]
        %v683 = vld [vmem:[#allocation2 + $0x2c1] sm:$0xff]
        %v684 = vld [vmem:[#allocation2 + $0x2d1] sm:$0xff]
        %v685 = vld [vmem:[#allocation2 + $0x2d9] sm:$0xff]
        %v686 = vld [vmem:[#allocation2 + $0x2e9] sm:$0xff]
        %v687 = vld [vmem:[#allocation2 + $0x2f1] sm:$0xff]
        %v688 = vld [vmem:[#allocation2 + $0x301] sm:$0xff]
        %v689 = vld [vmem:[#allocation2 + $0x309] sm:$0xff]
        %v690 = vld [vmem:[#allocation2 + $0x319] sm:$0xff]
        %v691 = vld [vmem:[#allocation2 + $0x321] sm:$0xff]
        %v692 = vpack.c.bf16 %v629, %v628
        %v693 = vpack.c.bf16 %v631, %v630
        %v694 = vpack.c.bf16 %v633, %v632
        %v695 = vpack.c.bf16 %v635, %v634
        %v696 = vpack.c.bf16 %v637, %v636
        %v697 = vpack.c.bf16 %v639, %v638
        %v698 = vpack.c.bf16 %v641, %v640
        %v699 = vpack.c.bf16 %v643, %v642
        %v700 = vpack.c.bf16 %v645, %v644
        %v701 = vpack.c.bf16 %v647, %v646
        %v702 = vpack.c.bf16 %v649, %v648
        %v703 = vpack.c.bf16 %v651, %v650
        %v704 = vpack.c.bf16 %v653, %v652
        %v705 = vpack.c.bf16 %v655, %v654
        %v706 = vpack.c.bf16 %v657, %v656
        %v707 = vpack.c.bf16 %v659, %v658
        %v708 = vpack.c.bf16 %v661, %v660
        %v709 = vpack.c.bf16 %v663, %v662
        %v710 = vpack.c.bf16 %v665, %v664
        %v711 = vpack.c.bf16 %v667, %v666
        %v712 = vpack.c.bf16 %v669, %v668
        %v713 = vpack.c.bf16 %v671, %v670
        %v714 = vpack.c.bf16 %v673, %v672
        %v715 = vpack.c.bf16 %v675, %v674
        %v716 = vpack.c.bf16 %v677, %v676
        %v717 = vpack.c.bf16 %v679, %v678
        %v718 = vpack.c.bf16 %v681, %v680
        %v719 = vpack.c.bf16 %v683, %v682
        %v720 = vpack.c.bf16 %v685, %v684
        %v721 = vpack.c.bf16 %v687, %v686
        %v722 = vpack.c.bf16 %v689, %v688
        %v723 = vpack.c.bf16 %v691, %v690
        %756 = vrot.lane.b32.xlu0 %v692, 3
        %v757 = vpop.permute.xlu0 %756
        %758 = vrot.lane.b32.xlu0 %v693, 3
        %v759 = vpop.permute.xlu0 %758
        %760 = vrot.lane.b32.xlu0 %v694, 3
        %v761 = vpop.permute.xlu0 %760
        %762 = vrot.lane.b32.xlu0 %v695, 3
        %v763 = vpop.permute.xlu0 %762
        %764 = vrot.lane.b32.xlu0 %v696, 3
        %v765 = vpop.permute.xlu0 %764
        %766 = vrot.lane.b32.xlu0 %v697, 3
        %v767 = vpop.permute.xlu0 %766
        %768 = vrot.lane.b32.xlu0 %v698, 3
        %v769 = vpop.permute.xlu0 %768
        %770 = vrot.lane.b32.xlu0 %v699, 3
        %v771 = vpop.permute.xlu0 %770
        %772 = vrot.lane.b32.xlu0 %v700, 3
        %v773 = vpop.permute.xlu0 %772
        %774 = vrot.lane.b32.xlu0 %v701, 3
        %v775 = vpop.permute.xlu0 %774
        %776 = vrot.lane.b32.xlu0 %v702, 3
        %v777 = vpop.permute.xlu0 %776
        %778 = vrot.lane.b32.xlu0 %v703, 3
        %v779 = vpop.permute.xlu0 %778
        %780 = vrot.lane.b32.xlu0 %v704, 3
        %v781 = vpop.permute.xlu0 %780
        %782 = vrot.lane.b32.xlu0 %v705, 3
        %v783 = vpop.permute.xlu0 %782
        %784 = vrot.lane.b32.xlu0 %v706, 3
        %v785 = vpop.permute.xlu0 %784
        %786 = vrot.lane.b32.xlu0 %v707, 3
        %v787 = vpop.permute.xlu0 %786
        %788 = vrot.lane.b32.xlu0 %v708, 3
        %v789 = vpop.permute.xlu0 %788
        %790 = vrot.lane.b32.xlu0 %v709, 3
        %v791 = vpop.permute.xlu0 %790
        %792 = vrot.lane.b32.xlu0 %v710, 3
        %v793 = vpop.permute.xlu0 %792
        %794 = vrot.lane.b32.xlu0 %v711, 3
        %v795 = vpop.permute.xlu0 %794
        %796 = vrot.lane.b32.xlu0 %v712, 3
        %v797 = vpop.permute.xlu0 %796
        %798 = vrot.lane.b32.xlu0 %v713, 3
        %v799 = vpop.permute.xlu0 %798
        %800 = vrot.lane.b32.xlu0 %v714, 3
        %v801 = vpop.permute.xlu0 %800
        %802 = vrot.lane.b32.xlu0 %v715, 3
        %v803 = vpop.permute.xlu0 %802
        %804 = vrot.lane.b32.xlu0 %v716, 3
        %v805 = vpop.permute.xlu0 %804
        %806 = vrot.lane.b32.xlu0 %v717, 3
        %v807 = vpop.permute.xlu0 %806
        %808 = vrot.lane.b32.xlu0 %v718, 3
        %v809 = vpop.permute.xlu0 %808
        %810 = vrot.lane.b32.xlu0 %v719, 3
        %v811 = vpop.permute.xlu0 %810
        %812 = vrot.lane.b32.xlu0 %v720, 3
        %v813 = vpop.permute.xlu0 %812
        %814 = vrot.lane.b32.xlu0 %v721, 3
        %v815 = vpop.permute.xlu0 %814
        %816 = vrot.lane.b32.xlu0 %v722, 3
        %v817 = vpop.permute.xlu0 %816
        %818 = vrot.lane.b32.xlu0 %v723, 3
        %v819 = vpop.permute.xlu0 %818
        %vm852 = vcmask 48152
        %853 = vst.msk [vmem:[#allocation3] sm:$0xff] %vm852, %v757
        %854 = vst.msk [vmem:[#allocation3 + $0x8] sm:$0xff] %vm852, %v759
        %855 = vst.msk [vmem:[#allocation3 + $0x10] sm:$0xff] %vm852, %v761
        %856 = vst.msk [vmem:[#allocation3 + $0x18] sm:$0xff] %vm852, %v763
        %857 = vst.msk [vmem:[#allocation3 + $0x20] sm:$0xff] %vm852, %v765
        %858 = vst.msk [vmem:[#allocation3 + $0x28] sm:$0xff] %vm852, %v767
        %859 = vst.msk [vmem:[#allocation3 + $0x30] sm:$0xff] %vm852, %v769
        %860 = vst.msk [vmem:[#allocation3 + $0x38] sm:$0xff] %vm852, %v771
        %861 = vst.msk [vmem:[#allocation3 + $0x40] sm:$0xff] %vm852, %v773
        %862 = vst.msk [vmem:[#allocation3 + $0x48] sm:$0xff] %vm852, %v775
        %863 = vst.msk [vmem:[#allocation3 + $0x50] sm:$0xff] %vm852, %v777
        %864 = vst.msk [vmem:[#allocation3 + $0x58] sm:$0xff] %vm852, %v779
        %865 = vst.msk [vmem:[#allocation3 + $0x60] sm:$0xff] %vm852, %v781
        %866 = vst.msk [vmem:[#allocation3 + $0x68] sm:$0xff] %vm852, %v783
        %867 = vst.msk [vmem:[#allocation3 + $0x70] sm:$0xff] %vm852, %v785
        %868 = vst.msk [vmem:[#allocation3 + $0x78] sm:$0xff] %vm852, %v787
        %869 = vst.msk [vmem:[#allocation3 + $0x80] sm:$0xff] %vm852, %v789
        %870 = vst.msk [vmem:[#allocation3 + $0x88] sm:$0xff] %vm852, %v791
        %871 = vst.msk [vmem:[#allocation3 + $0x90] sm:$0xff] %vm852, %v793
        %872 = vst.msk [vmem:[#allocation3 + $0x98] sm:$0xff] %vm852, %v795
        %873 = vst.msk [vmem:[#allocation3 + $0xa0] sm:$0xff] %vm852, %v797
        %874 = vst.msk [vmem:[#allocation3 + $0xa8] sm:$0xff] %vm852, %v799
        %875 = vst.msk [vmem:[#allocation3 + $0xb0] sm:$0xff] %vm852, %v801
        %876 = vst.msk [vmem:[#allocation3 + $0xb8] sm:$0xff] %vm852, %v803
        %877 = vst.msk [vmem:[#allocation3 + $0xc0] sm:$0xff] %vm852, %v805
        %878 = vst.msk [vmem:[#allocation3 + $0xc8] sm:$0xff] %vm852, %v807
        %879 = vst.msk [vmem:[#allocation3 + $0xd0] sm:$0xff] %vm852, %v809
        %880 = vst.msk [vmem:[#allocation3 + $0xd8] sm:$0xff] %vm852, %v811
        %881 = vst.msk [vmem:[#allocation3 + $0xe0] sm:$0xff] %vm852, %v813
        %882 = vst.msk [vmem:[#allocation3 + $0xe8] sm:$0xff] %vm852, %v815
        %883 = vst.msk [vmem:[#allocation3 + $0xf0] sm:$0xff] %vm852, %v817
        %884 = vst.msk [vmem:[#allocation3 + $0xf8] sm:$0xff] %vm852, %v819
        %v885 = vld [vmem:[#allocation2 + $0x2] sm:$0xff]
        %v886 = vld [vmem:[#allocation2 + $0xa] sm:$0xff]
        %v887 = vld [vmem:[#allocation2 + $0x1a] sm:$0xff]
        %v888 = vld [vmem:[#allocation2 + $0x22] sm:$0xff]
        %v889 = vld [vmem:[#allocation2 + $0x32] sm:$0xff]
        %v890 = vld [vmem:[#allocation2 + $0x3a] sm:$0xff]
        %v891 = vld [vmem:[#allocation2 + $0x4a] sm:$0xff]
        %v892 = vld [vmem:[#allocation2 + $0x52] sm:$0xff]
        %v893 = vld [vmem:[#allocation2 + $0x62] sm:$0xff]
        %v894 = vld [vmem:[#allocation2 + $0x6a] sm:$0xff]
        %v895 = vld [vmem:[#allocation2 + $0x7a] sm:$0xff]
        %v896 = vld [vmem:[#allocation2 + $0x82] sm:$0xff]
        %v897 = vld [vmem:[#allocation2 + $0x92] sm:$0xff]
        %v898 = vld [vmem:[#allocation2 + $0x9a] sm:$0xff]
        %v899 = vld [vmem:[#allocation2 + $0xaa] sm:$0xff]
        %v900 = vld [vmem:[#allocation2 + $0xb2] sm:$0xff]
        %v901 = vld [vmem:[#allocation2 + $0xc2] sm:$0xff]
        %v902 = vld [vmem:[#allocation2 + $0xca] sm:$0xff]
        %v903 = vld [vmem:[#allocation2 + $0xda] sm:$0xff]
        %v904 = vld [vmem:[#allocation2 + $0xe2] sm:$0xff]
        %v905 = vld [vmem:[#allocation2 + $0xf2] sm:$0xff]
        %v906 = vld [vmem:[#allocation2 + $0xfa] sm:$0xff]
        %v907 = vld [vmem:[#allocation2 + $0x10a] sm:$0xff]
        %v908 = vld [vmem:[#allocation2 + $0x112] sm:$0xff]
        %v909 = vld [vmem:[#allocation2 + $0x122] sm:$0xff]
        %v910 = vld [vmem:[#allocation2 + $0x12a] sm:$0xff]
        %v911 = vld [vmem:[#allocation2 + $0x13a] sm:$0xff]
        %v912 = vld [vmem:[#allocation2 + $0x142] sm:$0xff]
        %v913 = vld [vmem:[#allocation2 + $0x152] sm:$0xff]
        %v914 = vld [vmem:[#allocation2 + $0x15a] sm:$0xff]
        %v915 = vld [vmem:[#allocation2 + $0x16a] sm:$0xff]
        %v916 = vld [vmem:[#allocation2 + $0x172] sm:$0xff]
        %v917 = vld [vmem:[#allocation2 + $0x1b2] sm:$0xff]
        %v918 = vld [vmem:[#allocation2 + $0x1ba] sm:$0xff]
        %v919 = vld [vmem:[#allocation2 + $0x1ca] sm:$0xff]
        %v920 = vld [vmem:[#allocation2 + $0x1d2] sm:$0xff]
        %v921 = vld [vmem:[#allocation2 + $0x1e2] sm:$0xff]
        %v922 = vld [vmem:[#allocation2 + $0x1ea] sm:$0xff]
        %v923 = vld [vmem:[#allocation2 + $0x1fa] sm:$0xff]
        %v924 = vld [vmem:[#allocation2 + $0x202] sm:$0xff]
        %v925 = vld [vmem:[#allocation2 + $0x212] sm:$0xff]
        %v926 = vld [vmem:[#allocation2 + $0x21a] sm:$0xff]
        %v927 = vld [vmem:[#allocation2 + $0x22a] sm:$0xff]
        %v928 = vld [vmem:[#allocation2 + $0x232] sm:$0xff]
        %v929 = vld [vmem:[#allocation2 + $0x242] sm:$0xff]
        %v930 = vld [vmem:[#allocation2 + $0x24a] sm:$0xff]
        %v931 = vld [vmem:[#allocation2 + $0x25a] sm:$0xff]
        %v932 = vld [vmem:[#allocation2 + $0x262] sm:$0xff]
        %v933 = vld [vmem:[#allocation2 + $0x272] sm:$0xff]
        %v934 = vld [vmem:[#allocation2 + $0x27a] sm:$0xff]
        %v935 = vld [vmem:[#allocation2 + $0x28a] sm:$0xff]
        %v936 = vld [vmem:[#allocation2 + $0x292] sm:$0xff]
        %v937 = vld [vmem:[#allocation2 + $0x2a2] sm:$0xff]
        %v938 = vld [vmem:[#allocation2 + $0x2aa] sm:$0xff]
        %v939 = vld [vmem:[#allocation2 + $0x2ba] sm:$0xff]
        %v940 = vld [vmem:[#allocation2 + $0x2c2] sm:$0xff]
        %v941 = vld [vmem:[#allocation2 + $0x2d2] sm:$0xff]
        %v942 = vld [vmem:[#allocation2 + $0x2da] sm:$0xff]
        %v943 = vld [vmem:[#allocation2 + $0x2ea] sm:$0xff]
        %v944 = vld [vmem:[#allocation2 + $0x2f2] sm:$0xff]
        %v945 = vld [vmem:[#allocation2 + $0x302] sm:$0xff]
        %v946 = vld [vmem:[#allocation2 + $0x30a] sm:$0xff]
        %v947 = vld [vmem:[#allocation2 + $0x31a] sm:$0xff]
        %v948 = vld [vmem:[#allocation2 + $0x322] sm:$0xff]
        %v949 = vpack.c.bf16 %v886, %v885
        %v950 = vpack.c.bf16 %v888, %v887
        %v951 = vpack.c.bf16 %v890, %v889
        %v952 = vpack.c.bf16 %v892, %v891
        %v953 = vpack.c.bf16 %v894, %v893
        %v954 = vpack.c.bf16 %v896, %v895
        %v955 = vpack.c.bf16 %v898, %v897
        %v956 = vpack.c.bf16 %v900, %v899
        %v957 = vpack.c.bf16 %v902, %v901
        %v958 = vpack.c.bf16 %v904, %v903
        %v959 = vpack.c.bf16 %v906, %v905
        %v960 = vpack.c.bf16 %v908, %v907
        %v961 = vpack.c.bf16 %v910, %v909
        %v962 = vpack.c.bf16 %v912, %v911
        %v963 = vpack.c.bf16 %v914, %v913
        %v964 = vpack.c.bf16 %v916, %v915
        %v965 = vpack.c.bf16 %v918, %v917
        %v966 = vpack.c.bf16 %v920, %v919
        %v967 = vpack.c.bf16 %v922, %v921
        %v968 = vpack.c.bf16 %v924, %v923
        %v969 = vpack.c.bf16 %v926, %v925
        %v970 = vpack.c.bf16 %v928, %v927
        %v971 = vpack.c.bf16 %v930, %v929
        %v972 = vpack.c.bf16 %v932, %v931
        %v973 = vpack.c.bf16 %v934, %v933
        %v974 = vpack.c.bf16 %v936, %v935
        %v975 = vpack.c.bf16 %v938, %v937
        %v976 = vpack.c.bf16 %v940, %v939
        %v977 = vpack.c.bf16 %v942, %v941
        %v978 = vpack.c.bf16 %v944, %v943
        %v979 = vpack.c.bf16 %v946, %v945
        %v980 = vpack.c.bf16 %v948, %v947
        %1013 = vrot.lane.b32.xlu0 %v949, 6
        %v1014 = vpop.permute.xlu0 %1013
        %1015 = vrot.lane.b32.xlu0 %v950, 6
        %v1016 = vpop.permute.xlu0 %1015
        %1017 = vrot.lane.b32.xlu0 %v951, 6
        %v1018 = vpop.permute.xlu0 %1017
        %1019 = vrot.lane.b32.xlu0 %v952, 6
        %v1020 = vpop.permute.xlu0 %1019
        %1021 = vrot.lane.b32.xlu0 %v953, 6
        %v1022 = vpop.permute.xlu0 %1021
        %1023 = vrot.lane.b32.xlu0 %v954, 6
        %v1024 = vpop.permute.xlu0 %1023
        %1025 = vrot.lane.b32.xlu0 %v955, 6
        %v1026 = vpop.permute.xlu0 %1025
        %1027 = vrot.lane.b32.xlu0 %v956, 6
        %v1028 = vpop.permute.xlu0 %1027
        %1029 = vrot.lane.b32.xlu0 %v957, 6
        %v1030 = vpop.permute.xlu0 %1029
        %1031 = vrot.lane.b32.xlu0 %v958, 6
        %v1032 = vpop.permute.xlu0 %1031
        %1033 = vrot.lane.b32.xlu0 %v959, 6
        %v1034 = vpop.permute.xlu0 %1033
        %1035 = vrot.lane.b32.xlu0 %v960, 6
        %v1036 = vpop.permute.xlu0 %1035
        %1037 = vrot.lane.b32.xlu0 %v961, 6
        %v1038 = vpop.permute.xlu0 %1037
        %1039 = vrot.lane.b32.xlu0 %v962, 6
        %v1040 = vpop.permute.xlu0 %1039
        %1041 = vrot.lane.b32.xlu0 %v963, 6
        %v1042 = vpop.permute.xlu0 %1041
        %1043 = vrot.lane.b32.xlu0 %v964, 6
        %v1044 = vpop.permute.xlu0 %1043
        %1045 = vrot.lane.b32.xlu0 %v965, 6
        %v1046 = vpop.permute.xlu0 %1045
        %1047 = vrot.lane.b32.xlu0 %v966, 6
        %v1048 = vpop.permute.xlu0 %1047
        %1049 = vrot.lane.b32.xlu0 %v967, 6
        %v1050 = vpop.permute.xlu0 %1049
        %1051 = vrot.lane.b32.xlu0 %v968, 6
        %v1052 = vpop.permute.xlu0 %1051
        %1053 = vrot.lane.b32.xlu0 %v969, 6
        %v1054 = vpop.permute.xlu0 %1053
        %1055 = vrot.lane.b32.xlu0 %v970, 6
        %v1056 = vpop.permute.xlu0 %1055
        %1057 = vrot.lane.b32.xlu0 %v971, 6
        %v1058 = vpop.permute.xlu0 %1057
        %1059 = vrot.lane.b32.xlu0 %v972, 6
        %v1060 = vpop.permute.xlu0 %1059
        %1061 = vrot.lane.b32.xlu0 %v973, 6
        %v1062 = vpop.permute.xlu0 %1061
        %1063 = vrot.lane.b32.xlu0 %v974, 6
        %v1064 = vpop.permute.xlu0 %1063
        %1065 = vrot.lane.b32.xlu0 %v975, 6
        %v1066 = vpop.permute.xlu0 %1065
        %1067 = vrot.lane.b32.xlu0 %v976, 6
        %v1068 = vpop.permute.xlu0 %1067
        %1069 = vrot.lane.b32.xlu0 %v977, 6
        %v1070 = vpop.permute.xlu0 %1069
        %1071 = vrot.lane.b32.xlu0 %v978, 6
        %v1072 = vpop.permute.xlu0 %1071
        %1073 = vrot.lane.b32.xlu0 %v979, 6
        %v1074 = vpop.permute.xlu0 %1073
        %1075 = vrot.lane.b32.xlu0 %v980, 6
        %v1076 = vpop.permute.xlu0 %1075
        %vm1109 = vcmask 72752
        %1110 = vst.msk [vmem:[#allocation3] sm:$0xff] %vm1109, %v1014
        %1111 = vst.msk [vmem:[#allocation3 + $0x8] sm:$0xff] %vm1109, %v1016
        %1112 = vst.msk [vmem:[#allocation3 + $0x10] sm:$0xff] %vm1109, %v1018
        %1113 = vst.msk [vmem:[#allocation3 + $0x18] sm:$0xff] %vm1109, %v1020
        %1114 = vst.msk [vmem:[#allocation3 + $0x20] sm:$0xff] %vm1109, %v1022
        %1115 = vst.msk [vmem:[#allocation3 + $0x28] sm:$0xff] %vm1109, %v1024
        %1116 = vst.msk [vmem:[#allocation3 + $0x30] sm:$0xff] %vm1109, %v1026
        %1117 = vst.msk [vmem:[#allocation3 + $0x38] sm:$0xff] %vm1109, %v1028
        %1118 = vst.msk [vmem:[#allocation3 + $0x40] sm:$0xff] %vm1109, %v1030
        %1119 = vst.msk [vmem:[#allocation3 + $0x48] sm:$0xff] %vm1109, %v1032
        %1120 = vst.msk [vmem:[#allocation3 + $0x50] sm:$0xff] %vm1109, %v1034
        %1121 = vst.msk [vmem:[#allocation3 + $0x58] sm:$0xff] %vm1109, %v1036
        %1122 = vst.msk [vmem:[#allocation3 + $0x60] sm:$0xff] %vm1109, %v1038
        %1123 = vst.msk [vmem:[#allocation3 + $0x68] sm:$0xff] %vm1109, %v1040
        %1124 = vst.msk [vmem:[#allocation3 + $0x70] sm:$0xff] %vm1109, %v1042
        %1125 = vst.msk [vmem:[#allocation3 + $0x78] sm:$0xff] %vm1109, %v1044
        %1126 = vst.msk [vmem:[#allocation3 + $0x80] sm:$0xff] %vm1109, %v1046
        %1127 = vst.msk [vmem:[#allocation3 + $0x88] sm:$0xff] %vm1109, %v1048
        %1128 = vst.msk [vmem:[#allocation3 + $0x90] sm:$0xff] %vm1109, %v1050
        %1129 = vst.msk [vmem:[#allocation3 + $0x98] sm:$0xff] %vm1109, %v1052
        %1130 = vst.msk [vmem:[#allocation3 + $0xa0] sm:$0xff] %vm1109, %v1054
        %1131 = vst.msk [vmem:[#allocation3 + $0xa8] sm:$0xff] %vm1109, %v1056
        %1132 = vst.msk [vmem:[#allocation3 + $0xb0] sm:$0xff] %vm1109, %v1058
        %1133 = vst.msk [vmem:[#allocation3 + $0xb8] sm:$0xff] %vm1109, %v1060
        %1134 = vst.msk [vmem:[#allocation3 + $0xc0] sm:$0xff] %vm1109, %v1062
        %1135 = vst.msk [vmem:[#allocation3 + $0xc8] sm:$0xff] %vm1109, %v1064
        %1136 = vst.msk [vmem:[#allocation3 + $0xd0] sm:$0xff] %vm1109, %v1066
        %1137 = vst.msk [vmem:[#allocation3 + $0xd8] sm:$0xff] %vm1109, %v1068
        %1138 = vst.msk [vmem:[#allocation3 + $0xe0] sm:$0xff] %vm1109, %v1070
        %1139 = vst.msk [vmem:[#allocation3 + $0xe8] sm:$0xff] %vm1109, %v1072
        %1140 = vst.msk [vmem:[#allocation3 + $0xf0] sm:$0xff] %vm1109, %v1074
        %1141 = vst.msk [vmem:[#allocation3 + $0xf8] sm:$0xff] %vm1109, %v1076
        %v1142 = vld [vmem:[%s435] sm:$0xff]
        %v1143 = vld [vmem:[%s435 + $0x8] sm:$0xff]
        %v1144 = vld [vmem:[%s435 + $0x18] sm:$0xff]
        %v1145 = vld [vmem:[%s435 + $0x20] sm:$0xff]
        %v1146 = vld [vmem:[%s435 + $0x30] sm:$0xff]
        %v1147 = vld [vmem:[%s435 + $0x38] sm:$0xff]
        %v1148 = vld [vmem:[%s435 + $0x48] sm:$0xff]
        %v1149 = vld [vmem:[%s435 + $0x50] sm:$0xff]
        %v1150 = vld [vmem:[%s435 + $0x60] sm:$0xff]
        %v1151 = vld [vmem:[%s435 + $0x68] sm:$0xff]
        %v1152 = vld [vmem:[%s435 + $0x78] sm:$0xff]
        %v1153 = vld [vmem:[%s435 + $0x80] sm:$0xff]
        %v1154 = vld [vmem:[%s435 + $0x90] sm:$0xff]
        %v1155 = vld [vmem:[%s435 + $0x98] sm:$0xff]
        %v1156 = vld [vmem:[%s435 + $0xa8] sm:$0xff]
        %v1157 = vld [vmem:[%s435 + $0xb0] sm:$0xff]
        %v1158 = vld [vmem:[%s435 + $0xc0] sm:$0xff]
        %v1159 = vld [vmem:[%s435 + $0xc8] sm:$0xff]
        %v1160 = vld [vmem:[%s435 + $0xd8] sm:$0xff]
        %v1161 = vld [vmem:[%s435 + $0xe0] sm:$0xff]
        %v1162 = vld [vmem:[%s435 + $0xf0] sm:$0xff]
        %v1163 = vld [vmem:[%s435 + $0xf8] sm:$0xff]
        %v1164 = vld [vmem:[%s435 + $0x108] sm:$0xff]
        %v1165 = vld [vmem:[%s435 + $0x110] sm:$0xff]
        %v1166 = vld [vmem:[%s435 + $0x120] sm:$0xff]
        %v1167 = vld [vmem:[%s435 + $0x128] sm:$0xff]
        %v1168 = vld [vmem:[%s435 + $0x138] sm:$0xff]
        %v1169 = vld [vmem:[%s435 + $0x140] sm:$0xff]
        %v1170 = vld [vmem:[%s435 + $0x150] sm:$0xff]
        %v1171 = vld [vmem:[%s435 + $0x158] sm:$0xff]
        %v1172 = vld [vmem:[%s435 + $0x168] sm:$0xff]
        %v1173 = vld [vmem:[%s435 + $0x170] sm:$0xff]
        %v1174 = vld [vmem:[%s435 + $0x1b0] sm:$0xff]
        %v1175 = vld [vmem:[%s435 + $0x1b8] sm:$0xff]
        %v1176 = vld [vmem:[%s435 + $0x1c8] sm:$0xff]
        %v1177 = vld [vmem:[%s435 + $0x1d0] sm:$0xff]
        %v1178 = vld [vmem:[%s435 + $0x1e0] sm:$0xff]
        %v1179 = vld [vmem:[%s435 + $0x1e8] sm:$0xff]
        %v1180 = vld [vmem:[%s435 + $0x1f8] sm:$0xff]
        %v1181 = vld [vmem:[%s435 + $0x200] sm:$0xff]
        %v1182 = vld [vmem:[%s435 + $0x210] sm:$0xff]
        %v1183 = vld [vmem:[%s435 + $0x218] sm:$0xff]
        %v1184 = vld [vmem:[%s435 + $0x228] sm:$0xff]
        %v1185 = vld [vmem:[%s435 + $0x230] sm:$0xff]
        %v1186 = vld [vmem:[%s435 + $0x240] sm:$0xff]
        %v1187 = vld [vmem:[%s435 + $0x248] sm:$0xff]
        %v1188 = vld [vmem:[%s435 + $0x258] sm:$0xff]
        %v1189 = vld [vmem:[%s435 + $0x260] sm:$0xff]
        %v1190 = vld [vmem:[%s435 + $0x270] sm:$0xff]
        %v1191 = vld [vmem:[%s435 + $0x278] sm:$0xff]
        %v1192 = vld [vmem:[%s435 + $0x288] sm:$0xff]
        %v1193 = vld [vmem:[%s435 + $0x290] sm:$0xff]
        %v1194 = vld [vmem:[%s435 + $0x2a0] sm:$0xff]
        %v1195 = vld [vmem:[%s435 + $0x2a8] sm:$0xff]
        %v1196 = vld [vmem:[%s435 + $0x2b8] sm:$0xff]
        %v1197 = vld [vmem:[%s435 + $0x2c0] sm:$0xff]
        %v1198 = vld [vmem:[%s435 + $0x2d0] sm:$0xff]
        %v1199 = vld [vmem:[%s435 + $0x2d8] sm:$0xff]
        %v1200 = vld [vmem:[%s435 + $0x2e8] sm:$0xff]
        %v1201 = vld [vmem:[%s435 + $0x2f0] sm:$0xff]
        %v1202 = vld [vmem:[%s435 + $0x300] sm:$0xff]
        %v1203 = vld [vmem:[%s435 + $0x308] sm:$0xff]
        %v1204 = vld [vmem:[%s435 + $0x318] sm:$0xff]
        %v1205 = vld [vmem:[%s435 + $0x320] sm:$0xff]
        %v1206 = vpack.c.bf16 %v1143, %v1142
        %v1207 = vpack.c.bf16 %v1145, %v1144
        %v1208 = vpack.c.bf16 %v1147, %v1146
        %v1209 = vpack.c.bf16 %v1149, %v1148
        %v1210 = vpack.c.bf16 %v1151, %v1150
        %v1211 = vpack.c.bf16 %v1153, %v1152
        %v1212 = vpack.c.bf16 %v1155, %v1154
        %v1213 = vpack.c.bf16 %v1157, %v1156
        %v1214 = vpack.c.bf16 %v1159, %v1158
        %v1215 = vpack.c.bf16 %v1161, %v1160
        %v1216 = vpack.c.bf16 %v1163, %v1162
        %v1217 = vpack.c.bf16 %v1165, %v1164
        %v1218 = vpack.c.bf16 %v1167, %v1166
        %v1219 = vpack.c.bf16 %v1169, %v1168
        %v1220 = vpack.c.bf16 %v1171, %v1170
        %v1221 = vpack.c.bf16 %v1173, %v1172
        %v1222 = vpack.c.bf16 %v1175, %v1174
        %v1223 = vpack.c.bf16 %v1177, %v1176
        %v1224 = vpack.c.bf16 %v1179, %v1178
        %v1225 = vpack.c.bf16 %v1181, %v1180
        %v1226 = vpack.c.bf16 %v1183, %v1182
        %v1227 = vpack.c.bf16 %v1185, %v1184
        %v1228 = vpack.c.bf16 %v1187, %v1186
        %v1229 = vpack.c.bf16 %v1189, %v1188
        %v1230 = vpack.c.bf16 %v1191, %v1190
        %v1231 = vpack.c.bf16 %v1193, %v1192
        %v1232 = vpack.c.bf16 %v1195, %v1194
        %v1233 = vpack.c.bf16 %v1197, %v1196
        %v1234 = vpack.c.bf16 %v1199, %v1198
        %v1235 = vpack.c.bf16 %v1201, %v1200
        %v1236 = vpack.c.bf16 %v1203, %v1202
        %v1237 = vpack.c.bf16 %v1205, %v1204
        %1270 = vrot.lane.b32.xlu0 %v1206, 9
        %v1271 = vpop.permute.xlu0 %1270
        %1272 = vrot.lane.b32.xlu0 %v1207, 9
        %v1273 = vpop.permute.xlu0 %1272
        %1274 = vrot.lane.b32.xlu0 %v1208, 9
        %v1275 = vpop.permute.xlu0 %1274
        %1276 = vrot.lane.b32.xlu0 %v1209, 9
        %v1277 = vpop.permute.xlu0 %1276
        %1278 = vrot.lane.b32.xlu0 %v1210, 9
        %v1279 = vpop.permute.xlu0 %1278
        %1280 = vrot.lane.b32.xlu0 %v1211, 9
        %v1281 = vpop.permute.xlu0 %1280
        %1282 = vrot.lane.b32.xlu0 %v1212, 9
        %v1283 = vpop.permute.xlu0 %1282
        %1284 = vrot.lane.b32.xlu0 %v1213, 9
        %v1285 = vpop.permute.xlu0 %1284
        %1286 = vrot.lane.b32.xlu0 %v1214, 9
        %v1287 = vpop.permute.xlu0 %1286
        %1288 = vrot.lane.b32.xlu0 %v1215, 9
        %v1289 = vpop.permute.xlu0 %1288
        %1290 = vrot.lane.b32.xlu0 %v1216, 9
        %v1291 = vpop.permute.xlu0 %1290
        %1292 = vrot.lane.b32.xlu0 %v1217, 9
        %v1293 = vpop.permute.xlu0 %1292
        %1294 = vrot.lane.b32.xlu0 %v1218, 9
        %v1295 = vpop.permute.xlu0 %1294
        %1296 = vrot.lane.b32.xlu0 %v1219, 9
        %v1297 = vpop.permute.xlu0 %1296
        %1298 = vrot.lane.b32.xlu0 %v1220, 9
        %v1299 = vpop.permute.xlu0 %1298
        %1300 = vrot.lane.b32.xlu0 %v1221, 9
        %v1301 = vpop.permute.xlu0 %1300
        %1302 = vrot.lane.b32.xlu0 %v1222, 9
        %v1303 = vpop.permute.xlu0 %1302
        %1304 = vrot.lane.b32.xlu0 %v1223, 9
        %v1305 = vpop.permute.xlu0 %1304
        %1306 = vrot.lane.b32.xlu0 %v1224, 9
        %v1307 = vpop.permute.xlu0 %1306
        %1308 = vrot.lane.b32.xlu0 %v1225, 9
        %v1309 = vpop.permute.xlu0 %1308
        %1310 = vrot.lane.b32.xlu0 %v1226, 9
        %v1311 = vpop.permute.xlu0 %1310
        %1312 = vrot.lane.b32.xlu0 %v1227, 9
        %v1313 = vpop.permute.xlu0 %1312
        %1314 = vrot.lane.b32.xlu0 %v1228, 9
        %v1315 = vpop.permute.xlu0 %1314
        %1316 = vrot.lane.b32.xlu0 %v1229, 9
        %v1317 = vpop.permute.xlu0 %1316
        %1318 = vrot.lane.b32.xlu0 %v1230, 9
        %v1319 = vpop.permute.xlu0 %1318
        %1320 = vrot.lane.b32.xlu0 %v1231, 9
        %v1321 = vpop.permute.xlu0 %1320
        %1322 = vrot.lane.b32.xlu0 %v1232, 9
        %v1323 = vpop.permute.xlu0 %1322
        %1324 = vrot.lane.b32.xlu0 %v1233, 9
        %v1325 = vpop.permute.xlu0 %1324
        %1326 = vrot.lane.b32.xlu0 %v1234, 9
        %v1327 = vpop.permute.xlu0 %1326
        %1328 = vrot.lane.b32.xlu0 %v1235, 9
        %v1329 = vpop.permute.xlu0 %1328
        %1330 = vrot.lane.b32.xlu0 %v1236, 9
        %v1331 = vpop.permute.xlu0 %1330
        %1332 = vrot.lane.b32.xlu0 %v1237, 9
        %v1333 = vpop.permute.xlu0 %1332
        %vm1366 = vcmask 97352
        %1367 = vst.msk [vmem:[#allocation3] sm:$0xff] %vm1366, %v1271
        %1368 = vst.msk [vmem:[#allocation3 + $0x8] sm:$0xff] %vm1366, %v1273
        %1369 = vst.msk [vmem:[#allocation3 + $0x10] sm:$0xff] %vm1366, %v1275
        %1370 = vst.msk [vmem:[#allocation3 + $0x18] sm:$0xff] %vm1366, %v1277
        %1371 = vst.msk [vmem:[#allocation3 + $0x20] sm:$0xff] %vm1366, %v1279
        %1372 = vst.msk [vmem:[#allocation3 + $0x28] sm:$0xff] %vm1366, %v1281
        %1373 = vst.msk [vmem:[#allocation3 + $0x30] sm:$0xff] %vm1366, %v1283
        %1374 = vst.msk [vmem:[#allocation3 + $0x38] sm:$0xff] %vm1366, %v1285
        %1375 = vst.msk [vmem:[#allocation3 + $0x40] sm:$0xff] %vm1366, %v1287
        %1376 = vst.msk [vmem:[#allocation3 + $0x48] sm:$0xff] %vm1366, %v1289
        %1377 = vst.msk [vmem:[#allocation3 + $0x50] sm:$0xff] %vm1366, %v1291
        %1378 = vst.msk [vmem:[#allocation3 + $0x58] sm:$0xff] %vm1366, %v1293
        %1379 = vst.msk [vmem:[#allocation3 + $0x60] sm:$0xff] %vm1366, %v1295
        %1380 = vst.msk [vmem:[#allocation3 + $0x68] sm:$0xff] %vm1366, %v1297
        %1381 = vst.msk [vmem:[#allocation3 + $0x70] sm:$0xff] %vm1366, %v1299
        %1382 = vst.msk [vmem:[#allocation3 + $0x78] sm:$0xff] %vm1366, %v1301
        %1383 = vst.msk [vmem:[#allocation3 + $0x80] sm:$0xff] %vm1366, %v1303
        %1384 = vst.msk [vmem:[#allocation3 + $0x88] sm:$0xff] %vm1366, %v1305
        %1385 = vst.msk [vmem:[#allocation3 + $0x90] sm:$0xff] %vm1366, %v1307
        %1386 = vst.msk [vmem:[#allocation3 + $0x98] sm:$0xff] %vm1366, %v1309
        %1387 = vst.msk [vmem:[#allocation3 + $0xa0] sm:$0xff] %vm1366, %v1311
        %1388 = vst.msk [vmem:[#allocation3 + $0xa8] sm:$0xff] %vm1366, %v1313
        %1389 = vst.msk [vmem:[#allocation3 + $0xb0] sm:$0xff] %vm1366, %v1315
        %1390 = vst.msk [vmem:[#allocation3 + $0xb8] sm:$0xff] %vm1366, %v1317
        %1391 = vst.msk [vmem:[#allocation3 + $0xc0] sm:$0xff] %vm1366, %v1319
        %1392 = vst.msk [vmem:[#allocation3 + $0xc8] sm:$0xff] %vm1366, %v1321
        %1393 = vst.msk [vmem:[#allocation3 + $0xd0] sm:$0xff] %vm1366, %v1323
        %1394 = vst.msk [vmem:[#allocation3 + $0xd8] sm:$0xff] %vm1366, %v1325
        %1395 = vst.msk [vmem:[#allocation3 + $0xe0] sm:$0xff] %vm1366, %v1327
        %1396 = vst.msk [vmem:[#allocation3 + $0xe8] sm:$0xff] %vm1366, %v1329
        %1397 = vst.msk [vmem:[#allocation3 + $0xf0] sm:$0xff] %vm1366, %v1331
        %1398 = vst.msk [vmem:[#allocation3 + $0xf8] sm:$0xff] %vm1366, %v1333
        %v1399 = vld [vmem:[%s435 + $0x1] sm:$0xff]
        %v1400 = vld [vmem:[%s435 + $0x9] sm:$0xff]
        %v1401 = vld [vmem:[%s435 + $0x19] sm:$0xff]
        %v1402 = vld [vmem:[%s435 + $0x21] sm:$0xff]
        %v1403 = vld [vmem:[%s435 + $0x31] sm:$0xff]
        %v1404 = vld [vmem:[%s435 + $0x39] sm:$0xff]
        %v1405 = vld [vmem:[%s435 + $0x49] sm:$0xff]
        %v1406 = vld [vmem:[%s435 + $0x51] sm:$0xff]
        %v1407 = vld [vmem:[%s435 + $0x61] sm:$0xff]
        %v1408 = vld [vmem:[%s435 + $0x69] sm:$0xff]
        %v1409 = vld [vmem:[%s435 + $0x79] sm:$0xff]
        %v1410 = vld [vmem:[%s435 + $0x81] sm:$0xff]
        %v1411 = vld [vmem:[%s435 + $0x91] sm:$0xff]
        %v1412 = vld [vmem:[%s435 + $0x99] sm:$0xff]
        %v1413 = vld [vmem:[%s435 + $0xa9] sm:$0xff]
        %v1414 = vld [vmem:[%s435 + $0xb1] sm:$0xff]
        %v1415 = vld [vmem:[%s435 + $0xc1] sm:$0xff]
        %v1416 = vld [vmem:[%s435 + $0xc9] sm:$0xff]
        %v1417 = vld [vmem:[%s435 + $0xd9] sm:$0xff]
        %v1418 = vld [vmem:[%s435 + $0xe1] sm:$0xff]
        %v1419 = vld [vmem:[%s435 + $0xf1] sm:$0xff]
        %v1420 = vld [vmem:[%s435 + $0xf9] sm:$0xff]
        %v1421 = vld [vmem:[%s435 + $0x109] sm:$0xff]
        %v1422 = vld [vmem:[%s435 + $0x111] sm:$0xff]
        %v1423 = vld [vmem:[%s435 + $0x121] sm:$0xff]
        %v1424 = vld [vmem:[%s435 + $0x129] sm:$0xff]
        %v1425 = vld [vmem:[%s435 + $0x139] sm:$0xff]
        %v1426 = vld [vmem:[%s435 + $0x141] sm:$0xff]
        %v1427 = vld [vmem:[%s435 + $0x151] sm:$0xff]
        %v1428 = vld [vmem:[%s435 + $0x159] sm:$0xff]
        %v1429 = vld [vmem:[%s435 + $0x169] sm:$0xff]
        %v1430 = vld [vmem:[%s435 + $0x171] sm:$0xff]
        %v1431 = vld [vmem:[%s435 + $0x1b1] sm:$0xff]
        %v1432 = vld [vmem:[%s435 + $0x1b9] sm:$0xff]
        %v1433 = vld [vmem:[%s435 + $0x1c9] sm:$0xff]
        %v1434 = vld [vmem:[%s435 + $0x1d1] sm:$0xff]
        %v1435 = vld [vmem:[%s435 + $0x1e1] sm:$0xff]
        %v1436 = vld [vmem:[%s435 + $0x1e9] sm:$0xff]
        %v1437 = vld [vmem:[%s435 + $0x1f9] sm:$0xff]
        %v1438 = vld [vmem:[%s435 + $0x201] sm:$0xff]
        %v1439 = vld [vmem:[%s435 + $0x211] sm:$0xff]
        %v1440 = vld [vmem:[%s435 + $0x219] sm:$0xff]
        %v1441 = vld [vmem:[%s435 + $0x229] sm:$0xff]
        %v1442 = vld [vmem:[%s435 + $0x231] sm:$0xff]
        %v1443 = vld [vmem:[%s435 + $0x241] sm:$0xff]
        %v1444 = vld [vmem:[%s435 + $0x249] sm:$0xff]
        %v1445 = vld [vmem:[%s435 + $0x259] sm:$0xff]
        %v1446 = vld [vmem:[%s435 + $0x261] sm:$0xff]
        %v1447 = vld [vmem:[%s435 + $0x271] sm:$0xff]
        %v1448 = vld [vmem:[%s435 + $0x279] sm:$0xff]
        %v1449 = vld [vmem:[%s435 + $0x289] sm:$0xff]
        %v1450 = vld [vmem:[%s435 + $0x291] sm:$0xff]
        %v1451 = vld [vmem:[%s435 + $0x2a1] sm:$0xff]
        %v1452 = vld [vmem:[%s435 + $0x2a9] sm:$0xff]
        %v1453 = vld [vmem:[%s435 + $0x2b9] sm:$0xff]
        %v1454 = vld [vmem:[%s435 + $0x2c1] sm:$0xff]
        %v1455 = vld [vmem:[%s435 + $0x2d1] sm:$0xff]
        %v1456 = vld [vmem:[%s435 + $0x2d9] sm:$0xff]
        %v1457 = vld [vmem:[%s435 + $0x2e9] sm:$0xff]
        %v1458 = vld [vmem:[%s435 + $0x2f1] sm:$0xff]
        %v1459 = vld [vmem:[%s435 + $0x301] sm:$0xff]
        %v1460 = vld [vmem:[%s435 + $0x309] sm:$0xff]
        %v1461 = vld [vmem:[%s435 + $0x319] sm:$0xff]
        %v1462 = vld [vmem:[%s435 + $0x321] sm:$0xff]
        %v1463 = vpack.c.bf16 %v1400, %v1399
        %v1464 = vpack.c.bf16 %v1402, %v1401
        %v1465 = vpack.c.bf16 %v1404, %v1403
        %v1466 = vpack.c.bf16 %v1406, %v1405
        %v1467 = vpack.c.bf16 %v1408, %v1407
        %v1468 = vpack.c.bf16 %v1410, %v1409
        %v1469 = vpack.c.bf16 %v1412, %v1411
        %v1470 = vpack.c.bf16 %v1414, %v1413
        %v1471 = vpack.c.bf16 %v1416, %v1415
        %v1472 = vpack.c.bf16 %v1418, %v1417
        %v1473 = vpack.c.bf16 %v1420, %v1419
        %v1474 = vpack.c.bf16 %v1422, %v1421
        %v1475 = vpack.c.bf16 %v1424, %v1423
        %v1476 = vpack.c.bf16 %v1426, %v1425
        %v1477 = vpack.c.bf16 %v1428, %v1427
        %v1478 = vpack.c.bf16 %v1430, %v1429
        %v1479 = vpack.c.bf16 %v1432, %v1431
        %v1480 = vpack.c.bf16 %v1434, %v1433
        %v1481 = vpack.c.bf16 %v1436, %v1435
        %v1482 = vpack.c.bf16 %v1438, %v1437
        %v1483 = vpack.c.bf16 %v1440, %v1439
        %v1484 = vpack.c.bf16 %v1442, %v1441
        %v1485 = vpack.c.bf16 %v1444, %v1443
        %v1486 = vpack.c.bf16 %v1446, %v1445
        %v1487 = vpack.c.bf16 %v1448, %v1447
        %v1488 = vpack.c.bf16 %v1450, %v1449
        %v1489 = vpack.c.bf16 %v1452, %v1451
        %v1490 = vpack.c.bf16 %v1454, %v1453
        %v1491 = vpack.c.bf16 %v1456, %v1455
        %v1492 = vpack.c.bf16 %v1458, %v1457
        %v1493 = vpack.c.bf16 %v1460, %v1459
        %v1494 = vpack.c.bf16 %v1462, %v1461
        %1527 = vrot.lane.b32.xlu0 %v1463, 12
        %v1528 = vpop.permute.xlu0 %1527
        %1529 = vrot.lane.b32.xlu0 %v1464, 12
        %v1530 = vpop.permute.xlu0 %1529
        %1531 = vrot.lane.b32.xlu0 %v1465, 12
        %v1532 = vpop.permute.xlu0 %1531
        %1533 = vrot.lane.b32.xlu0 %v1466, 12
        %v1534 = vpop.permute.xlu0 %1533
        %1535 = vrot.lane.b32.xlu0 %v1467, 12
        %v1536 = vpop.permute.xlu0 %1535
        %1537 = vrot.lane.b32.xlu0 %v1468, 12
        %v1538 = vpop.permute.xlu0 %1537
        %1539 = vrot.lane.b32.xlu0 %v1469, 12
        %v1540 = vpop.permute.xlu0 %1539
        %1541 = vrot.lane.b32.xlu0 %v1470, 12
        %v1542 = vpop.permute.xlu0 %1541
        %1543 = vrot.lane.b32.xlu0 %v1471, 12
        %v1544 = vpop.permute.xlu0 %1543
        %1545 = vrot.lane.b32.xlu0 %v1472, 12
        %v1546 = vpop.permute.xlu0 %1545
        %1547 = vrot.lane.b32.xlu0 %v1473, 12
        %v1548 = vpop.permute.xlu0 %1547
        %1549 = vrot.lane.b32.xlu0 %v1474, 12
        %v1550 = vpop.permute.xlu0 %1549
        %1551 = vrot.lane.b32.xlu0 %v1475, 12
        %v1552 = vpop.permute.xlu0 %1551
        %1553 = vrot.lane.b32.xlu0 %v1476, 12
        %v1554 = vpop.permute.xlu0 %1553
        %1555 = vrot.lane.b32.xlu0 %v1477, 12
        %v1556 = vpop.permute.xlu0 %1555
        %1557 = vrot.lane.b32.xlu0 %v1478, 12
        %v1558 = vpop.permute.xlu0 %1557
        %1559 = vrot.lane.b32.xlu0 %v1479, 12
        %v1560 = vpop.permute.xlu0 %1559
        %1561 = vrot.lane.b32.xlu0 %v1480, 12
        %v1562 = vpop.permute.xlu0 %1561
        %1563 = vrot.lane.b32.xlu0 %v1481, 12
        %v1564 = vpop.permute.xlu0 %1563
        %1565 = vrot.lane.b32.xlu0 %v1482, 12
        %v1566 = vpop.permute.xlu0 %1565
        %1567 = vrot.lane.b32.xlu0 %v1483, 12
        %v1568 = vpop.permute.xlu0 %1567
        %1569 = vrot.lane.b32.xlu0 %v1484, 12
        %v1570 = vpop.permute.xlu0 %1569
        %1571 = vrot.lane.b32.xlu0 %v1485, 12
        %v1572 = vpop.permute.xlu0 %1571
        %1573 = vrot.lane.b32.xlu0 %v1486, 12
        %v1574 = vpop.permute.xlu0 %1573
        %1575 = vrot.lane.b32.xlu0 %v1487, 12
        %v1576 = vpop.permute.xlu0 %1575
        %1577 = vrot.lane.b32.xlu0 %v1488, 12
        %v1578 = vpop.permute.xlu0 %1577
        %1579 = vrot.lane.b32.xlu0 %v1489, 12
        %v1580 = vpop.permute.xlu0 %1579
        %1581 = vrot.lane.b32.xlu0 %v1490, 12
        %v1582 = vpop.permute.xlu0 %1581
        %1583 = vrot.lane.b32.xlu0 %v1491, 12
        %v1584 = vpop.permute.xlu0 %1583
        %1585 = vrot.lane.b32.xlu0 %v1492, 12
        %v1586 = vpop.permute.xlu0 %1585
        %1587 = vrot.lane.b32.xlu0 %v1493, 12
        %v1588 = vpop.permute.xlu0 %1587
        %1589 = vrot.lane.b32.xlu0 %v1494, 12
        %v1590 = vpop.permute.xlu0 %1589
        %vm1623 = vcmask 121952
        %1624 = vst.msk [vmem:[#allocation3] sm:$0xff] %vm1623, %v1528
        %1625 = vst.msk [vmem:[#allocation3 + $0x8] sm:$0xff] %vm1623, %v1530
        %1626 = vst.msk [vmem:[#allocation3 + $0x10] sm:$0xff] %vm1623, %v1532
        %1627 = vst.msk [vmem:[#allocation3 + $0x18] sm:$0xff] %vm1623, %v1534
        %1628 = vst.msk [vmem:[#allocation3 + $0x20] sm:$0xff] %vm1623, %v1536
        %1629 = vst.msk [vmem:[#allocation3 + $0x28] sm:$0xff] %vm1623, %v1538
        %1630 = vst.msk [vmem:[#allocation3 + $0x30] sm:$0xff] %vm1623, %v1540
        %1631 = vst.msk [vmem:[#allocation3 + $0x38] sm:$0xff] %vm1623, %v1542
        %1632 = vst.msk [vmem:[#allocation3 + $0x40] sm:$0xff] %vm1623, %v1544
        %1633 = vst.msk [vmem:[#allocation3 + $0x48] sm:$0xff] %vm1623, %v1546
        %1634 = vst.msk [vmem:[#allocation3 + $0x50] sm:$0xff] %vm1623, %v1548
        %1635 = vst.msk [vmem:[#allocation3 + $0x58] sm:$0xff] %vm1623, %v1550
        %1636 = vst.msk [vmem:[#allocation3 + $0x60] sm:$0xff] %vm1623, %v1552
        %1637 = vst.msk [vmem:[#allocation3 + $0x68] sm:$0xff] %vm1623, %v1554
        %1638 = vst.msk [vmem:[#allocation3 + $0x70] sm:$0xff] %vm1623, %v1556
        %1639 = vst.msk [vmem:[#allocation3 + $0x78] sm:$0xff] %vm1623, %v1558
        %1640 = vst.msk [vmem:[#allocation3 + $0x80] sm:$0xff] %vm1623, %v1560
        %1641 = vst.msk [vmem:[#allocation3 + $0x88] sm:$0xff] %vm1623, %v1562
        %1642 = vst.msk [vmem:[#allocation3 + $0x90] sm:$0xff] %vm1623, %v1564
        %1643 = vst.msk [vmem:[#allocation3 + $0x98] sm:$0xff] %vm1623, %v1566
        %1644 = vst.msk [vmem:[#allocation3 + $0xa0] sm:$0xff] %vm1623, %v1568
        %1645 = vst.msk [vmem:[#allocation3 + $0xa8] sm:$0xff] %vm1623, %v1570
        %1646 = vst.msk [vmem:[#allocation3 + $0xb0] sm:$0xff] %vm1623, %v1572
        %1647 = vst.msk [vmem:[#allocation3 + $0xb8] sm:$0xff] %vm1623, %v1574
        %1648 = vst.msk [vmem:[#allocation3 + $0xc0] sm:$0xff] %vm1623, %v1576
        %1649 = vst.msk [vmem:[#allocation3 + $0xc8] sm:$0xff] %vm1623, %v1578
        %1650 = vst.msk [vmem:[#allocation3 + $0xd0] sm:$0xff] %vm1623, %v1580
        %1651 = vst.msk [vmem:[#allocation3 + $0xd8] sm:$0xff] %vm1623, %v1582
        %1652 = vst.msk [vmem:[#allocation3 + $0xe0] sm:$0xff] %vm1623, %v1584
        %1653 = vst.msk [vmem:[#allocation3 + $0xe8] sm:$0xff] %vm1623, %v1586
        %1654 = vst.msk [vmem:[#allocation3 + $0xf0] sm:$0xff] %vm1623, %v1588
        %1655 = vst.msk [vmem:[#allocation3 + $0xf8] sm:$0xff] %vm1623, %v1590
        %v1656 = vld [vmem:[%s435 + $0x2] sm:$0xff]
        %v1657 = vld [vmem:[%s435 + $0xa] sm:$0xff]
        %v1658 = vld [vmem:[%s435 + $0x1a] sm:$0xff]
        %v1659 = vld [vmem:[%s435 + $0x22] sm:$0xff]
        %v1660 = vld [vmem:[%s435 + $0x32] sm:$0xff]
        %v1661 = vld [vmem:[%s435 + $0x3a] sm:$0xff]
        %v1662 = vld [vmem:[%s435 + $0x4a] sm:$0xff]
        %v1663 = vld [vmem:[%s435 + $0x52] sm:$0xff]
        %v1664 = vld [vmem:[%s435 + $0x62] sm:$0xff]
        %v1665 = vld [vmem:[%s435 + $0x6a] sm:$0xff]
        %v1666 = vld [vmem:[%s435 + $0x7a] sm:$0xff]
        %v1667 = vld [vmem:[%s435 + $0x82] sm:$0xff]
        %v1668 = vld [vmem:[%s435 + $0x92] sm:$0xff]
        %v1669 = vld [vmem:[%s435 + $0x9a] sm:$0xff]
        %v1670 = vld [vmem:[%s435 + $0xaa] sm:$0xff]
        %v1671 = vld [vmem:[%s435 + $0xb2] sm:$0xff]
        %v1672 = vld [vmem:[%s435 + $0xc2] sm:$0xff]
        %v1673 = vld [vmem:[%s435 + $0xca] sm:$0xff]
        %v1674 = vld [vmem:[%s435 + $0xda] sm:$0xff]
        %v1675 = vld [vmem:[%s435 + $0xe2] sm:$0xff]
        %v1676 = vld [vmem:[%s435 + $0xf2] sm:$0xff]
        %v1677 = vld [vmem:[%s435 + $0xfa] sm:$0xff]
        %v1678 = vld [vmem:[%s435 + $0x10a] sm:$0xff]
        %v1679 = vld [vmem:[%s435 + $0x112] sm:$0xff]
        %v1680 = vld [vmem:[%s435 + $0x122] sm:$0xff]
        %v1681 = vld [vmem:[%s435 + $0x12a] sm:$0xff]
        %v1682 = vld [vmem:[%s435 + $0x13a] sm:$0xff]
        %v1683 = vld [vmem:[%s435 + $0x142] sm:$0xff]
        %v1684 = vld [vmem:[%s435 + $0x152] sm:$0xff]
        %v1685 = vld [vmem:[%s435 + $0x15a] sm:$0xff]
        %v1686 = vld [vmem:[%s435 + $0x16a] sm:$0xff]
        %v1687 = vld [vmem:[%s435 + $0x172] sm:$0xff]
        %v1688 = vld [vmem:[%s435 + $0x1b2] sm:$0xff]
        %v1689 = vld [vmem:[%s435 + $0x1ba] sm:$0xff]
        %v1690 = vld [vmem:[%s435 + $0x1ca] sm:$0xff]
        %v1691 = vld [vmem:[%s435 + $0x1d2] sm:$0xff]
        %v1692 = vld [vmem:[%s435 + $0x1e2] sm:$0xff]
        %v1693 = vld [vmem:[%s435 + $0x1ea] sm:$0xff]
        %v1694 = vld [vmem:[%s435 + $0x1fa] sm:$0xff]
        %v1695 = vld [vmem:[%s435 + $0x202] sm:$0xff]
        %v1696 = vld [vmem:[%s435 + $0x212] sm:$0xff]
        %v1697 = vld [vmem:[%s435 + $0x21a] sm:$0xff]
        %v1698 = vld [vmem:[%s435 + $0x22a] sm:$0xff]
        %v1699 = vld [vmem:[%s435 + $0x232] sm:$0xff]
        %v1700 = vld [vmem:[%s435 + $0x242] sm:$0xff]
        %v1701 = vld [vmem:[%s435 + $0x24a] sm:$0xff]
        %v1702 = vld [vmem:[%s435 + $0x25a] sm:$0xff]
        %v1703 = vld [vmem:[%s435 + $0x262] sm:$0xff]
        %v1704 = vld [vmem:[%s435 + $0x272] sm:$0xff]
        %v1705 = vld [vmem:[%s435 + $0x27a] sm:$0xff]
        %v1706 = vld [vmem:[%s435 + $0x28a] sm:$0xff]
        %v1707 = vld [vmem:[%s435 + $0x292] sm:$0xff]
        %v1708 = vld [vmem:[%s435 + $0x2a2] sm:$0xff]
        %v1709 = vld [vmem:[%s435 + $0x2aa] sm:$0xff]
        %v1710 = vld [vmem:[%s435 + $0x2ba] sm:$0xff]
        %v1711 = vld [vmem:[%s435 + $0x2c2] sm:$0xff]
        %v1712 = vld [vmem:[%s435 + $0x2d2] sm:$0xff]
        %v1713 = vld [vmem:[%s435 + $0x2da] sm:$0xff]
        %v1714 = vld [vmem:[%s435 + $0x2ea] sm:$0xff]
        %v1715 = vld [vmem:[%s435 + $0x2f2] sm:$0xff]
        %v1716 = vld [vmem:[%s435 + $0x302] sm:$0xff]
        %v1717 = vld [vmem:[%s435 + $0x30a] sm:$0xff]
        %v1718 = vld [vmem:[%s435 + $0x31a] sm:$0xff]
        %v1719 = vld [vmem:[%s435 + $0x322] sm:$0xff]
        %v1720 = vpack.c.bf16 %v1657, %v1656
        %v1721 = vpack.c.bf16 %v1659, %v1658
        %v1722 = vpack.c.bf16 %v1661, %v1660
        %v1723 = vpack.c.bf16 %v1663, %v1662
        %v1724 = vpack.c.bf16 %v1665, %v1664
        %v1725 = vpack.c.bf16 %v1667, %v1666
        %v1726 = vpack.c.bf16 %v1669, %v1668
        %v1727 = vpack.c.bf16 %v1671, %v1670
        %v1728 = vpack.c.bf16 %v1673, %v1672
        %v1729 = vpack.c.bf16 %v1675, %v1674
        %v1730 = vpack.c.bf16 %v1677, %v1676
        %v1731 = vpack.c.bf16 %v1679, %v1678
        %v1732 = vpack.c.bf16 %v1681, %v1680
        %v1733 = vpack.c.bf16 %v1683, %v1682
        %v1734 = vpack.c.bf16 %v1685, %v1684
        %v1735 = vpack.c.bf16 %v1687, %v1686
        %v1736 = vpack.c.bf16 %v1689, %v1688
        %v1737 = vpack.c.bf16 %v1691, %v1690
        %v1738 = vpack.c.bf16 %v1693, %v1692
        %v1739 = vpack.c.bf16 %v1695, %v1694
        %v1740 = vpack.c.bf16 %v1697, %v1696
        %v1741 = vpack.c.bf16 %v1699, %v1698
        %v1742 = vpack.c.bf16 %v1701, %v1700
        %v1743 = vpack.c.bf16 %v1703, %v1702
        %v1744 = vpack.c.bf16 %v1705, %v1704
        %v1745 = vpack.c.bf16 %v1707, %v1706
        %v1746 = vpack.c.bf16 %v1709, %v1708
        %v1747 = vpack.c.bf16 %v1711, %v1710
        %v1748 = vpack.c.bf16 %v1713, %v1712
        %v1749 = vpack.c.bf16 %v1715, %v1714
        %v1750 = vpack.c.bf16 %v1717, %v1716
        %v1751 = vpack.c.bf16 %v1719, %v1718
        %1784 = vrot.lane.b32.xlu0 %v1720, 15
        %v1785 = vpop.permute.xlu0 %1784
        %1786 = vrot.lane.b32.xlu0 %v1721, 15
        %v1787 = vpop.permute.xlu0 %1786
        %1788 = vrot.lane.b32.xlu0 %v1722, 15
        %v1789 = vpop.permute.xlu0 %1788
        %1790 = vrot.lane.b32.xlu0 %v1723, 15
        %v1791 = vpop.permute.xlu0 %1790
        %1792 = vrot.lane.b32.xlu0 %v1724, 15
        %v1793 = vpop.permute.xlu0 %1792
        %1794 = vrot.lane.b32.xlu0 %v1725, 15
        %v1795 = vpop.permute.xlu0 %1794
        %1796 = vrot.lane.b32.xlu0 %v1726, 15
        %v1797 = vpop.permute.xlu0 %1796
        %1798 = vrot.lane.b32.xlu0 %v1727, 15
        %v1799 = vpop.permute.xlu0 %1798
        %1800 = vrot.lane.b32.xlu0 %v1728, 15
        %v1801 = vpop.permute.xlu0 %1800
        %1802 = vrot.lane.b32.xlu0 %v1729, 15
        %v1803 = vpop.permute.xlu0 %1802
        %1804 = vrot.lane.b32.xlu0 %v1730, 15
        %v1805 = vpop.permute.xlu0 %1804
        %1806 = vrot.lane.b32.xlu0 %v1731, 15
        %v1807 = vpop.permute.xlu0 %1806
        %1808 = vrot.lane.b32.xlu0 %v1732, 15
        %v1809 = vpop.permute.xlu0 %1808
        %1810 = vrot.lane.b32.xlu0 %v1733, 15
        %v1811 = vpop.permute.xlu0 %1810
        %1812 = vrot.lane.b32.xlu0 %v1734, 15
        %v1813 = vpop.permute.xlu0 %1812
        %1814 = vrot.lane.b32.xlu0 %v1735, 15
        %v1815 = vpop.permute.xlu0 %1814
        %1816 = vrot.lane.b32.xlu0 %v1736, 15
        %v1817 = vpop.permute.xlu0 %1816
        %1818 = vrot.lane.b32.xlu0 %v1737, 15
        %v1819 = vpop.permute.xlu0 %1818
        %1820 = vrot.lane.b32.xlu0 %v1738, 15
        %v1821 = vpop.permute.xlu0 %1820
        %1822 = vrot.lane.b32.xlu0 %v1739, 15
        %v1823 = vpop.permute.xlu0 %1822
        %1824 = vrot.lane.b32.xlu0 %v1740, 15
        %v1825 = vpop.permute.xlu0 %1824
        %1826 = vrot.lane.b32.xlu0 %v1741, 15
        %v1827 = vpop.permute.xlu0 %1826
        %1828 = vrot.lane.b32.xlu0 %v1742, 15
        %v1829 = vpop.permute.xlu0 %1828
        %1830 = vrot.lane.b32.xlu0 %v1743, 15
        %v1831 = vpop.permute.xlu0 %1830
        %1832 = vrot.lane.b32.xlu0 %v1744, 15
        %v1833 = vpop.permute.xlu0 %1832
        %1834 = vrot.lane.b32.xlu0 %v1745, 15
        %v1835 = vpop.permute.xlu0 %1834
        %1836 = vrot.lane.b32.xlu0 %v1746, 15
        %v1837 = vpop.permute.xlu0 %1836
        %1838 = vrot.lane.b32.xlu0 %v1747, 15
        %v1839 = vpop.permute.xlu0 %1838
        %1840 = vrot.lane.b32.xlu0 %v1748, 15
        %v1841 = vpop.permute.xlu0 %1840
        %1842 = vrot.lane.b32.xlu0 %v1749, 15
        %v1843 = vpop.permute.xlu0 %1842
        %1844 = vrot.lane.b32.xlu0 %v1750, 15
        %v1845 = vpop.permute.xlu0 %1844
        %1846 = vrot.lane.b32.xlu0 %v1751, 15
        %v1847 = vpop.permute.xlu0 %1846
        %vm1880 = vcmask 146552
        %1881 = vst.msk [vmem:[#allocation3] sm:$0xff] %vm1880, %v1785
        %1882 = vst.msk [vmem:[#allocation3 + $0x8] sm:$0xff] %vm1880, %v1787
        %1883 = vst.msk [vmem:[#allocation3 + $0x10] sm:$0xff] %vm1880, %v1789
        %1884 = vst.msk [vmem:[#allocation3 + $0x18] sm:$0xff] %vm1880, %v1791
        %1885 = vst.msk [vmem:[#allocation3 + $0x20] sm:$0xff] %vm1880, %v1793
        %1886 = vst.msk [vmem:[#allocation3 + $0x28] sm:$0xff] %vm1880, %v1795
        %1887 = vst.msk [vmem:[#allocation3 + $0x30] sm:$0xff] %vm1880, %v1797
        %1888 = vst.msk [vmem:[#allocation3 + $0x38] sm:$0xff] %vm1880, %v1799
        %1889 = vst.msk [vmem:[#allocation3 + $0x40] sm:$0xff] %vm1880, %v1801
        %1890 = vst.msk [vmem:[#allocation3 + $0x48] sm:$0xff] %vm1880, %v1803
        %1891 = vst.msk [vmem:[#allocation3 + $0x50] sm:$0xff] %vm1880, %v1805
        %1892 = vst.msk [vmem:[#allocation3 + $0x58] sm:$0xff] %vm1880, %v1807
        %1893 = vst.msk [vmem:[#allocation3 + $0x60] sm:$0xff] %vm1880, %v1809
        %1894 = vst.msk [vmem:[#allocation3 + $0x68] sm:$0xff] %vm1880, %v1811
        %1895 = vst.msk [vmem:[#allocation3 + $0x70] sm:$0xff] %vm1880, %v1813
        %1896 = vst.msk [vmem:[#allocation3 + $0x78] sm:$0xff] %vm1880, %v1815
        %1897 = vst.msk [vmem:[#allocation3 + $0x80] sm:$0xff] %vm1880, %v1817
        %1898 = vst.msk [vmem:[#allocation3 + $0x88] sm:$0xff] %vm1880, %v1819
        %1899 = vst.msk [vmem:[#allocation3 + $0x90] sm:$0xff] %vm1880, %v1821
        %1900 = vst.msk [vmem:[#allocation3 + $0x98] sm:$0xff] %vm1880, %v1823
        %1901 = vst.msk [vmem:[#allocation3 + $0xa0] sm:$0xff] %vm1880, %v1825
        %1902 = vst.msk [vmem:[#allocation3 + $0xa8] sm:$0xff] %vm1880, %v1827
        %1903 = vst.msk [vmem:[#allocation3 + $0xb0] sm:$0xff] %vm1880, %v1829
        %1904 = vst.msk [vmem:[#allocation3 + $0xb8] sm:$0xff] %vm1880, %v1831
        %1905 = vst.msk [vmem:[#allocation3 + $0xc0] sm:$0xff] %vm1880, %v1833
        %1906 = vst.msk [vmem:[#allocation3 + $0xc8] sm:$0xff] %vm1880, %v1835
        %1907 = vst.msk [vmem:[#allocation3 + $0xd0] sm:$0xff] %vm1880, %v1837
        %1908 = vst.msk [vmem:[#allocation3 + $0xd8] sm:$0xff] %vm1880, %v1839
        %1909 = vst.msk [vmem:[#allocation3 + $0xe0] sm:$0xff] %vm1880, %v1841
        %1910 = vst.msk [vmem:[#allocation3 + $0xe8] sm:$0xff] %vm1880, %v1843
        %1911 = vst.msk [vmem:[#allocation3 + $0xf0] sm:$0xff] %vm1880, %v1845
        %1912 = vst.msk [vmem:[#allocation3 + $0xf8] sm:$0xff] %vm1880, %v1847
        %s1913 = scalar_lea.vmem [#allocation2], 48
        %v1914 = vld [vmem:[%s1913] sm:$0xff]
        %v1915 = vld [vmem:[%s1913 + $0x8] sm:$0xff]
        %v1916 = vld [vmem:[%s1913 + $0x18] sm:$0xff]
        %v1917 = vld [vmem:[%s1913 + $0x20] sm:$0xff]
        %v1918 = vld [vmem:[%s1913 + $0x30] sm:$0xff]
        %v1919 = vld [vmem:[%s1913 + $0x38] sm:$0xff]
        %v1920 = vld [vmem:[%s1913 + $0x48] sm:$0xff]
        %v1921 = vld [vmem:[%s1913 + $0x50] sm:$0xff]
        %v1922 = vld [vmem:[%s1913 + $0x60] sm:$0xff]
        %v1923 = vld [vmem:[%s1913 + $0x68] sm:$0xff]
        %v1924 = vld [vmem:[%s1913 + $0x78] sm:$0xff]
        %v1925 = vld [vmem:[%s1913 + $0x80] sm:$0xff]
        %v1926 = vld [vmem:[%s1913 + $0x90] sm:$0xff]
        %v1927 = vld [vmem:[%s1913 + $0x98] sm:$0xff]
        %v1928 = vld [vmem:[%s1913 + $0xa8] sm:$0xff]
        %v1929 = vld [vmem:[%s1913 + $0xb0] sm:$0xff]
        %v1930 = vld [vmem:[%s1913 + $0xc0] sm:$0xff]
        %v1931 = vld [vmem:[%s1913 + $0xc8] sm:$0xff]
        %v1932 = vld [vmem:[%s1913 + $0xd8] sm:$0xff]
        %v1933 = vld [vmem:[%s1913 + $0xe0] sm:$0xff]
        %v1934 = vld [vmem:[%s1913 + $0xf0] sm:$0xff]
        %v1935 = vld [vmem:[%s1913 + $0xf8] sm:$0xff]
        %v1936 = vld [vmem:[%s1913 + $0x108] sm:$0xff]
        %v1937 = vld [vmem:[%s1913 + $0x110] sm:$0xff]
        %v1938 = vld [vmem:[%s1913 + $0x120] sm:$0xff]
        %v1939 = vld [vmem:[%s1913 + $0x128] sm:$0xff]
        %v1940 = vld [vmem:[%s1913 + $0x138] sm:$0xff]
        %v1941 = vld [vmem:[%s1913 + $0x140] sm:$0xff]
        %v1942 = vld [vmem:[%s1913 + $0x150] sm:$0xff]
        %v1943 = vld [vmem:[%s1913 + $0x158] sm:$0xff]
        %v1944 = vld [vmem:[%s1913 + $0x168] sm:$0xff]
        %v1945 = vld [vmem:[%s1913 + $0x170] sm:$0xff]
        %v1946 = vld [vmem:[%s1913 + $0x1b0] sm:$0xff]
        %v1947 = vld [vmem:[%s1913 + $0x1b8] sm:$0xff]
        %v1948 = vld [vmem:[%s1913 + $0x1c8] sm:$0xff]
        %v1949 = vld [vmem:[%s1913 + $0x1d0] sm:$0xff]
        %v1950 = vld [vmem:[%s1913 + $0x1e0] sm:$0xff]
        %v1951 = vld [vmem:[%s1913 + $0x1e8] sm:$0xff]
        %v1952 = vld [vmem:[%s1913 + $0x1f8] sm:$0xff]
        %v1953 = vld [vmem:[%s1913 + $0x200] sm:$0xff]
        %v1954 = vld [vmem:[%s1913 + $0x210] sm:$0xff]
        %v1955 = vld [vmem:[%s1913 + $0x218] sm:$0xff]
        %v1956 = vld [vmem:[%s1913 + $0x228] sm:$0xff]
        %v1957 = vld [vmem:[%s1913 + $0x230] sm:$0xff]
        %v1958 = vld [vmem:[%s1913 + $0x240] sm:$0xff]
        %v1959 = vld [vmem:[%s1913 + $0x248] sm:$0xff]
        %v1960 = vld [vmem:[%s1913 + $0x258] sm:$0xff]
        %v1961 = vld [vmem:[%s1913 + $0x260] sm:$0xff]
        %v1962 = vld [vmem:[%s1913 + $0x270] sm:$0xff]
        %v1963 = vld [vmem:[%s1913 + $0x278] sm:$0xff]
        %v1964 = vld [vmem:[%s1913 + $0x288] sm:$0xff]
        %v1965 = vld [vmem:[%s1913 + $0x290] sm:$0xff]
        %v1966 = vld [vmem:[%s1913 + $0x2a0] sm:$0xff]
        %v1967 = vld [vmem:[%s1913 + $0x2a8] sm:$0xff]
        %v1968 = vld [vmem:[%s1913 + $0x2b8] sm:$0xff]
        %v1969 = vld [vmem:[%s1913 + $0x2c0] sm:$0xff]
        %v1970 = vld [vmem:[%s1913 + $0x2d0] sm:$0xff]
        %v1971 = vld [vmem:[%s1913 + $0x2d8] sm:$0xff]
        %v1972 = vld [vmem:[%s1913 + $0x2e8] sm:$0xff]
        %v1973 = vld [vmem:[%s1913 + $0x2f0] sm:$0xff]
        %v1974 = vld [vmem:[%s1913 + $0x300] sm:$0xff]
        %v1975 = vld [vmem:[%s1913 + $0x308] sm:$0xff]
        %v1976 = vld [vmem:[%s1913 + $0x318] sm:$0xff]
        %v1977 = vld [vmem:[%s1913 + $0x320] sm:$0xff]
        %v1978 = vpack.c.bf16 %v1915, %v1914
        %v1979 = vpack.c.bf16 %v1917, %v1916
        %v1980 = vpack.c.bf16 %v1919, %v1918
        %v1981 = vpack.c.bf16 %v1921, %v1920
        %v1982 = vpack.c.bf16 %v1923, %v1922
        %v1983 = vpack.c.bf16 %v1925, %v1924
        %v1984 = vpack.c.bf16 %v1927, %v1926
        %v1985 = vpack.c.bf16 %v1929, %v1928
        %v1986 = vpack.c.bf16 %v1931, %v1930
        %v1987 = vpack.c.bf16 %v1933, %v1932
        %v1988 = vpack.c.bf16 %v1935, %v1934
        %v1989 = vpack.c.bf16 %v1937, %v1936
        %v1990 = vpack.c.bf16 %v1939, %v1938
        %v1991 = vpack.c.bf16 %v1941, %v1940
        %v1992 = vpack.c.bf16 %v1943, %v1942
        %v1993 = vpack.c.bf16 %v1945, %v1944
        %v1994 = vpack.c.bf16 %v1947, %v1946
        %v1995 = vpack.c.bf16 %v1949, %v1948
        %v1996 = vpack.c.bf16 %v1951, %v1950
        %v1997 = vpack.c.bf16 %v1953, %v1952
        %v1998 = vpack.c.bf16 %v1955, %v1954
        %v1999 = vpack.c.bf16 %v1957, %v1956
        %v2000 = vpack.c.bf16 %v1959, %v1958
        %v2001 = vpack.c.bf16 %v1961, %v1960
        %v2002 = vpack.c.bf16 %v1963, %v1962
        %v2003 = vpack.c.bf16 %v1965, %v1964
        %v2004 = vpack.c.bf16 %v1967, %v1966
        %v2005 = vpack.c.bf16 %v1969, %v1968
        %v2006 = vpack.c.bf16 %v1971, %v1970
        %v2007 = vpack.c.bf16 %v1973, %v1972
        %v2008 = vpack.c.bf16 %v1975, %v1974
        %v2009 = vpack.c.bf16 %v1977, %v1976
        %2042 = vrot.lane.b32.xlu0 %v1978, 18
        %v2043 = vpop.permute.xlu0 %2042
        %2044 = vrot.lane.b32.xlu0 %v1979, 18
        %v2045 = vpop.permute.xlu0 %2044
        %2046 = vrot.lane.b32.xlu0 %v1980, 18
        %v2047 = vpop.permute.xlu0 %2046
        %2048 = vrot.lane.b32.xlu0 %v1981, 18
        %v2049 = vpop.permute.xlu0 %2048
        %2050 = vrot.lane.b32.xlu0 %v1982, 18
        %v2051 = vpop.permute.xlu0 %2050
        %2052 = vrot.lane.b32.xlu0 %v1983, 18
        %v2053 = vpop.permute.xlu0 %2052
        %2054 = vrot.lane.b32.xlu0 %v1984, 18
        %v2055 = vpop.permute.xlu0 %2054
        %2056 = vrot.lane.b32.xlu0 %v1985, 18
        %v2057 = vpop.permute.xlu0 %2056
        %2058 = vrot.lane.b32.xlu0 %v1986, 18
        %v2059 = vpop.permute.xlu0 %2058
        %2060 = vrot.lane.b32.xlu0 %v1987, 18
        %v2061 = vpop.permute.xlu0 %2060
        %2062 = vrot.lane.b32.xlu0 %v1988, 18
        %v2063 = vpop.permute.xlu0 %2062
        %2064 = vrot.lane.b32.xlu0 %v1989, 18
        %v2065 = vpop.permute.xlu0 %2064
        %2066 = vrot.lane.b32.xlu0 %v1990, 18
        %v2067 = vpop.permute.xlu0 %2066
        %2068 = vrot.lane.b32.xlu0 %v1991, 18
        %v2069 = vpop.permute.xlu0 %2068
        %2070 = vrot.lane.b32.xlu0 %v1992, 18
        %v2071 = vpop.permute.xlu0 %2070
        %2072 = vrot.lane.b32.xlu0 %v1993, 18
        %v2073 = vpop.permute.xlu0 %2072
        %2074 = vrot.lane.b32.xlu0 %v1994, 18
        %v2075 = vpop.permute.xlu0 %2074
        %2076 = vrot.lane.b32.xlu0 %v1995, 18
        %v2077 = vpop.permute.xlu0 %2076
        %2078 = vrot.lane.b32.xlu0 %v1996, 18
        %v2079 = vpop.permute.xlu0 %2078
        %2080 = vrot.lane.b32.xlu0 %v1997, 18
        %v2081 = vpop.permute.xlu0 %2080
        %2082 = vrot.lane.b32.xlu0 %v1998, 18
        %v2083 = vpop.permute.xlu0 %2082
        %2084 = vrot.lane.b32.xlu0 %v1999, 18
        %v2085 = vpop.permute.xlu0 %2084
        %2086 = vrot.lane.b32.xlu0 %v2000, 18
        %v2087 = vpop.permute.xlu0 %2086
        %2088 = vrot.lane.b32.xlu0 %v2001, 18
        %v2089 = vpop.permute.xlu0 %2088
        %2090 = vrot.lane.b32.xlu0 %v2002, 18
        %v2091 = vpop.permute.xlu0 %2090
        %2092 = vrot.lane.b32.xlu0 %v2003, 18
        %v2093 = vpop.permute.xlu0 %2092
        %2094 = vrot.lane.b32.xlu0 %v2004, 18
        %v2095 = vpop.permute.xlu0 %2094
        %2096 = vrot.lane.b32.xlu0 %v2005, 18
        %v2097 = vpop.permute.xlu0 %2096
        %2098 = vrot.lane.b32.xlu0 %v2006, 18
        %v2099 = vpop.permute.xlu0 %2098
        %2100 = vrot.lane.b32.xlu0 %v2007, 18
        %v2101 = vpop.permute.xlu0 %2100
        %2102 = vrot.lane.b32.xlu0 %v2008, 18
        %v2103 = vpop.permute.xlu0 %2102
        %2104 = vrot.lane.b32.xlu0 %v2009, 18
        %v2105 = vpop.permute.xlu0 %2104
        %vm2138 = vcmask 171152
        %2139 = vst.msk [vmem:[#allocation3] sm:$0xff] %vm2138, %v2043
        %2140 = vst.msk [vmem:[#allocation3 + $0x8] sm:$0xff] %vm2138, %v2045
        %2141 = vst.msk [vmem:[#allocation3 + $0x10] sm:$0xff] %vm2138, %v2047
        %2142 = vst.msk [vmem:[#allocation3 + $0x18] sm:$0xff] %vm2138, %v2049
        %2143 = vst.msk [vmem:[#allocation3 + $0x20] sm:$0xff] %vm2138, %v2051
        %2144 = vst.msk [vmem:[#allocation3 + $0x28] sm:$0xff] %vm2138, %v2053
        %2145 = vst.msk [vmem:[#allocation3 + $0x30] sm:$0xff] %vm2138, %v2055
        %2146 = vst.msk [vmem:[#allocation3 + $0x38] sm:$0xff] %vm2138, %v2057
        %2147 = vst.msk [vmem:[#allocation3 + $0x40] sm:$0xff] %vm2138, %v2059
        %2148 = vst.msk [vmem:[#allocation3 + $0x48] sm:$0xff] %vm2138, %v2061
        %2149 = vst.msk [vmem:[#allocation3 + $0x50] sm:$0xff] %vm2138, %v2063
        %2150 = vst.msk [vmem:[#allocation3 + $0x58] sm:$0xff] %vm2138, %v2065
        %2151 = vst.msk [vmem:[#allocation3 + $0x60] sm:$0xff] %vm2138, %v2067
        %2152 = vst.msk [vmem:[#allocation3 + $0x68] sm:$0xff] %vm2138, %v2069
        %2153 = vst.msk [vmem:[#allocation3 + $0x70] sm:$0xff] %vm2138, %v2071
        %2154 = vst.msk [vmem:[#allocation3 + $0x78] sm:$0xff] %vm2138, %v2073
        %2155 = vst.msk [vmem:[#allocation3 + $0x80] sm:$0xff] %vm2138, %v2075
        %2156 = vst.msk [vmem:[#allocation3 + $0x88] sm:$0xff] %vm2138, %v2077
        %2157 = vst.msk [vmem:[#allocation3 + $0x90] sm:$0xff] %vm2138, %v2079
        %2158 = vst.msk [vmem:[#allocation3 + $0x98] sm:$0xff] %vm2138, %v2081
        %2159 = vst.msk [vmem:[#allocation3 + $0xa0] sm:$0xff] %vm2138, %v2083
        %2160 = vst.msk [vmem:[#allocation3 + $0xa8] sm:$0xff] %vm2138, %v2085
        %2161 = vst.msk [vmem:[#allocation3 + $0xb0] sm:$0xff] %vm2138, %v2087
        %2162 = vst.msk [vmem:[#allocation3 + $0xb8] sm:$0xff] %vm2138, %v2089
        %2163 = vst.msk [vmem:[#allocation3 + $0xc0] sm:$0xff] %vm2138, %v2091
        %2164 = vst.msk [vmem:[#allocation3 + $0xc8] sm:$0xff] %vm2138, %v2093
        %2165 = vst.msk [vmem:[#allocation3 + $0xd0] sm:$0xff] %vm2138, %v2095
        %2166 = vst.msk [vmem:[#allocation3 + $0xd8] sm:$0xff] %vm2138, %v2097
        %2167 = vst.msk [vmem:[#allocation3 + $0xe0] sm:$0xff] %vm2138, %v2099
        %2168 = vst.msk [vmem:[#allocation3 + $0xe8] sm:$0xff] %vm2138, %v2101
        %2169 = vst.msk [vmem:[#allocation3 + $0xf0] sm:$0xff] %vm2138, %v2103
        %2170 = vst.msk [vmem:[#allocation3 + $0xf8] sm:$0xff] %vm2138, %v2105
        %v2171 = vld [vmem:[%s1913 + $0x1] sm:$0xff]
        %v2172 = vld [vmem:[%s1913 + $0x9] sm:$0xff]
        %v2173 = vld [vmem:[%s1913 + $0x19] sm:$0xff]
        %v2174 = vld [vmem:[%s1913 + $0x21] sm:$0xff]
        %v2175 = vld [vmem:[%s1913 + $0x31] sm:$0xff]
        %v2176 = vld [vmem:[%s1913 + $0x39] sm:$0xff]
        %v2177 = vld [vmem:[%s1913 + $0x49] sm:$0xff]
        %v2178 = vld [vmem:[%s1913 + $0x51] sm:$0xff]
        %v2179 = vld [vmem:[%s1913 + $0x61] sm:$0xff]
        %v2180 = vld [vmem:[%s1913 + $0x69] sm:$0xff]
        %v2181 = vld [vmem:[%s1913 + $0x79] sm:$0xff]
        %v2182 = vld [vmem:[%s1913 + $0x81] sm:$0xff]
        %v2183 = vld [vmem:[%s1913 + $0x91] sm:$0xff]
        %v2184 = vld [vmem:[%s1913 + $0x99] sm:$0xff]
        %v2185 = vld [vmem:[%s1913 + $0xa9] sm:$0xff]
        %v2186 = vld [vmem:[%s1913 + $0xb1] sm:$0xff]
        %v2187 = vld [vmem:[%s1913 + $0xc1] sm:$0xff]
        %v2188 = vld [vmem:[%s1913 + $0xc9] sm:$0xff]
        %v2189 = vld [vmem:[%s1913 + $0xd9] sm:$0xff]
        %v2190 = vld [vmem:[%s1913 + $0xe1] sm:$0xff]
        %v2191 = vld [vmem:[%s1913 + $0xf1] sm:$0xff]
        %v2192 = vld [vmem:[%s1913 + $0xf9] sm:$0xff]
        %v2193 = vld [vmem:[%s1913 + $0x109] sm:$0xff]
        %v2194 = vld [vmem:[%s1913 + $0x111] sm:$0xff]
        %v2195 = vld [vmem:[%s1913 + $0x121] sm:$0xff]
        %v2196 = vld [vmem:[%s1913 + $0x129] sm:$0xff]
        %v2197 = vld [vmem:[%s1913 + $0x139] sm:$0xff]
        %v2198 = vld [vmem:[%s1913 + $0x141] sm:$0xff]
        %v2199 = vld [vmem:[%s1913 + $0x151] sm:$0xff]
        %v2200 = vld [vmem:[%s1913 + $0x159] sm:$0xff]
        %v2201 = vld [vmem:[%s1913 + $0x169] sm:$0xff]
        %v2202 = vld [vmem:[%s1913 + $0x171] sm:$0xff]
        %v2203 = vld [vmem:[%s1913 + $0x1b1] sm:$0xff]
        %v2204 = vld [vmem:[%s1913 + $0x1b9] sm:$0xff]
        %v2205 = vld [vmem:[%s1913 + $0x1c9] sm:$0xff]
        %v2206 = vld [vmem:[%s1913 + $0x1d1] sm:$0xff]
        %v2207 = vld [vmem:[%s1913 + $0x1e1] sm:$0xff]
        %v2208 = vld [vmem:[%s1913 + $0x1e9] sm:$0xff]
        %v2209 = vld [vmem:[%s1913 + $0x1f9] sm:$0xff]
        %v2210 = vld [vmem:[%s1913 + $0x201] sm:$0xff]
        %v2211 = vld [vmem:[%s1913 + $0x211] sm:$0xff]
        %v2212 = vld [vmem:[%s1913 + $0x219] sm:$0xff]
        %v2213 = vld [vmem:[%s1913 + $0x229] sm:$0xff]
        %v2214 = vld [vmem:[%s1913 + $0x231] sm:$0xff]
        %v2215 = vld [vmem:[%s1913 + $0x241] sm:$0xff]
        %v2216 = vld [vmem:[%s1913 + $0x249] sm:$0xff]
        %v2217 = vld [vmem:[%s1913 + $0x259] sm:$0xff]
        %v2218 = vld [vmem:[%s1913 + $0x261] sm:$0xff]
        %v2219 = vld [vmem:[%s1913 + $0x271] sm:$0xff]
        %v2220 = vld [vmem:[%s1913 + $0x279] sm:$0xff]
        %v2221 = vld [vmem:[%s1913 + $0x289] sm:$0xff]
        %v2222 = vld [vmem:[%s1913 + $0x291] sm:$0xff]
        %v2223 = vld [vmem:[%s1913 + $0x2a1] sm:$0xff]
        %v2224 = vld [vmem:[%s1913 + $0x2a9] sm:$0xff]
        %v2225 = vld [vmem:[%s1913 + $0x2b9] sm:$0xff]
        %v2226 = vld [vmem:[%s1913 + $0x2c1] sm:$0xff]
        %v2227 = vld [vmem:[%s1913 + $0x2d1] sm:$0xff]
        %v2228 = vld [vmem:[%s1913 + $0x2d9] sm:$0xff]
        %v2229 = vld [vmem:[%s1913 + $0x2e9] sm:$0xff]
        %v2230 = vld [vmem:[%s1913 + $0x2f1] sm:$0xff]
        %v2231 = vld [vmem:[%s1913 + $0x301] sm:$0xff]
        %v2232 = vld [vmem:[%s1913 + $0x309] sm:$0xff]
        %v2233 = vld [vmem:[%s1913 + $0x319] sm:$0xff]
        %v2234 = vld [vmem:[%s1913 + $0x321] sm:$0xff]
        %v2235 = vpack.c.bf16 %v2172, %v2171
        %v2236 = vpack.c.bf16 %v2174, %v2173
        %v2237 = vpack.c.bf16 %v2176, %v2175
        %v2238 = vpack.c.bf16 %v2178, %v2177
        %v2239 = vpack.c.bf16 %v2180, %v2179
        %v2240 = vpack.c.bf16 %v2182, %v2181
        %v2241 = vpack.c.bf16 %v2184, %v2183
        %v2242 = vpack.c.bf16 %v2186, %v2185
        %v2243 = vpack.c.bf16 %v2188, %v2187
        %v2244 = vpack.c.bf16 %v2190, %v2189
        %v2245 = vpack.c.bf16 %v2192, %v2191
        %v2246 = vpack.c.bf16 %v2194, %v2193
        %v2247 = vpack.c.bf16 %v2196, %v2195
        %v2248 = vpack.c.bf16 %v2198, %v2197
        %v2249 = vpack.c.bf16 %v2200, %v2199
        %v2250 = vpack.c.bf16 %v2202, %v2201
        %v2251 = vpack.c.bf16 %v2204, %v2203
        %v2252 = vpack.c.bf16 %v2206, %v2205
        %v2253 = vpack.c.bf16 %v2208, %v2207
        %v2254 = vpack.c.bf16 %v2210, %v2209
        %v2255 = vpack.c.bf16 %v2212, %v2211
        %v2256 = vpack.c.bf16 %v2214, %v2213
        %v2257 = vpack.c.bf16 %v2216, %v2215
        %v2258 = vpack.c.bf16 %v2218, %v2217
        %v2259 = vpack.c.bf16 %v2220, %v2219
        %v2260 = vpack.c.bf16 %v2222, %v2221
        %v2261 = vpack.c.bf16 %v2224, %v2223
        %v2262 = vpack.c.bf16 %v2226, %v2225
        %v2263 = vpack.c.bf16 %v2228, %v2227
        %v2264 = vpack.c.bf16 %v2230, %v2229
        %v2265 = vpack.c.bf16 %v2232, %v2231
        %v2266 = vpack.c.bf16 %v2234, %v2233
        %2299 = vrot.lane.b32.xlu0 %v2235, 21
        %v2300 = vpop.permute.xlu0 %2299
        %2301 = vrot.lane.b32.xlu0 %v2236, 21
        %v2302 = vpop.permute.xlu0 %2301
        %2303 = vrot.lane.b32.xlu0 %v2237, 21
        %v2304 = vpop.permute.xlu0 %2303
        %2305 = vrot.lane.b32.xlu0 %v2238, 21
        %v2306 = vpop.permute.xlu0 %2305
        %2307 = vrot.lane.b32.xlu0 %v2239, 21
        %v2308 = vpop.permute.xlu0 %2307
        %2309 = vrot.lane.b32.xlu0 %v2240, 21
        %v2310 = vpop.permute.xlu0 %2309
        %2311 = vrot.lane.b32.xlu0 %v2241, 21
        %v2312 = vpop.permute.xlu0 %2311
        %2313 = vrot.lane.b32.xlu0 %v2242, 21
        %v2314 = vpop.permute.xlu0 %2313
        %2315 = vrot.lane.b32.xlu0 %v2243, 21
        %v2316 = vpop.permute.xlu0 %2315
        %2317 = vrot.lane.b32.xlu0 %v2244, 21
        %v2318 = vpop.permute.xlu0 %2317
        %2319 = vrot.lane.b32.xlu0 %v2245, 21
        %v2320 = vpop.permute.xlu0 %2319
        %2321 = vrot.lane.b32.xlu0 %v2246, 21
        %v2322 = vpop.permute.xlu0 %2321
        %2323 = vrot.lane.b32.xlu0 %v2247, 21
        %v2324 = vpop.permute.xlu0 %2323
        %2325 = vrot.lane.b32.xlu0 %v2248, 21
        %v2326 = vpop.permute.xlu0 %2325
        %2327 = vrot.lane.b32.xlu0 %v2249, 21
        %v2328 = vpop.permute.xlu0 %2327
        %2329 = vrot.lane.b32.xlu0 %v2250, 21
        %v2330 = vpop.permute.xlu0 %2329
        %2331 = vrot.lane.b32.xlu0 %v2251, 21
        %v2332 = vpop.permute.xlu0 %2331
        %2333 = vrot.lane.b32.xlu0 %v2252, 21
        %v2334 = vpop.permute.xlu0 %2333
        %2335 = vrot.lane.b32.xlu0 %v2253, 21
        %v2336 = vpop.permute.xlu0 %2335
        %2337 = vrot.lane.b32.xlu0 %v2254, 21
        %v2338 = vpop.permute.xlu0 %2337
        %2339 = vrot.lane.b32.xlu0 %v2255, 21
        %v2340 = vpop.permute.xlu0 %2339
        %2341 = vrot.lane.b32.xlu0 %v2256, 21
        %v2342 = vpop.permute.xlu0 %2341
        %2343 = vrot.lane.b32.xlu0 %v2257, 21
        %v2344 = vpop.permute.xlu0 %2343
        %2345 = vrot.lane.b32.xlu0 %v2258, 21
        %v2346 = vpop.permute.xlu0 %2345
        %2347 = vrot.lane.b32.xlu0 %v2259, 21
        %v2348 = vpop.permute.xlu0 %2347
        %2349 = vrot.lane.b32.xlu0 %v2260, 21
        %v2350 = vpop.permute.xlu0 %2349
        %2351 = vrot.lane.b32.xlu0 %v2261, 21
        %v2352 = vpop.permute.xlu0 %2351
        %2353 = vrot.lane.b32.xlu0 %v2262, 21
        %v2354 = vpop.permute.xlu0 %2353
        %2355 = vrot.lane.b32.xlu0 %v2263, 21
        %v2356 = vpop.permute.xlu0 %2355
        %2357 = vrot.lane.b32.xlu0 %v2264, 21
        %v2358 = vpop.permute.xlu0 %2357
        %2359 = vrot.lane.b32.xlu0 %v2265, 21
        %v2360 = vpop.permute.xlu0 %2359
        %2361 = vrot.lane.b32.xlu0 %v2266, 21
        %v2362 = vpop.permute.xlu0 %2361
        %vm2395 = vcmask 195752
        %2396 = vst.msk [vmem:[#allocation3] sm:$0xff] %vm2395, %v2300
        %2397 = vst.msk [vmem:[#allocation3 + $0x8] sm:$0xff] %vm2395, %v2302
        %2398 = vst.msk [vmem:[#allocation3 + $0x10] sm:$0xff] %vm2395, %v2304
        %2399 = vst.msk [vmem:[#allocation3 + $0x18] sm:$0xff] %vm2395, %v2306
        %2400 = vst.msk [vmem:[#allocation3 + $0x20] sm:$0xff] %vm2395, %v2308
        %2401 = vst.msk [vmem:[#allocation3 + $0x28] sm:$0xff] %vm2395, %v2310
        %2402 = vst.msk [vmem:[#allocation3 + $0x30] sm:$0xff] %vm2395, %v2312
        %2403 = vst.msk [vmem:[#allocation3 + $0x38] sm:$0xff] %vm2395, %v2314
        %2404 = vst.msk [vmem:[#allocation3 + $0x40] sm:$0xff] %vm2395, %v2316
        %2405 = vst.msk [vmem:[#allocation3 + $0x48] sm:$0xff] %vm2395, %v2318
        %2406 = vst.msk [vmem:[#allocation3 + $0x50] sm:$0xff] %vm2395, %v2320
        %2407 = vst.msk [vmem:[#allocation3 + $0x58] sm:$0xff] %vm2395, %v2322
        %2408 = vst.msk [vmem:[#allocation3 + $0x60] sm:$0xff] %vm2395, %v2324
        %2409 = vst.msk [vmem:[#allocation3 + $0x68] sm:$0xff] %vm2395, %v2326
        %2410 = vst.msk [vmem:[#allocation3 + $0x70] sm:$0xff] %vm2395, %v2328
        %2411 = vst.msk [vmem:[#allocation3 + $0x78] sm:$0xff] %vm2395, %v2330
        %2412 = vst.msk [vmem:[#allocation3 + $0x80] sm:$0xff] %vm2395, %v2332
        %2413 = vst.msk [vmem:[#allocation3 + $0x88] sm:$0xff] %vm2395, %v2334
        %2414 = vst.msk [vmem:[#allocation3 + $0x90] sm:$0xff] %vm2395, %v2336
        %2415 = vst.msk [vmem:[#allocation3 + $0x98] sm:$0xff] %vm2395, %v2338
        %2416 = vst.msk [vmem:[#allocation3 + $0xa0] sm:$0xff] %vm2395, %v2340
        %2417 = vst.msk [vmem:[#allocation3 + $0xa8] sm:$0xff] %vm2395, %v2342
        %2418 = vst.msk [vmem:[#allocation3 + $0xb0] sm:$0xff] %vm2395, %v2344
        %2419 = vst.msk [vmem:[#allocation3 + $0xb8] sm:$0xff] %vm2395, %v2346
        %2420 = vst.msk [vmem:[#allocation3 + $0xc0] sm:$0xff] %vm2395, %v2348
        %2421 = vst.msk [vmem:[#allocation3 + $0xc8] sm:$0xff] %vm2395, %v2350
        %2422 = vst.msk [vmem:[#allocation3 + $0xd0] sm:$0xff] %vm2395, %v2352
        %2423 = vst.msk [vmem:[#allocation3 + $0xd8] sm:$0xff] %vm2395, %v2354
        %2424 = vst.msk [vmem:[#allocation3 + $0xe0] sm:$0xff] %vm2395, %v2356
        %2425 = vst.msk [vmem:[#allocation3 + $0xe8] sm:$0xff] %vm2395, %v2358
        %2426 = vst.msk [vmem:[#allocation3 + $0xf0] sm:$0xff] %vm2395, %v2360
        %2427 = vst.msk [vmem:[#allocation3 + $0xf8] sm:$0xff] %vm2395, %v2362
        %v2428 = vld [vmem:[%s1913 + $0x2] sm:$0xff]
        %v2429 = vld [vmem:[%s1913 + $0xa] sm:$0xff]
        %v2430 = vld [vmem:[%s1913 + $0x1a] sm:$0xff]
        %v2431 = vld [vmem:[%s1913 + $0x22] sm:$0xff]
        %v2432 = vld [vmem:[%s1913 + $0x32] sm:$0xff]
        %v2433 = vld [vmem:[%s1913 + $0x3a] sm:$0xff]
        %v2434 = vld [vmem:[%s1913 + $0x4a] sm:$0xff]
        %v2435 = vld [vmem:[%s1913 + $0x52] sm:$0xff]
        %v2436 = vld [vmem:[%s1913 + $0x62] sm:$0xff]
        %v2437 = vld [vmem:[%s1913 + $0x6a] sm:$0xff]
        %v2438 = vld [vmem:[%s1913 + $0x7a] sm:$0xff]
        %v2439 = vld [vmem:[%s1913 + $0x82] sm:$0xff]
        %v2440 = vld [vmem:[%s1913 + $0x92] sm:$0xff]
        %v2441 = vld [vmem:[%s1913 + $0x9a] sm:$0xff]
        %v2442 = vld [vmem:[%s1913 + $0xaa] sm:$0xff]
        %v2443 = vld [vmem:[%s1913 + $0xb2] sm:$0xff]
        %v2444 = vld [vmem:[%s1913 + $0xc2] sm:$0xff]
        %v2445 = vld [vmem:[%s1913 + $0xca] sm:$0xff]
        %v2446 = vld [vmem:[%s1913 + $0xda] sm:$0xff]
        %v2447 = vld [vmem:[%s1913 + $0xe2] sm:$0xff]
        %v2448 = vld [vmem:[%s1913 + $0xf2] sm:$0xff]
        %v2449 = vld [vmem:[%s1913 + $0xfa] sm:$0xff]
        %v2450 = vld [vmem:[%s1913 + $0x10a] sm:$0xff]
        %v2451 = vld [vmem:[%s1913 + $0x112] sm:$0xff]
        %v2452 = vld [vmem:[%s1913 + $0x122] sm:$0xff]
        %v2453 = vld [vmem:[%s1913 + $0x12a] sm:$0xff]
        %v2454 = vld [vmem:[%s1913 + $0x13a] sm:$0xff]
        %v2455 = vld [vmem:[%s1913 + $0x142] sm:$0xff]
        %v2456 = vld [vmem:[%s1913 + $0x152] sm:$0xff]
        %v2457 = vld [vmem:[%s1913 + $0x15a] sm:$0xff]
        %v2458 = vld [vmem:[%s1913 + $0x16a] sm:$0xff]
        %v2459 = vld [vmem:[%s1913 + $0x172] sm:$0xff]
        %v2460 = vld [vmem:[%s1913 + $0x1b2] sm:$0xff]
        %v2461 = vld [vmem:[%s1913 + $0x1ba] sm:$0xff]
        %v2462 = vld [vmem:[%s1913 + $0x1ca] sm:$0xff]
        %v2463 = vld [vmem:[%s1913 + $0x1d2] sm:$0xff]
        %v2464 = vld [vmem:[%s1913 + $0x1e2] sm:$0xff]
        %v2465 = vld [vmem:[%s1913 + $0x1ea] sm:$0xff]
        %v2466 = vld [vmem:[%s1913 + $0x1fa] sm:$0xff]
        %v2467 = vld [vmem:[%s1913 + $0x202] sm:$0xff]
        %v2468 = vld [vmem:[%s1913 + $0x212] sm:$0xff]
        %v2469 = vld [vmem:[%s1913 + $0x21a] sm:$0xff]
        %v2470 = vld [vmem:[%s1913 + $0x22a] sm:$0xff]
        %v2471 = vld [vmem:[%s1913 + $0x232] sm:$0xff]
        %v2472 = vld [vmem:[%s1913 + $0x242] sm:$0xff]
        %v2473 = vld [vmem:[%s1913 + $0x24a] sm:$0xff]
        %v2474 = vld [vmem:[%s1913 + $0x25a] sm:$0xff]
        %v2475 = vld [vmem:[%s1913 + $0x262] sm:$0xff]
        %v2476 = vld [vmem:[%s1913 + $0x272] sm:$0xff]
        %v2477 = vld [vmem:[%s1913 + $0x27a] sm:$0xff]
        %v2478 = vld [vmem:[%s1913 + $0x28a] sm:$0xff]
        %v2479 = vld [vmem:[%s1913 + $0x292] sm:$0xff]
        %v2480 = vld [vmem:[%s1913 + $0x2a2] sm:$0xff]
        %v2481 = vld [vmem:[%s1913 + $0x2aa] sm:$0xff]
        %v2482 = vld [vmem:[%s1913 + $0x2ba] sm:$0xff]
        %v2483 = vld [vmem:[%s1913 + $0x2c2] sm:$0xff]
        %v2484 = vld [vmem:[%s1913 + $0x2d2] sm:$0xff]
        %v2485 = vld [vmem:[%s1913 + $0x2da] sm:$0xff]
        %v2486 = vld [vmem:[%s1913 + $0x2ea] sm:$0xff]
        %v2487 = vld [vmem:[%s1913 + $0x2f2] sm:$0xff]
        %v2488 = vld [vmem:[%s1913 + $0x302] sm:$0xff]
        %v2489 = vld [vmem:[%s1913 + $0x30a] sm:$0xff]
        %v2490 = vld [vmem:[%s1913 + $0x31a] sm:$0xff]
        %v2491 = vld [vmem:[%s1913 + $0x322] sm:$0xff]
        %v2492 = vpack.c.bf16 %v2429, %v2428
        %v2493 = vpack.c.bf16 %v2431, %v2430
        %v2494 = vpack.c.bf16 %v2433, %v2432
        %v2495 = vpack.c.bf16 %v2435, %v2434
        %v2496 = vpack.c.bf16 %v2437, %v2436
        %v2497 = vpack.c.bf16 %v2439, %v2438
        %v2498 = vpack.c.bf16 %v2441, %v2440
        %v2499 = vpack.c.bf16 %v2443, %v2442
        %v2500 = vpack.c.bf16 %v2445, %v2444
        %v2501 = vpack.c.bf16 %v2447, %v2446
        %v2502 = vpack.c.bf16 %v2449, %v2448
        %v2503 = vpack.c.bf16 %v2451, %v2450
        %v2504 = vpack.c.bf16 %v2453, %v2452
        %v2505 = vpack.c.bf16 %v2455, %v2454
        %v2506 = vpack.c.bf16 %v2457, %v2456
        %v2507 = vpack.c.bf16 %v2459, %v2458
        %v2508 = vpack.c.bf16 %v2461, %v2460
        %v2509 = vpack.c.bf16 %v2463, %v2462
        %v2510 = vpack.c.bf16 %v2465, %v2464
        %v2511 = vpack.c.bf16 %v2467, %v2466
        %v2512 = vpack.c.bf16 %v2469, %v2468
        %v2513 = vpack.c.bf16 %v2471, %v2470
        %v2514 = vpack.c.bf16 %v2473, %v2472
        %v2515 = vpack.c.bf16 %v2475, %v2474
        %v2516 = vpack.c.bf16 %v2477, %v2476
        %v2517 = vpack.c.bf16 %v2479, %v2478
        %v2518 = vpack.c.bf16 %v2481, %v2480
        %v2519 = vpack.c.bf16 %v2483, %v2482
        %v2520 = vpack.c.bf16 %v2485, %v2484
        %v2521 = vpack.c.bf16 %v2487, %v2486
        %v2522 = vpack.c.bf16 %v2489, %v2488
        %v2523 = vpack.c.bf16 %v2491, %v2490
        %2556 = vrot.lane.b32.xlu0 %v2492, 24
        %v2557 = vpop.permute.xlu0 %2556
        %2558 = vrot.lane.b32.xlu0 %v2493, 24
        %v2559 = vpop.permute.xlu0 %2558
        %2560 = vrot.lane.b32.xlu0 %v2494, 24
        %v2561 = vpop.permute.xlu0 %2560
        %2562 = vrot.lane.b32.xlu0 %v2495, 24
        %v2563 = vpop.permute.xlu0 %2562
        %2564 = vrot.lane.b32.xlu0 %v2496, 24
        %v2565 = vpop.permute.xlu0 %2564
        %2566 = vrot.lane.b32.xlu0 %v2497, 24
        %v2567 = vpop.permute.xlu0 %2566
        %2568 = vrot.lane.b32.xlu0 %v2498, 24
        %v2569 = vpop.permute.xlu0 %2568
        %2570 = vrot.lane.b32.xlu0 %v2499, 24
        %v2571 = vpop.permute.xlu0 %2570
        %2572 = vrot.lane.b32.xlu0 %v2500, 24
        %v2573 = vpop.permute.xlu0 %2572
        %2574 = vrot.lane.b32.xlu0 %v2501, 24
        %v2575 = vpop.permute.xlu0 %2574
        %2576 = vrot.lane.b32.xlu0 %v2502, 24
        %v2577 = vpop.permute.xlu0 %2576
        %2578 = vrot.lane.b32.xlu0 %v2503, 24
        %v2579 = vpop.permute.xlu0 %2578
        %2580 = vrot.lane.b32.xlu0 %v2504, 24
        %v2581 = vpop.permute.xlu0 %2580
        %2582 = vrot.lane.b32.xlu0 %v2505, 24
        %v2583 = vpop.permute.xlu0 %2582
        %2584 = vrot.lane.b32.xlu0 %v2506, 24
        %v2585 = vpop.permute.xlu0 %2584
        %2586 = vrot.lane.b32.xlu0 %v2507, 24
        %v2587 = vpop.permute.xlu0 %2586
        %2588 = vrot.lane.b32.xlu0 %v2508, 24
        %v2589 = vpop.permute.xlu0 %2588
        %2590 = vrot.lane.b32.xlu0 %v2509, 24
        %v2591 = vpop.permute.xlu0 %2590
        %2592 = vrot.lane.b32.xlu0 %v2510, 24
        %v2593 = vpop.permute.xlu0 %2592
        %2594 = vrot.lane.b32.xlu0 %v2511, 24
        %v2595 = vpop.permute.xlu0 %2594
        %2596 = vrot.lane.b32.xlu0 %v2512, 24
        %v2597 = vpop.permute.xlu0 %2596
        %2598 = vrot.lane.b32.xlu0 %v2513, 24
        %v2599 = vpop.permute.xlu0 %2598
        %2600 = vrot.lane.b32.xlu0 %v2514, 24
        %v2601 = vpop.permute.xlu0 %2600
        %2602 = vrot.lane.b32.xlu0 %v2515, 24
        %v2603 = vpop.permute.xlu0 %2602
        %2604 = vrot.lane.b32.xlu0 %v2516, 24
        %v2605 = vpop.permute.xlu0 %2604
        %2606 = vrot.lane.b32.xlu0 %v2517, 24
        %v2607 = vpop.permute.xlu0 %2606
        %2608 = vrot.lane.b32.xlu0 %v2518, 24
        %v2609 = vpop.permute.xlu0 %2608
        %2610 = vrot.lane.b32.xlu0 %v2519, 24
        %v2611 = vpop.permute.xlu0 %2610
        %2612 = vrot.lane.b32.xlu0 %v2520, 24
        %v2613 = vpop.permute.xlu0 %2612
        %2614 = vrot.lane.b32.xlu0 %v2521, 24
        %v2615 = vpop.permute.xlu0 %2614
        %2616 = vrot.lane.b32.xlu0 %v2522, 24
        %v2617 = vpop.permute.xlu0 %2616
        %2618 = vrot.lane.b32.xlu0 %v2523, 24
        %v2619 = vpop.permute.xlu0 %2618
        %vm2652 = vcmask 220352
        %2653 = vst.msk [vmem:[#allocation3] sm:$0xff] %vm2652, %v2557
        %2654 = vst.msk [vmem:[#allocation3 + $0x8] sm:$0xff] %vm2652, %v2559
        %2655 = vst.msk [vmem:[#allocation3 + $0x10] sm:$0xff] %vm2652, %v2561
        %2656 = vst.msk [vmem:[#allocation3 + $0x18] sm:$0xff] %vm2652, %v2563
        %2657 = vst.msk [vmem:[#allocation3 + $0x20] sm:$0xff] %vm2652, %v2565
        %2658 = vst.msk [vmem:[#allocation3 + $0x28] sm:$0xff] %vm2652, %v2567
        %2659 = vst.msk [vmem:[#allocation3 + $0x30] sm:$0xff] %vm2652, %v2569
        %2660 = vst.msk [vmem:[#allocation3 + $0x38] sm:$0xff] %vm2652, %v2571
        %2661 = vst.msk [vmem:[#allocation3 + $0x40] sm:$0xff] %vm2652, %v2573
        %2662 = vst.msk [vmem:[#allocation3 + $0x48] sm:$0xff] %vm2652, %v2575
        %2663 = vst.msk [vmem:[#allocation3 + $0x50] sm:$0xff] %vm2652, %v2577
        %2664 = vst.msk [vmem:[#allocation3 + $0x58] sm:$0xff] %vm2652, %v2579
        %2665 = vst.msk [vmem:[#allocation3 + $0x60] sm:$0xff] %vm2652, %v2581
        %2666 = vst.msk [vmem:[#allocation3 + $0x68] sm:$0xff] %vm2652, %v2583
        %2667 = vst.msk [vmem:[#allocation3 + $0x70] sm:$0xff] %vm2652, %v2585
        %2668 = vst.msk [vmem:[#allocation3 + $0x78] sm:$0xff] %vm2652, %v2587
        %2669 = vst.msk [vmem:[#allocation3 + $0x80] sm:$0xff] %vm2652, %v2589
        %2670 = vst.msk [vmem:[#allocation3 + $0x88] sm:$0xff] %vm2652, %v2591
        %2671 = vst.msk [vmem:[#allocation3 + $0x90] sm:$0xff] %vm2652, %v2593
        %2672 = vst.msk [vmem:[#allocation3 + $0x98] sm:$0xff] %vm2652, %v2595
        %2673 = vst.msk [vmem:[#allocation3 + $0xa0] sm:$0xff] %vm2652, %v2597
        %2674 = vst.msk [vmem:[#allocation3 + $0xa8] sm:$0xff] %vm2652, %v2599
        %2675 = vst.msk [vmem:[#allocation3 + $0xb0] sm:$0xff] %vm2652, %v2601
        %2676 = vst.msk [vmem:[#allocation3 + $0xb8] sm:$0xff] %vm2652, %v2603
        %2677 = vst.msk [vmem:[#allocation3 + $0xc0] sm:$0xff] %vm2652, %v2605
        %2678 = vst.msk [vmem:[#allocation3 + $0xc8] sm:$0xff] %vm2652, %v2607
        %2679 = vst.msk [vmem:[#allocation3 + $0xd0] sm:$0xff] %vm2652, %v2609
        %2680 = vst.msk [vmem:[#allocation3 + $0xd8] sm:$0xff] %vm2652, %v2611
        %2681 = vst.msk [vmem:[#allocation3 + $0xe0] sm:$0xff] %vm2652, %v2613
        %2682 = vst.msk [vmem:[#allocation3 + $0xe8] sm:$0xff] %vm2652, %v2615
        %2683 = vst.msk [vmem:[#allocation3 + $0xf0] sm:$0xff] %vm2652, %v2617
        %2684 = vst.msk [vmem:[#allocation3 + $0xf8] sm:$0xff] %vm2652, %v2619
        %v2685 = vld [vmem:[#allocation3] sm:$0xff]
        %v2686 = vld [vmem:[#allocation3 + $0x8] sm:$0xff]
        %v2687 = vld [vmem:[#allocation3 + $0x10] sm:$0xff]
        %v2688 = vld [vmem:[#allocation3 + $0x18] sm:$0xff]
        %v2689 = vld [vmem:[#allocation3 + $0x20] sm:$0xff]
        %v2690 = vld [vmem:[#allocation3 + $0x28] sm:$0xff]
        %v2691 = vld [vmem:[#allocation3 + $0x30] sm:$0xff]
        %v2692 = vld [vmem:[#allocation3 + $0x38] sm:$0xff]
        %v2693 = vld [vmem:[#allocation3 + $0x40] sm:$0xff]
        %v2694 = vld [vmem:[#allocation3 + $0x48] sm:$0xff]
        %v2695 = vld [vmem:[#allocation3 + $0x50] sm:$0xff]
        %v2696 = vld [vmem:[#allocation3 + $0x58] sm:$0xff]
        %v2697 = vld [vmem:[#allocation3 + $0x60] sm:$0xff]
        %v2698 = vld [vmem:[#allocation3 + $0x68] sm:$0xff]
        %v2699 = vld [vmem:[#allocation3 + $0x70] sm:$0xff]
        %v2700 = vld [vmem:[#allocation3 + $0x78] sm:$0xff]
        %v2701 = vld [vmem:[#allocation3 + $0x80] sm:$0xff]
        %v2702 = vld [vmem:[#allocation3 + $0x88] sm:$0xff]
        %v2703 = vld [vmem:[#allocation3 + $0x90] sm:$0xff]
        %v2704 = vld [vmem:[#allocation3 + $0x98] sm:$0xff]
        %v2705 = vld [vmem:[#allocation3 + $0xa0] sm:$0xff]
        %v2706 = vld [vmem:[#allocation3 + $0xa8] sm:$0xff]
        %v2707 = vld [vmem:[#allocation3 + $0xb0] sm:$0xff]
        %v2708 = vld [vmem:[#allocation3 + $0xb8] sm:$0xff]
        %v2709 = vld [vmem:[#allocation3 + $0xc0] sm:$0xff]
        %v2710 = vld [vmem:[#allocation3 + $0xc8] sm:$0xff]
        %v2711 = vld [vmem:[#allocation3 + $0xd0] sm:$0xff]
        %v2712 = vld [vmem:[#allocation3 + $0xd8] sm:$0xff]
        %v2713 = vld [vmem:[#allocation3 + $0xe0] sm:$0xff]
        %v2714 = vld [vmem:[#allocation3 + $0xe8] sm:$0xff]
        %v2715 = vld [vmem:[#allocation3 + $0xf0] sm:$0xff]
        %v2716 = vld [vmem:[#allocation3 + $0xf8] sm:$0xff]
        %v2717 = vld [vmem:[%s1] sm:$0xff]
        %v2718 = vld [vmem:[%s1 + $0x8] sm:$0xff]
        %v2719 = vld [vmem:[%s1 + $0x10] sm:$0xff]
        %v2720 = vld [vmem:[%s1 + $0x18] sm:$0xff]
        %v2721 = vld [vmem:[%s1 + $0x20] sm:$0xff]
        %v2722 = vld [vmem:[%s1 + $0x28] sm:$0xff]
        %v2723 = vld [vmem:[%s1 + $0x30] sm:$0xff]
        %v2724 = vld [vmem:[%s1 + $0x38] sm:$0xff]
        %v2725 = vld [vmem:[%s1 + $0x40] sm:$0xff]
        %v2726 = vld [vmem:[%s1 + $0x48] sm:$0xff]
        %v2727 = vld [vmem:[%s1 + $0x50] sm:$0xff]
        %v2728 = vld [vmem:[%s1 + $0x58] sm:$0xff]
        %v2729 = vld [vmem:[%s1 + $0x60] sm:$0xff]
        %v2730 = vld [vmem:[%s1 + $0x68] sm:$0xff]
        %v2731 = vld [vmem:[%s1 + $0x70] sm:$0xff]
        %v2732 = vld [vmem:[%s1 + $0x78] sm:$0xff]
        %v2749 = vunpack.c.l.b16 %v2717
        %v2750 = vunpack.c.h.b16 %v2717
        %v2751 = vunpack.c.l.b16 %v2718
        %v2752 = vunpack.c.h.b16 %v2718
        %v2753 = vunpack.c.l.b16 %v2719
        %v2754 = vunpack.c.h.b16 %v2719
        %v2755 = vunpack.c.l.b16 %v2720
        %v2756 = vunpack.c.h.b16 %v2720
        %v2757 = vunpack.c.l.b16 %v2721
        %v2758 = vunpack.c.h.b16 %v2721
        %v2759 = vunpack.c.l.b16 %v2722
        %v2760 = vunpack.c.h.b16 %v2722
        %v2761 = vunpack.c.l.b16 %v2723
        %v2762 = vunpack.c.h.b16 %v2723
        %v2763 = vunpack.c.l.b16 %v2724
        %v2764 = vunpack.c.h.b16 %v2724
        %v2765 = vunpack.c.l.b16 %v2725
        %v2766 = vunpack.c.h.b16 %v2725
        %v2767 = vunpack.c.l.b16 %v2726
        %v2768 = vunpack.c.h.b16 %v2726
        %v2769 = vunpack.c.l.b16 %v2727
        %v2770 = vunpack.c.h.b16 %v2727
        %v2771 = vunpack.c.l.b16 %v2728
        %v2772 = vunpack.c.h.b16 %v2728
        %v2773 = vunpack.c.l.b16 %v2729
        %v2774 = vunpack.c.h.b16 %v2729
        %v2775 = vunpack.c.l.b16 %v2730
        %v2776 = vunpack.c.h.b16 %v2730
        %v2777 = vunpack.c.l.b16 %v2731
        %v2778 = vunpack.c.h.b16 %v2731
        %v2779 = vunpack.c.l.b16 %v2732
        %v2780 = vunpack.c.h.b16 %v2732
        %v2781 = vpack.c.b16 %v2751, %v2749
        %v2782 = vpack.c.b16 %v2752, %v2750
        %v2783 = vpack.c.b16 %v2755, %v2753
        %v2784 = vpack.c.b16 %v2756, %v2754
        %v2785 = vpack.c.b16 %v2759, %v2757
        %v2786 = vpack.c.b16 %v2760, %v2758
        %v2787 = vpack.c.b16 %v2763, %v2761
        %v2788 = vpack.c.b16 %v2764, %v2762
        %v2789 = vpack.c.b16 %v2767, %v2765
        %v2790 = vpack.c.b16 %v2768, %v2766
        %v2791 = vpack.c.b16 %v2771, %v2769
        %v2792 = vpack.c.b16 %v2772, %v2770
        %v2793 = vpack.c.b16 %v2775, %v2773
        %v2794 = vpack.c.b16 %v2776, %v2774
        %v2795 = vpack.c.b16 %v2779, %v2777
        %v2796 = vpack.c.b16 %v2780, %v2778
        %2813 = vmatprep.subr.bf16.mxu0 %v2782
        %2814 = vmatpush1.bf16.msra.mxu0 %v2781
        %2815 = vmatprep.subr.bf16.mxu0 %v2784
        %2816 = vmatpush1.bf16.msra.mxu0 %v2783
        %2817 = vmatprep.subr.bf16.mxu0 %v2786
        %2818 = vmatpush1.bf16.msra.mxu0 %v2785
        %2819 = vmatprep.subr.bf16.mxu0 %v2788
        %2820 = vmatpush1.bf16.msra.mxu0 %v2787
        %2821 = vmatprep.subr.bf16.mxu0 %v2790
        %2822 = vmatpush1.bf16.msra.mxu0 %v2789
        %2823 = vmatprep.subr.bf16.mxu0 %v2792
        %2824 = vmatpush1.bf16.msra.mxu0 %v2791
        %2825 = vmatprep.subr.bf16.mxu0 %v2794
        %2826 = vmatpush1.bf16.msra.mxu0 %v2793
        %2827 = vmatprep.subr.bf16.mxu0 %v2796
        %2828 = vmatpush1.bf16.msra.mxu0 %v2795
        %2829 = vmatprep.subr.bf16.mxu0 0
        %2830 = vmatpush1.bf16.msra.mxu0 0
        %2831 = vmatprep.subr.bf16.mxu0 0
        %2832 = vmatpush1.bf16.msra.mxu0 0
        %2833 = vmatprep.subr.bf16.mxu0 0
        %2834 = vmatpush1.bf16.msra.mxu0 0
        %2835 = vmatprep.subr.bf16.mxu0 0
        %2836 = vmatpush1.bf16.msra.mxu0 0
        %2837 = vmatprep.subr.bf16.mxu0 0
        %2838 = vmatpush1.bf16.msra.mxu0 0
        %2839 = vmatprep.subr.bf16.mxu0 0
        %2840 = vmatpush1.bf16.msra.mxu0 0
        %2841 = vmatprep.subr.bf16.mxu0 0
        %2842 = vmatpush1.bf16.msra.mxu0 0
        %2843 = vmatprep.subr.bf16.mxu0 0
        %2844 = vmatpush1.bf16.msra.mxu0 0
        %2845 = vmatprep.mubr.bf16.mxu0 0
        %2846 = vmatmul.mubr.bf16.gmra.mrb[0].mxu0 %v2685
        %v2847 = vpop.f32.mrb[0].mxu0
        %v2848 = vadd.f32 0.0, %v2847
        %v2849 = vpop.f32.mrb[0].mxu0
        %v2850 = vadd.f32 0.0, %v2849
        %v2851 = vpop.f32.mrb[0].mxu0
        %v2852 = vadd.f32 0.0, %v2851
        %v2853 = vpop.f32.mrb[0].mxu0
        %v2854 = vadd.f32 0.0, %v2853
        %2855 = vmatprep.mubr.bf16.mxu0 0
        %2856 = vmatmul.mubr.bf16.gmra.mrb[0].mxu0 %v2686
        %v2857 = vpop.f32.mrb[0].mxu0
        %v2858 = vadd.f32 0.0, %v2857
        %v2859 = vpop.f32.mrb[0].mxu0
        %v2860 = vadd.f32 0.0, %v2859
        %v2861 = vpop.f32.mrb[0].mxu0
        %v2862 = vadd.f32 0.0, %v2861
        %v2863 = vpop.f32.mrb[0].mxu0
        %v2864 = vadd.f32 0.0, %v2863
        %2865 = vmatprep.mubr.bf16.mxu0 0
        %2866 = vmatmul.mubr.bf16.gmra.mrb[0].mxu0 %v2687
        %v2867 = vpop.f32.mrb[0].mxu0
        %v2868 = vadd.f32 0.0, %v2867
        %v2869 = vpop.f32.mrb[0].mxu0
        %v2870 = vadd.f32 0.0, %v2869
        %v2871 = vpop.f32.mrb[0].mxu0
        %v2872 = vadd.f32 0.0, %v2871
        %v2873 = vpop.f32.mrb[0].mxu0
        %v2874 = vadd.f32 0.0, %v2873
        %2875 = vmatprep.mubr.bf16.mxu0 0
        %2876 = vmatmul.mubr.bf16.gmra.mrb[0].mxu0 %v2688
        %v2877 = vpop.f32.mrb[0].mxu0
        %v2878 = vadd.f32 0.0, %v2877
        %v2879 = vpop.f32.mrb[0].mxu0
        %v2880 = vadd.f32 0.0, %v2879
        %v2881 = vpop.f32.mrb[0].mxu0
        %v2882 = vadd.f32 0.0, %v2881
        %v2883 = vpop.f32.mrb[0].mxu0
        %v2884 = vadd.f32 0.0, %v2883
        %2885 = vmatprep.mubr.bf16.mxu0 0
        %2886 = vmatmul.mubr.bf16.gmra.mrb[0].mxu0 %v2689
        %v2887 = vpop.f32.mrb[0].mxu0
        %v2888 = vadd.f32 0.0, %v2887
        %v2889 = vpop.f32.mrb[0].mxu0
        %v2890 = vadd.f32 0.0, %v2889
        %v2891 = vpop.f32.mrb[0].mxu0
        %v2892 = vadd.f32 0.0, %v2891
        %v2893 = vpop.f32.mrb[0].mxu0
        %v2894 = vadd.f32 0.0, %v2893
        %2895 = vmatprep.mubr.bf16.mxu0 0
        %2896 = vmatmul.mubr.bf16.gmra.mrb[0].mxu0 %v2690
        %v2897 = vpop.f32.mrb[0].mxu0
        %v2898 = vadd.f32 0.0, %v2897
        %v2899 = vpop.f32.mrb[0].mxu0
        %v2900 = vadd.f32 0.0, %v2899
        %v2901 = vpop.f32.mrb[0].mxu0
        %v2902 = vadd.f32 0.0, %v2901
        %v2903 = vpop.f32.mrb[0].mxu0
        %v2904 = vadd.f32 0.0, %v2903
        %2905 = vmatprep.mubr.bf16.mxu0 0
        %2906 = vmatmul.mubr.bf16.gmra.mrb[0].mxu0 %v2691
        %v2907 = vpop.f32.mrb[0].mxu0
        %v2908 = vadd.f32 0.0, %v2907
        %v2909 = vpop.f32.mrb[0].mxu0
        %v2910 = vadd.f32 0.0, %v2909
        %v2911 = vpop.f32.mrb[0].mxu0
        %v2912 = vadd.f32 0.0, %v2911
        %v2913 = vpop.f32.mrb[0].mxu0
        %v2914 = vadd.f32 0.0, %v2913
        %2915 = vmatprep.mubr.bf16.mxu0 0
        %2916 = vmatmul.mubr.bf16.gmra.mrb[0].mxu0 %v2692
        %v2917 = vpop.f32.mrb[0].mxu0
        %v2918 = vadd.f32 0.0, %v2917
        %v2919 = vpop.f32.mrb[0].mxu0
        %v2920 = vadd.f32 0.0, %v2919
        %v2921 = vpop.f32.mrb[0].mxu0
        %v2922 = vadd.f32 0.0, %v2921
        %v2923 = vpop.f32.mrb[0].mxu0
        %v2924 = vadd.f32 0.0, %v2923
        %2925 = vmatprep.mubr.bf16.mxu0 0
        %2926 = vmatmul.mubr.bf16.gmra.mrb[0].mxu0 %v2693
        %v2927 = vpop.f32.mrb[0].mxu0
        %v2928 = vadd.f32 0.0, %v2927
        %v2929 = vpop.f32.mrb[0].mxu0
        %v2930 = vadd.f32 0.0, %v2929
        %v2931 = vpop.f32.mrb[0].mxu0
        %v2932 = vadd.f32 0.0, %v2931
        %v2933 = vpop.f32.mrb[0].mxu0
        %v2934 = vadd.f32 0.0, %v2933
        %2935 = vmatprep.mubr.bf16.mxu0 0
        %2936 = vmatmul.mubr.bf16.gmra.mrb[0].mxu0 %v2694
        %v2937 = vpop.f32.mrb[0].mxu0
        %v2938 = vadd.f32 0.0, %v2937
        %v2939 = vpop.f32.mrb[0].mxu0
        %v2940 = vadd.f32 0.0, %v2939
        %v2941 = vpop.f32.mrb[0].mxu0
        %v2942 = vadd.f32 0.0, %v2941
        %v2943 = vpop.f32.mrb[0].mxu0
        %v2944 = vadd.f32 0.0, %v2943
        %2945 = vmatprep.mubr.bf16.mxu0 0
        %2946 = vmatmul.mubr.bf16.gmra.mrb[0].mxu0 %v2695
        %v2947 = vpop.f32.mrb[0].mxu0
        %v2948 = vadd.f32 0.0, %v2947
        %v2949 = vpop.f32.mrb[0].mxu0
        %v2950 = vadd.f32 0.0, %v2949
        %v2951 = vpop.f32.mrb[0].mxu0
        %v2952 = vadd.f32 0.0, %v2951
        %v2953 = vpop.f32.mrb[0].mxu0
        %v2954 = vadd.f32 0.0, %v2953
        %2955 = vmatprep.mubr.bf16.mxu0 0
        %2956 = vmatmul.mubr.bf16.gmra.mrb[0].mxu0 %v2696
        %v2957 = vpop.f32.mrb[0].mxu0
        %v2958 = vadd.f32 0.0, %v2957
        %v2959 = vpop.f32.mrb[0].mxu0
        %v2960 = vadd.f32 0.0, %v2959
        %v2961 = vpop.f32.mrb[0].mxu0
        %v2962 = vadd.f32 0.0, %v2961
        %v2963 = vpop.f32.mrb[0].mxu0
        %v2964 = vadd.f32 0.0, %v2963
        %2965 = vmatprep.mubr.bf16.mxu0 0
        %2966 = vmatmul.mubr.bf16.gmra.mrb[0].mxu0 %v2697
        %v2967 = vpop.f32.mrb[0].mxu0
        %v2968 = vadd.f32 0.0, %v2967
        %v2969 = vpop.f32.mrb[0].mxu0
        %v2970 = vadd.f32 0.0, %v2969
        %v2971 = vpop.f32.mrb[0].mxu0
        %v2972 = vadd.f32 0.0, %v2971
        %v2973 = vpop.f32.mrb[0].mxu0
        %v2974 = vadd.f32 0.0, %v2973
        %2975 = vmatprep.mubr.bf16.mxu0 0
        %2976 = vmatmul.mubr.bf16.gmra.mrb[0].mxu0 %v2698
        %v2977 = vpop.f32.mrb[0].mxu0
        %v2978 = vadd.f32 0.0, %v2977
        %v2979 = vpop.f32.mrb[0].mxu0
        %v2980 = vadd.f32 0.0, %v2979
        %v2981 = vpop.f32.mrb[0].mxu0
        %v2982 = vadd.f32 0.0, %v2981
        %v2983 = vpop.f32.mrb[0].mxu0
        %v2984 = vadd.f32 0.0, %v2983
        %2985 = vmatprep.mubr.bf16.mxu0 0
        %2986 = vmatmul.mubr.bf16.gmra.mrb[0].mxu0 %v2699
        %v2987 = vpop.f32.mrb[0].mxu0
        %v2988 = vadd.f32 0.0, %v2987
        %v2989 = vpop.f32.mrb[0].mxu0
        %v2990 = vadd.f32 0.0, %v2989
        %v2991 = vpop.f32.mrb[0].mxu0
        %v2992 = vadd.f32 0.0, %v2991
        %v2993 = vpop.f32.mrb[0].mxu0
        %v2994 = vadd.f32 0.0, %v2993
        %2995 = vmatprep.mubr.bf16.mxu0 0
        %2996 = vmatmul.mubr.bf16.gmra.mrb[0].mxu0 %v2700
        %v2997 = vpop.f32.mrb[0].mxu0
        %v2998 = vadd.f32 0.0, %v2997
        %v2999 = vpop.f32.mrb[0].mxu0
        %v3000 = vadd.f32 0.0, %v2999
        %v3001 = vpop.f32.mrb[0].mxu0
        %v3002 = vadd.f32 0.0, %v3001
        %v3003 = vpop.f32.mrb[0].mxu0
        %v3004 = vadd.f32 0.0, %v3003
        %3005 = vmatprep.mubr.bf16.mxu0 0
        %3006 = vmatmul.mubr.bf16.gmra.mrb[0].mxu0 %v2701
        %v3007 = vpop.f32.mrb[0].mxu0
        %v3008 = vadd.f32 0.0, %v3007
        %v3009 = vpop.f32.mrb[0].mxu0
        %v3010 = vadd.f32 0.0, %v3009
        %v3011 = vpop.f32.mrb[0].mxu0
        %v3012 = vadd.f32 0.0, %v3011
        %v3013 = vpop.f32.mrb[0].mxu0
        %v3014 = vadd.f32 0.0, %v3013
        %3015 = vmatprep.mubr.bf16.mxu0 0
        %3016 = vmatmul.mubr.bf16.gmra.mrb[0].mxu0 %v2702
        %v3017 = vpop.f32.mrb[0].mxu0
        %v3018 = vadd.f32 0.0, %v3017
        %v3019 = vpop.f32.mrb[0].mxu0
        %v3020 = vadd.f32 0.0, %v3019
        %v3021 = vpop.f32.mrb[0].mxu0
        %v3022 = vadd.f32 0.0, %v3021
        %v3023 = vpop.f32.mrb[0].mxu0
        %v3024 = vadd.f32 0.0, %v3023
        %3025 = vmatprep.mubr.bf16.mxu0 0
        %3026 = vmatmul.mubr.bf16.gmra.mrb[0].mxu0 %v2703
        %v3027 = vpop.f32.mrb[0].mxu0
        %v3028 = vadd.f32 0.0, %v3027
        %v3029 = vpop.f32.mrb[0].mxu0
        %v3030 = vadd.f32 0.0, %v3029
        %v3031 = vpop.f32.mrb[0].mxu0
        %v3032 = vadd.f32 0.0, %v3031
        %v3033 = vpop.f32.mrb[0].mxu0
        %v3034 = vadd.f32 0.0, %v3033
        %3035 = vmatprep.mubr.bf16.mxu0 0
        %3036 = vmatmul.mubr.bf16.gmra.mrb[0].mxu0 %v2704
        %v3037 = vpop.f32.mrb[0].mxu0
        %v3038 = vadd.f32 0.0, %v3037
        %v3039 = vpop.f32.mrb[0].mxu0
        %v3040 = vadd.f32 0.0, %v3039
        %v3041 = vpop.f32.mrb[0].mxu0
        %v3042 = vadd.f32 0.0, %v3041
        %v3043 = vpop.f32.mrb[0].mxu0
        %v3044 = vadd.f32 0.0, %v3043
        %3045 = vmatprep.mubr.bf16.mxu0 0
        %3046 = vmatmul.mubr.bf16.gmra.mrb[0].mxu0 %v2705
        %v3047 = vpop.f32.mrb[0].mxu0
        %v3048 = vadd.f32 0.0, %v3047
        %v3049 = vpop.f32.mrb[0].mxu0
        %v3050 = vadd.f32 0.0, %v3049
        %v3051 = vpop.f32.mrb[0].mxu0
        %v3052 = vadd.f32 0.0, %v3051
        %v3053 = vpop.f32.mrb[0].mxu0
        %v3054 = vadd.f32 0.0, %v3053
        %3055 = vmatprep.mubr.bf16.mxu0 0
        %3056 = vmatmul.mubr.bf16.gmra.mrb[0].mxu0 %v2706
        %v3057 = vpop.f32.mrb[0].mxu0
        %v3058 = vadd.f32 0.0, %v3057
        %v3059 = vpop.f32.mrb[0].mxu0
        %v3060 = vadd.f32 0.0, %v3059
        %v3061 = vpop.f32.mrb[0].mxu0
        %v3062 = vadd.f32 0.0, %v3061
        %v3063 = vpop.f32.mrb[0].mxu0
        %v3064 = vadd.f32 0.0, %v3063
        %3065 = vmatprep.mubr.bf16.mxu0 0
        %3066 = vmatmul.mubr.bf16.gmra.mrb[0].mxu0 %v2707
        %v3067 = vpop.f32.mrb[0].mxu0
        %v3068 = vadd.f32 0.0, %v3067
        %v3069 = vpop.f32.mrb[0].mxu0
        %v3070 = vadd.f32 0.0, %v3069
        %v3071 = vpop.f32.mrb[0].mxu0
        %v3072 = vadd.f32 0.0, %v3071
        %v3073 = vpop.f32.mrb[0].mxu0
        %v3074 = vadd.f32 0.0, %v3073
        %3075 = vmatprep.mubr.bf16.mxu0 0
        %3076 = vmatmul.mubr.bf16.gmra.mrb[0].mxu0 %v2708
        %v3077 = vpop.f32.mrb[0].mxu0
        %v3078 = vadd.f32 0.0, %v3077
        %v3079 = vpop.f32.mrb[0].mxu0
        %v3080 = vadd.f32 0.0, %v3079
        %v3081 = vpop.f32.mrb[0].mxu0
        %v3082 = vadd.f32 0.0, %v3081
        %v3083 = vpop.f32.mrb[0].mxu0
        %v3084 = vadd.f32 0.0, %v3083
        %3085 = vmatprep.mubr.bf16.mxu0 0
        %3086 = vmatmul.mubr.bf16.gmra.mrb[0].mxu0 %v2709
        %v3087 = vpop.f32.mrb[0].mxu0
        %v3088 = vadd.f32 0.0, %v3087
        %v3089 = vpop.f32.mrb[0].mxu0
        %v3090 = vadd.f32 0.0, %v3089
        %v3091 = vpop.f32.mrb[0].mxu0
        %v3092 = vadd.f32 0.0, %v3091
        %v3093 = vpop.f32.mrb[0].mxu0
        %v3094 = vadd.f32 0.0, %v3093
        %3095 = vmatprep.mubr.bf16.mxu0 0
        %3096 = vmatmul.mubr.bf16.gmra.mrb[0].mxu0 %v2710
        %v3097 = vpop.f32.mrb[0].mxu0
        %v3098 = vadd.f32 0.0, %v3097
        %v3099 = vpop.f32.mrb[0].mxu0
        %v3100 = vadd.f32 0.0, %v3099
        %v3101 = vpop.f32.mrb[0].mxu0
        %v3102 = vadd.f32 0.0, %v3101
        %v3103 = vpop.f32.mrb[0].mxu0
        %v3104 = vadd.f32 0.0, %v3103
        %3105 = vmatprep.mubr.bf16.mxu0 0
        %3106 = vmatmul.mubr.bf16.gmra.mrb[0].mxu0 %v2711
        %v3107 = vpop.f32.mrb[0].mxu0
        %v3108 = vadd.f32 0.0, %v3107
        %v3109 = vpop.f32.mrb[0].mxu0
        %v3110 = vadd.f32 0.0, %v3109
        %v3111 = vpop.f32.mrb[0].mxu0
        %v3112 = vadd.f32 0.0, %v3111
        %v3113 = vpop.f32.mrb[0].mxu0
        %v3114 = vadd.f32 0.0, %v3113
        %3115 = vmatprep.mubr.bf16.mxu0 0
        %3116 = vmatmul.mubr.bf16.gmra.mrb[0].mxu0 %v2712
        %v3117 = vpop.f32.mrb[0].mxu0
        %v3118 = vadd.f32 0.0, %v3117
        %v3119 = vpop.f32.mrb[0].mxu0
        %v3120 = vadd.f32 0.0, %v3119
        %v3121 = vpop.f32.mrb[0].mxu0
        %v3122 = vadd.f32 0.0, %v3121
        %v3123 = vpop.f32.mrb[0].mxu0
        %v3124 = vadd.f32 0.0, %v3123
        %3125 = vmatprep.mubr.bf16.mxu0 0
        %3126 = vmatmul.mubr.bf16.gmra.mrb[0].mxu0 %v2713
        %v3127 = vpop.f32.mrb[0].mxu0
        %v3128 = vadd.f32 0.0, %v3127
        %v3129 = vpop.f32.mrb[0].mxu0
        %v3130 = vadd.f32 0.0, %v3129
        %v3131 = vpop.f32.mrb[0].mxu0
        %v3132 = vadd.f32 0.0, %v3131
        %v3133 = vpop.f32.mrb[0].mxu0
        %v3134 = vadd.f32 0.0, %v3133
        %3135 = vmatprep.mubr.bf16.mxu0 0
        %3136 = vmatmul.mubr.bf16.gmra.mrb[0].mxu0 %v2714
        %v3137 = vpop.f32.mrb[0].mxu0
        %v3138 = vadd.f32 0.0, %v3137
        %v3139 = vpop.f32.mrb[0].mxu0
        %v3140 = vadd.f32 0.0, %v3139
        %v3141 = vpop.f32.mrb[0].mxu0
        %v3142 = vadd.f32 0.0, %v3141
        %v3143 = vpop.f32.mrb[0].mxu0
        %v3144 = vadd.f32 0.0, %v3143
        %3145 = vmatprep.mubr.bf16.mxu0 0
        %3146 = vmatmul.mubr.bf16.gmra.mrb[0].mxu0 %v2715
        %v3147 = vpop.f32.mrb[0].mxu0
        %v3148 = vadd.f32 0.0, %v3147
        %v3149 = vpop.f32.mrb[0].mxu0
        %v3150 = vadd.f32 0.0, %v3149
        %v3151 = vpop.f32.mrb[0].mxu0
        %v3152 = vadd.f32 0.0, %v3151
        %v3153 = vpop.f32.mrb[0].mxu0
        %v3154 = vadd.f32 0.0, %v3153
        %3155 = vmatprep.mubr.bf16.mxu0 0
        %3156 = vmatmul.mubr.bf16.gmra.mrb[0].mxu0 %v2716
        %v3157 = vpop.f32.mrb[0].mxu0
        %v3158 = vadd.f32 0.0, %v3157
        %v3159 = vpop.f32.mrb[0].mxu0
        %v3160 = vadd.f32 0.0, %v3159
        %v3161 = vpop.f32.mrb[0].mxu0
        %v3162 = vadd.f32 0.0, %v3161
        %v3163 = vpop.f32.mrb[0].mxu0
        %v3164 = vadd.f32 0.0, %v3163
        %3165 = vdwg.mxu0
        %v3166 = vmax.f32 %v2848, %v2858
        %v3167 = vmax.f32 %v2852, %v2862
        %v3168 = vmax.f32 %v3166, %v2868
        %v3169 = vmax.f32 %v3167, %v2872
        %v3170 = vmax.f32 %v3168, %v2878
        %v3171 = vmax.f32 %v3169, %v2882
        %v3172 = vmax.f32 %v3170, %v2888
        %v3173 = vmax.f32 %v3171, %v2892
        %v3174 = vmax.f32 %v3172, %v2898
        %v3175 = vmax.f32 %v3173, %v2902
        %v3176 = vmax.f32 %v3174, %v2908
        %v3177 = vmax.f32 %v3175, %v2912
        %v3178 = vmax.f32 %v3176, %v2918
        %v3179 = vmax.f32 %v3177, %v2922
        %v3180 = vmax.f32 %v3178, %v2928
        %v3181 = vmax.f32 %v3179, %v2932
        %v3182 = vmax.f32 %v3180, %v2938
        %v3183 = vmax.f32 %v3181, %v2942
        %v3184 = vmax.f32 %v3182, %v2948
        %v3185 = vmax.f32 %v3183, %v2952
        %v3186 = vmax.f32 %v3184, %v2958
        %v3187 = vmax.f32 %v3185, %v2962
        %v3188 = vmax.f32 %v3186, %v2968
        %v3189 = vmax.f32 %v3187, %v2972
        %v3190 = vmax.f32 %v3188, %v2978
        %v3191 = vmax.f32 %v3189, %v2982
        %v3192 = vmax.f32 %v3190, %v2988
        %v3193 = vmax.f32 %v3191, %v2992
        %v3194 = vmax.f32 %v3192, %v2998
        %v3195 = vmax.f32 %v3193, %v3002
        %v3196 = vmax.f32 %v3194, %v3195
        %v3197 = vrot.slane %v3196, 4
        %v3198 = vmax.f32 %v3196, %v3197
        %v3199 = vrot.slane %v3198, 2
        %v3200 = vmax.f32 %v3198, %v3199
        %v3201 = vrot.slane %v3200, 1
        %v3202 = vmax.f32 %v3200, %v3201
        %v3203 = vmax.f32 %v2850, %v2860
        %v3204 = vmax.f32 %v2854, %v2864
        %v3205 = vmax.f32 %v3203, %v2870
        %v3206 = vmax.f32 %v3204, %v2874
        %v3207 = vmax.f32 %v3205, %v2880
        %v3208 = vmax.f32 %v3206, %v2884
        %v3209 = vmax.f32 %v3207, %v2890
        %v3210 = vmax.f32 %v3208, %v2894
        %v3211 = vmax.f32 %v3209, %v2900
        %v3212 = vmax.f32 %v3210, %v2904
        %v3213 = vmax.f32 %v3211, %v2910
        %v3214 = vmax.f32 %v3212, %v2914
        %v3215 = vmax.f32 %v3213, %v2920
        %v3216 = vmax.f32 %v3214, %v2924
        %v3217 = vmax.f32 %v3215, %v2930
        %v3218 = vmax.f32 %v3216, %v2934
        %v3219 = vmax.f32 %v3217, %v2940
        %v3220 = vmax.f32 %v3218, %v2944
        %v3221 = vmax.f32 %v3219, %v2950
        %v3222 = vmax.f32 %v3220, %v2954
        %v3223 = vmax.f32 %v3221, %v2960
        %v3224 = vmax.f32 %v3222, %v2964
        %v3225 = vmax.f32 %v3223, %v2970
        %v3226 = vmax.f32 %v3224, %v2974
        %v3227 = vmax.f32 %v3225, %v2980
        %v3228 = vmax.f32 %v3226, %v2984
        %v3229 = vmax.f32 %v3227, %v2990
        %v3230 = vmax.f32 %v3228, %v2994
        %v3231 = vmax.f32 %v3229, %v3000
        %v3232 = vmax.f32 %v3230, %v3004
        %v3233 = vmax.f32 %v3231, %v3232
        %v3234 = vrot.slane %v3233, 4
        %v3235 = vmax.f32 %v3233, %v3234
        %v3236 = vrot.slane %v3235, 2
        %v3237 = vmax.f32 %v3235, %v3236
        %v3238 = vrot.slane %v3237, 1
        %v3239 = vmax.f32 %v3237, %v3238
        %v3240 = vmax.f32 %v3008, %v3018
        %v3241 = vmax.f32 %v3012, %v3022
        %v3242 = vmax.f32 %v3240, %v3028
        %v3243 = vmax.f32 %v3241, %v3032
        %v3244 = vmax.f32 %v3242, %v3038
        %v3245 = vmax.f32 %v3243, %v3042
        %v3246 = vmax.f32 %v3244, %v3048
        %v3247 = vmax.f32 %v3245, %v3052
        %v3248 = vmax.f32 %v3246, %v3058
        %v3249 = vmax.f32 %v3247, %v3062
        %v3250 = vmax.f32 %v3248, %v3068
        %v3251 = vmax.f32 %v3249, %v3072
        %v3252 = vmax.f32 %v3250, %v3078
        %v3253 = vmax.f32 %v3251, %v3082
        %v3254 = vmax.f32 %v3252, %v3088
        %v3255 = vmax.f32 %v3253, %v3092
        %v3256 = vmax.f32 %v3254, %v3098
        %v3257 = vmax.f32 %v3255, %v3102
        %v3258 = vmax.f32 %v3256, %v3108
        %v3259 = vmax.f32 %v3257, %v3112
        %v3260 = vmax.f32 %v3258, %v3118
        %v3261 = vmax.f32 %v3259, %v3122
        %v3262 = vmax.f32 %v3260, %v3128
        %v3263 = vmax.f32 %v3261, %v3132
        %v3264 = vmax.f32 %v3262, %v3138
        %v3265 = vmax.f32 %v3263, %v3142
        %v3266 = vmax.f32 %v3264, %v3148
        %v3267 = vmax.f32 %v3265, %v3152
        %v3268 = vmax.f32 %v3266, %v3158
        %v3269 = vmax.f32 %v3267, %v3162
        %v3270 = vmax.f32 %v3268, %v3269
        %v3271 = vrot.slane %v3270, 4
        %v3272 = vmax.f32 %v3270, %v3271
        %v3273 = vrot.slane %v3272, 2
        %v3274 = vmax.f32 %v3272, %v3273
        %v3275 = vrot.slane %v3274, 1
        %v3276 = vmax.f32 %v3274, %v3275
        %v3277 = vmax.f32 %v3010, %v3020
        %v3278 = vmax.f32 %v3014, %v3024
        %v3279 = vmax.f32 %v3277, %v3030
        %v3280 = vmax.f32 %v3278, %v3034
        %v3281 = vmax.f32 %v3279, %v3040
        %v3282 = vmax.f32 %v3280, %v3044
        %v3283 = vmax.f32 %v3281, %v3050
        %v3284 = vmax.f32 %v3282, %v3054
        %v3285 = vmax.f32 %v3283, %v3060
        %v3286 = vmax.f32 %v3284, %v3064
        %v3287 = vmax.f32 %v3285, %v3070
        %v3288 = vmax.f32 %v3286, %v3074
        %v3289 = vmax.f32 %v3287, %v3080
        %v3290 = vmax.f32 %v3288, %v3084
        %v3291 = vmax.f32 %v3289, %v3090
        %v3292 = vmax.f32 %v3290, %v3094
        %v3293 = vmax.f32 %v3291, %v3100
        %v3294 = vmax.f32 %v3292, %v3104
        %v3295 = vmax.f32 %v3293, %v3110
        %v3296 = vmax.f32 %v3294, %v3114
        %v3297 = vmax.f32 %v3295, %v3120
        %v3298 = vmax.f32 %v3296, %v3124
        %v3299 = vmax.f32 %v3297, %v3130
        %v3300 = vmax.f32 %v3298, %v3134
        %v3301 = vmax.f32 %v3299, %v3140
        %v3302 = vmax.f32 %v3300, %v3144
        %v3303 = vmax.f32 %v3301, %v3150
        %v3304 = vmax.f32 %v3302, %v3154
        %v3305 = vmax.f32 %v3303, %v3160
        %v3306 = vmax.f32 %v3304, %v3164
        %v3307 = vmax.f32 %v3305, %v3306
        %v3308 = vrot.slane %v3307, 4
        %v3309 = vmax.f32 %v3307, %v3308
        %v3310 = vrot.slane %v3309, 2
        %v3311 = vmax.f32 %v3309, %v3310
        %v3312 = vrot.slane %v3311, 1
        %v3313 = vmax.f32 %v3311, %v3312
        %vm3314 = vcmask 1040384
        %v3315 = vsel %vm3314, %v3202, %v3276
        %v3316 = vsel %vm3314, %v3239, %v3313
        %v3317 = vld [vmem:[%s2] sm:$0x3]
        %v3319 = vlaneseq
        %v3320 = vshrl.u32 %v3319, 7
        %v3321 = vsub.s32 0, %v3320
        %v3322 = vrot.slane %v3317, %v3321
        %v3323 = vlaneseq
        %v3324 = vshrl.u32 %v3323, 7
        %v3325 = vsub.s32 1, %v3324
        %v3326 = vrot.slane %v3317, %v3325
        %v3329 = vadd.f32 %v3315, %v3322
        %v3330 = vadd.f32 %v3316, %v3326
        %v3331 = vmax.f32 %v3329, 0.0
        %v3332 = vmax.f32 %v3330, 0.0
        %v3333 = vpack.c.bf16 %v3331, %v3331
        %v3334 = vpack.c.bf16 %v3332, %v3332
        %v3335 = vld [vmem:[%s3] sm:$0xf]
        %v3336 = vld [vmem:[%s3 + $0x4] sm:$0xf]
        %v3337 = vld [vmem:[%s3 + $0x8] sm:$0xf]
        %v3338 = vld [vmem:[%s3 + $0xc] sm:$0xf]
        %v3339 = vld [vmem:[%s3 + $0x10] sm:$0xf]
        %v3340 = vld [vmem:[%s3 + $0x14] sm:$0xf]
        %v3341 = vld [vmem:[%s3 + $0x18] sm:$0xf]
        %v3342 = vld [vmem:[%s3 + $0x1c] sm:$0xf]
        %v3343 = vld [vmem:[%s3 + $0x20] sm:$0xf]
        %v3344 = vld [vmem:[%s3 + $0x24] sm:$0xf]
        %v3345 = vld [vmem:[%s3 + $0x28] sm:$0xf]
        %v3346 = vld [vmem:[%s3 + $0x2c] sm:$0xf]
        %v3347 = vld [vmem:[%s3 + $0x30] sm:$0xf]
        %v3348 = vld [vmem:[%s3 + $0x34] sm:$0xf]
        %v3349 = vld [vmem:[%s3 + $0x38] sm:$0xf]
        %v3350 = vld [vmem:[%s3 + $0x3c] sm:$0xf]
        %v3351 = vld [vmem:[%s3 + $0x40] sm:$0xf]
        %v3352 = vld [vmem:[%s3 + $0x44] sm:$0xf]
        %v3353 = vld [vmem:[%s3 + $0x48] sm:$0xf]
        %v3354 = vld [vmem:[%s3 + $0x4c] sm:$0xf]
        %v3355 = vld [vmem:[%s3 + $0x50] sm:$0xf]
        %v3356 = vld [vmem:[%s3 + $0x54] sm:$0xf]
        %v3357 = vld [vmem:[%s3 + $0x58] sm:$0xf]
        %v3358 = vld [vmem:[%s3 + $0x5c] sm:$0xf]
        %v3359 = vld [vmem:[%s3 + $0x60] sm:$0xf]
        %v3360 = vld [vmem:[%s3 + $0x64] sm:$0xf]
        %v3361 = vld [vmem:[%s3 + $0x68] sm:$0xf]
        %v3362 = vld [vmem:[%s3 + $0x6c] sm:$0xf]
        %v3363 = vld [vmem:[%s3 + $0x70] sm:$0xf]
        %v3364 = vld [vmem:[%s3 + $0x74] sm:$0xf]
        %v3365 = vld [vmem:[%s3 + $0x78] sm:$0xf]
        %v3366 = vld [vmem:[%s3 + $0x7c] sm:$0xf]
        %v3367 = vld [vmem:[%s4] sm:$0x1]
        %v3369 = vlaneseq
        %v3370 = vshrl.u32 %v3369, 7
        %v3371 = vsub.s32 0, %v3370
        %v3372 = vrot.slane %v3367, %v3371
        %v3406 = vunpack.c.l.b16 %v3335
        %v3407 = vunpack.c.l.b16 %v3336
        %v3408 = vunpack.c.l.b16 %v3337
        %v3409 = vunpack.c.l.b16 %v3338
        %v3410 = vunpack.c.l.b16 %v3339
        %v3411 = vunpack.c.l.b16 %v3340
        %v3412 = vunpack.c.l.b16 %v3341
        %v3413 = vunpack.c.l.b16 %v3342
        %v3414 = vunpack.c.l.b16 %v3343
        %v3415 = vunpack.c.l.b16 %v3344
        %v3416 = vunpack.c.l.b16 %v3345
        %v3417 = vunpack.c.l.b16 %v3346
        %v3418 = vunpack.c.l.b16 %v3347
        %v3419 = vunpack.c.l.b16 %v3348
        %v3420 = vunpack.c.l.b16 %v3349
        %v3421 = vunpack.c.l.b16 %v3350
        %v3422 = vunpack.c.l.b16 %v3351
        %v3423 = vunpack.c.l.b16 %v3352
        %v3424 = vunpack.c.l.b16 %v3353
        %v3425 = vunpack.c.l.b16 %v3354
        %v3426 = vunpack.c.l.b16 %v3355
        %v3427 = vunpack.c.l.b16 %v3356
        %v3428 = vunpack.c.l.b16 %v3357
        %v3429 = vunpack.c.l.b16 %v3358
        %v3430 = vunpack.c.l.b16 %v3359
        %v3431 = vunpack.c.l.b16 %v3360
        %v3432 = vunpack.c.l.b16 %v3361
        %v3433 = vunpack.c.l.b16 %v3362
        %v3434 = vunpack.c.l.b16 %v3363
        %v3435 = vunpack.c.l.b16 %v3364
        %v3436 = vunpack.c.l.b16 %v3365
        %v3437 = vunpack.c.l.b16 %v3366
        %v3438 = vpack.c.b16 %v3407, %v3406
        %v3439 = vpack.c.b16 %v3409, %v3408
        %v3440 = vpack.c.b16 %v3411, %v3410
        %v3441 = vpack.c.b16 %v3413, %v3412
        %v3442 = vpack.c.b16 %v3415, %v3414
        %v3443 = vpack.c.b16 %v3417, %v3416
        %v3444 = vpack.c.b16 %v3419, %v3418
        %v3445 = vpack.c.b16 %v3421, %v3420
        %v3446 = vpack.c.b16 %v3423, %v3422
        %v3447 = vpack.c.b16 %v3425, %v3424
        %v3448 = vpack.c.b16 %v3427, %v3426
        %v3449 = vpack.c.b16 %v3429, %v3428
        %v3450 = vpack.c.b16 %v3431, %v3430
        %v3451 = vpack.c.b16 %v3433, %v3432
        %v3452 = vpack.c.b16 %v3435, %v3434
        %v3453 = vpack.c.b16 %v3437, %v3436
        %3470 = vmatprep.subr.bf16.mxu0 0
        %3471 = vmatpush1.bf16.msra.mxu0 %v3438
        %3472 = vmatprep.subr.bf16.mxu0 0
        %3473 = vmatpush1.bf16.msra.mxu0 %v3439
        %3474 = vmatprep.subr.bf16.mxu0 0
        %3475 = vmatpush1.bf16.msra.mxu0 %v3440
        %3476 = vmatprep.subr.bf16.mxu0 0
        %3477 = vmatpush1.bf16.msra.mxu0 %v3441
        %3478 = vmatprep.subr.bf16.mxu0 0
        %3479 = vmatpush1.bf16.msra.mxu0 %v3442
        %3480 = vmatprep.subr.bf16.mxu0 0
        %3481 = vmatpush1.bf16.msra.mxu0 %v3443
        %3482 = vmatprep.subr.bf16.mxu0 0
        %3483 = vmatpush1.bf16.msra.mxu0 %v3444
        %3484 = vmatprep.subr.bf16.mxu0 0
        %3485 = vmatpush1.bf16.msra.mxu0 %v3445
        %3486 = vmatprep.subr.bf16.mxu0 0
        %3487 = vmatpush1.bf16.msra.mxu0 %v3446
        %3488 = vmatprep.subr.bf16.mxu0 0
        %3489 = vmatpush1.bf16.msra.mxu0 %v3447
        %3490 = vmatprep.subr.bf16.mxu0 0
        %3491 = vmatpush1.bf16.msra.mxu0 %v3448
        %3492 = vmatprep.subr.bf16.mxu0 0
        %3493 = vmatpush1.bf16.msra.mxu0 %v3449
        %3494 = vmatprep.subr.bf16.mxu0 0
        %3495 = vmatpush1.bf16.msra.mxu0 %v3450
        %3496 = vmatprep.subr.bf16.mxu0 0
        %3497 = vmatpush1.bf16.msra.mxu0 %v3451
        %3498 = vmatprep.subr.bf16.mxu0 0
        %3499 = vmatpush1.bf16.msra.mxu0 %v3452
        %3500 = vmatprep.subr.bf16.mxu0 0
        %3501 = vmatpush1.bf16.msra.mxu0 %v3453
        %3502 = vmatprep.mubr.bf16.mxu0 %v3334
        %3503 = vmatmul.mubr.bf16.gmra.mrb[0].mxu0 %v3333
        %v3504 = vpop.f32.mrb[0].mxu0
        %v3505 = vadd.f32 %v3372, %v3504
        %v3506 = vpop.f32.mrb[0].mxu0
        %v3507 = vpop.f32.mrb[0].mxu0
        %v3508 = vpop.f32.mrb[0].mxu0
        %3509 = vdwg.mxu0
        %v3510 = vmul.f32 %v3505, %v3505
        %vm3511 = vcmask 1041408
        %v3512 = vsel %vm3511, %v3510, 0.0
        %3513 = vadd.xlane.f32.xlu0 %v3512
        %v3514 = vpop.xlane.xlu0 %3513
        %v3515 = vmax.f32 %v3514, 1e-24
        %v3516 = vrsqrt.pop %v3515
        %v3517 = vmul.f32 %v3505, %v3516
        %3518 = vst [vmem:[%s220] sm:$0x3] %v3517
        %s3519 = sand.u32 %s137, 1
        %s3520 = scalar_lea.sflag [#allocation5], %s3519
        %s3521 = sand.u32 %s137, 1
        %s3522 = smul.addr %s3521, 2
        %s3523 = scalar_lea.vmem [#allocation4], %s3522
        // Predicated region
        $region41: #{extractor_forward.1} parent=39 // pred_check
          %p3524 = pneg %p147
        $region42: #{extractor_forward.1} parent=39 // pred_check_branch
          %3526 = sbr.rel (%p3524) target = $region44
        $region43: #{extractor_forward.1} parent=39 // pred_region
          %s3528 = ssub.s32 32, 32
          %3529 = vsyncadd %s3520, %s3528
          %s3530 = smul.addr %s19, 32
          %s3531 = scalar_lea.hbm %s5, %s3530
          %s3533 = sshll.u32 %s3523, 4
          %s3534 = int_to_ptr.vmem [resolvable:$true] %s3533
          %3536 = dma.vmem_to_hbm [thread:$0]  %s3534, 32, %s3531, %s3520
        $region44: #{extractor_forward.1} parent=39 // pred_fallthru
          _
      $region40: #{extractor_forward.1} parent=5 // pred_fallthru
        _
      %p3537 = scmp.le.s32.totalorder 2, %s14
      // Predicated region
      $region45: #{extractor_forward.1} parent=5 // pred_check
        %p3538 = pneg %p3537
      $region46: #{extractor_forward.1} parent=5 // pred_check_branch
        %3540 = sbr.rel (%p3538) target = $region48
      $region47: #{extractor_forward.1} parent=5 // pred_region
        %s3541 = ssub.s32 %s14, 2
        // Predicated region
        $region49: #{extractor_forward.1} parent=47 // pred_check
          %p3542 = pneg %p153
        $region50: #{extractor_forward.1} parent=47 // pred_check_branch
          %3544 = sbr.rel (%p3542) target = $region52
        $region51: #{extractor_forward.1} parent=47 // pred_region
          %s3545 = sand.u32 %s138, 1
          %s3546 = scalar_lea.sflag [#allocation5], %s3545
          %s3547 = sand.u32 %s138, 1
          %s3548 = smul.addr %s3547, 2
          %s3549 = scalar_lea.vmem [#allocation4], %s3548
          %3550 = dma.done %s3546, 32
        $region52: #{extractor_forward.1} parent=47 // pred_fallthru
          _
      $region48: #{extractor_forward.1} parent=5 // pred_fallthru
        _
    $region6: #{extractor_forward.1} parent=1 // loop_footer
      %s18 = sadd.s32 1, %s14
    $region7: #{extractor_forward.1} parent=1 // loop_footer_branch
      %13 = sbr.rel target = $region3
    $region8: #{extractor_forward.1} parent=1 // loop_exit
      _
    %3551 = vsyncpa [#allocation5], 1
    %s3552 = scalar_lea.sflag [#allocation5], 1
    %3553 = vsyncpa %s3552, 1

</llo_original>
